<compile_context>
chip_gen: v7x
topology: tpu7x:2x2x1
jax: 0.10.0
libtpu: 0.0.40
codegen_flags: <defaults>
</compile_context>

<pallas_src>
import jax
import jax.numpy as jnp
from jax import lax
from jax.experimental import pallas as pl
from jax.experimental.pallas import tpu as pltpu

HIDDEN = 128
HEAD_HIDDEN = 64


def actor_critic_kernel(
    x_ref,        # (T*Bp, Dp)      bf16, time-major
    w_lstm_ref,   # (Dp+3H, 4H)     bf16  [W_ih0 ; W_hh0 ; W_ih1 ; W_hh1] (row-stacked)
    bias_ref,     # (4, 4H)         f32   rows: b0, b1, b_head1(:192), b_head2(:128)
    w_head_ref,   # (H+192, 192)    bf16  rows 0:H = [Wm1|Ws1|Wv1]; rows H: = W_head2 pad
    out_ref,      # (Bp, 128)       f32   lanes 0/1/2 = mean/std/value
    gates0_ref,   # scratch (T*Bp, 4H) f32
):
    TB, Dp = x_ref.shape
    Bp = out_ref.shape[0]
    T = TB // Bp
    H = HIDDEN
    H3 = 3 * HEAD_HIDDEN  # 192

    # ---- hoisted layer-0 input projection: one big matmul, off the critical path ----
    gates0_ref[...] = (
        jnp.dot(x_ref[...], w_lstm_ref[0:Dp, :], preferred_element_type=jnp.float32)
        + bias_ref[0:1, :]
    )

    # Static, 16-aligned row slices of the packed LSTM weight slab (loaded once).
    w_hh0 = w_lstm_ref[Dp:Dp + H, :]
    w_ih1 = w_lstm_ref[Dp + H:Dp + 2 * H, :]
    w_hh1 = w_lstm_ref[Dp + 2 * H:Dp + 3 * H, :]
    b1 = jnp.broadcast_to(bias_ref[1:2, :], (Bp, 4 * H))   # hoist bias broadcast

    def sig(v):
        # sigmoid(x) = 0.5 * tanh(0.5 * x) + 0.5 : one EUP push instead of two.
        return 0.5 * jnp.tanh(0.5 * v) + 0.5

    def gate_math(gates, c):
        i_g = sig(gates[:, 0 * H:1 * H])
        f_g = sig(gates[:, 1 * H:2 * H])
        g_g = jnp.tanh(gates[:, 2 * H:3 * H])
        o_g = sig(gates[:, 3 * H:4 * H])
        c_new = f_g * c + i_g * g_g
        h_new = (o_g * jnp.tanh(c_new)).astype(jnp.bfloat16)   # h only feeds bf16 MXU ops
        return h_new, c_new

    def step(t, carry):
        h0, c0, h1, c1 = carry
        off = pl.multiple_of(t * Bp, Bp)
        # layer 0: precomputed input gates + recurrent matmul (K=128)
        g0 = gates0_ref[pl.ds(off, Bp), :] + jnp.dot(
            h0, w_hh0, preferred_element_type=jnp.float32)
        h0, c0 = gate_math(g0, c0)
        # layer 1: two K=128 dots (no per-step lane-concat / repack)
        g1 = (jnp.dot(h0, w_ih1, preferred_element_type=jnp.float32)
              + jnp.dot(h1, w_hh1, preferred_element_type=jnp.float32) + b1)
        h1, c1 = gate_math(g1, c1)
        return h0, c0, h1, c1

    zeros_h = jnp.zeros((Bp, H), jnp.bfloat16)
    zeros_c = jnp.zeros((Bp, H), jnp.float32)
    _, _, h1, _ = lax.fori_loop(
        0, T, step, (zeros_h, zeros_c, zeros_h, zeros_c), unroll=True
    )

    # ---- fused heads: (Bp,128)@(128,192) -> ReLU -> (Bp,192)@(192,128) ----
    wh1 = w_head_ref[0:H, :]            # (128, 192)
    wh2 = w_head_ref[H:H + H3, 0:H]     # (192, 128) block-structured 2nd layer
    hid = jnp.maximum(
        jnp.dot(h1, wh1, preferred_element_type=jnp.float32) + bias_ref[2:3, 0:H3],
        0.0,
    )
    raw = (jnp.dot(hid.astype(wh2.dtype), wh2, preferred_element_type=jnp.float32)
           + bias_ref[3:4, 0:H])

    lane = lax.broadcasted_iota(jnp.int32, raw.shape, 1)
    mean = jnp.tanh(raw)
    softplus = jnp.maximum(raw, 0.0) + jnp.log1p(jnp.exp(-jnp.abs(raw)))
    std = softplus + 1e-6
    out_ref[...] = jnp.where(lane == 0, mean, jnp.where(lane == 1, std, raw))


def init_params(key, input_size):
    """Deterministic parameter init mimicking the module's shapes."""
    H = HIDDEN
    HH = HEAD_HIDDEN
    ks = jax.random.split(key, 32)
    kiter = iter(ks)

    def u(shape, scale):
        return jax.random.uniform(
            next(kiter), shape, dtype=jnp.float32, minval=-scale, maxval=scale
        )

    s_lstm = 1.0 / jnp.sqrt(H)
    params = {
        # LSTM layer 0 (PyTorch: weight_ih_l0 (4H, D), weight_hh_l0 (4H, H))
        "w_ih0": u((4 * H, input_size), s_lstm),
        "w_hh0": u((4 * H, H), s_lstm),
        "b_ih0": u((4 * H,), s_lstm),
        "b_hh0": u((4 * H,), s_lstm),
        # LSTM layer 1
        "w_ih1": u((4 * H, H), s_lstm),
        "w_hh1": u((4 * H, H), s_lstm),
        "b_ih1": u((4 * H,), s_lstm),
        "b_hh1": u((4 * H,), s_lstm),
        # actor_mean
        "wm1": u((HH, H), 1.0 / jnp.sqrt(H)), "bm1": u((HH,), 1.0 / jnp.sqrt(H)),
        "wm2": u((1, HH), 1.0 / jnp.sqrt(HH)), "bm2": u((1,), 1.0 / jnp.sqrt(HH)),
        # actor_std
        "ws1": u((HH, H), 1.0 / jnp.sqrt(H)), "bs1": u((HH,), 1.0 / jnp.sqrt(H)),
        "ws2": u((1, HH), 1.0 / jnp.sqrt(HH)), "bs2": u((1,), 1.0 / jnp.sqrt(HH)),
        # critic
        "wv1": u((HH, H), 1.0 / jnp.sqrt(H)), "bv1": u((HH,), 1.0 / jnp.sqrt(H)),
        "wv2": u((1, HH), 1.0 / jnp.sqrt(HH)), "bv2": u((1,), 1.0 / jnp.sqrt(HH)),
    }
    return params


def pack_params(params, input_size, dtype=jnp.bfloat16):
    """One-time weight packing (transpose / concat / bias-fuse / bf16 cast).

    Hoisted out of the per-call path: cache the result and pass it to
    actor_critic_forward on every call.
    """
    H = HIDDEN
    HH = HEAD_HIDDEN
    H3 = 3 * HH
    D = input_size
    Dp = max(16, ((D + 15) // 16) * 16)          # bf16-sublane-aligned input width

    # Row-stacked LSTM weight slab (in, 4H): [W_ih0 ; W_hh0 ; W_ih1 ; W_hh1]
    w_lstm = jnp.zeros((Dp + 3 * H, 4 * H), jnp.float32)
    w_lstm = w_lstm.at[0:D, :].set(params["w_ih0"].T)
    w_lstm = w_lstm.at[Dp:Dp + H, :].set(params["w_hh0"].T)
    w_lstm = w_lstm.at[Dp + H:Dp + 2 * H, :].set(params["w_ih1"].T)
    w_lstm = w_lstm.at[Dp + 2 * H:Dp + 3 * H, :].set(params["w_hh1"].T)

    # Head slab: rows 0:H = [Wm1 | Ws1 | Wv1] (H, 192); rows H: = block-structured
    # second layer (192, 128) whose outputs land in lanes 0/1/2.
    w_head = jnp.zeros((H + H3, H3), jnp.float32)
    w_head = w_head.at[0:H, :].set(
        jnp.concatenate([params["wm1"].T, params["ws1"].T, params["wv1"].T], axis=1))
    wh2 = jnp.zeros((H3, H), jnp.float32)
    wh2 = wh2.at[0 * HH:1 * HH, 0].set(params["wm2"][0])
    wh2 = wh2.at[1 * HH:2 * HH, 1].set(params["ws2"][0])
    wh2 = wh2.at[2 * HH:3 * HH, 2].set(params["wv2"][0])
    w_head = w_head.at[H:H + H3, 0:H].set(wh2)

    # Bias slab (f32): row 0 = fused layer-0 bias, row 1 = fused layer-1 bias,
    # row 2[:192] = head layer-1 bias, row 3[:3] = head layer-2 bias.
    bias = jnp.zeros((4, 4 * H), jnp.float32)
    bias = bias.at[0].set(params["b_ih0"] + params["b_hh0"])
    bias = bias.at[1].set(params["b_ih1"] + params["b_hh1"])
    bias = bias.at[2, 0:H3].set(
        jnp.concatenate([params["bm1"], params["bs1"], params["bv1"]]))
    bias = bias.at[3, 0].set(params["bm2"][0])
    bias = bias.at[3, 1].set(params["bs2"][0])
    bias = bias.at[3, 2].set(params["bv2"][0])

    return {
        "w_lstm": w_lstm.astype(dtype),
        "w_head": w_head.astype(dtype),
        "bias": bias,
    }


@jax.jit
def actor_critic_forward(x, packed):
    """x: (B, T, D_in) f32, packed: pack_params output -> (mean, std, value) each (B,1)."""
    B, T, D = x.shape
    H = HIDDEN
    Dp = packed["w_lstm"].shape[0] - 3 * H
    Bp = max(16, ((B + 15) // 16) * 16)           # bf16 sublane-tile-aligned batch
    wdt = packed["w_lstm"].dtype

    # time-major, batch/feature-padded, 2-D input for the hoisted projection and
    # 16-row-aligned per-step slices in the recurrence.
    x_pad = jnp.zeros((Bp, T, Dp), jnp.float32).at[:B, :, :D].set(x)
    x_tb = jnp.transpose(x_pad, (1, 0, 2)).reshape(T * Bp, Dp).astype(wdt)

    vmem_spec = pl.BlockSpec(memory_space=pltpu.MemorySpace.VMEM)

    out = pl.pallas_call(
        actor_critic_kernel,
        out_shape=jax.ShapeDtypeStruct((Bp, 128), jnp.float32),
        in_specs=[vmem_spec] * 4,
        out_specs=vmem_spec,
        scratch_shapes=[pltpu.VMEM((T * Bp, 4 * H), jnp.float32)],
    )(x_tb, packed["w_lstm"], packed["bias"], packed["w_head"])

    mean = out[:B, 0:1]
    std = out[:B, 1:2]
    value = out[:B, 2:3]
    return mean, std, value


def reference_forward(x, params):
    """Pure-JAX f32 reference with identical semantics (for a sanity check)."""
    B, T, D = x.shape
    H = HIDDEN

    def cell(x_t, h, c, w_ih, w_hh, b_ih, b_hh):
        gates = x_t @ w_ih.T + b_ih + h @ w_hh.T + b_hh
        i = jax.nn.sigmoid(gates[:, 0 * H:1 * H])
        f = jax.nn.sigmoid(gates[:, 1 * H:2 * H])
        g = jnp.tanh(gates[:, 2 * H:3 * H])
        o = jax.nn.sigmoid(gates[:, 3 * H:4 * H])
        c = f * c + i * g
        return o * jnp.tanh(c), c

    h0 = c0 = h1 = c1 = jnp.zeros((B, H), jnp.float32)
    for t in range(T):
        h0, c0 = cell(x[:, t], h0, c0, params["w_ih0"], params["w_hh0"],
                      params["b_ih0"], params["b_hh0"])
        h1, c1 = cell(h0, h1, c1, params["w_ih1"], params["w_hh1"],
                      params["b_ih1"], params["b_hh1"])

    def head(last, p):
        hid = jnp.maximum(last @ params[f"w{p}1"].T + params[f"b{p}1"], 0.0)
        return hid @ params[f"w{p}2"].T + params[f"b{p}2"]

    mean = jnp.tanh(head(h1, "m"))
    std = jax.nn.softplus(head(h1, "s")) + 1e-6
    value = head(h1, "v")
    return mean, std, value


if __name__ == "__main__":
    B, T, D_IN = 2, 8, 16
    key = jax.random.PRNGKey(0)
    kx, kp = jax.random.split(key)

    x = jax.random.normal(kx, (B, T, D_IN), dtype=jnp.float32)
    params = init_params(kp, D_IN)

    # Pack (transpose / fuse / bf16-cast) weights ONCE; reuse across forward calls.
    packed = pack_params(params, D_IN)
    packed = jax.tree_util.tree_map(jax.block_until_ready, packed)

    mean, std, value = actor_critic_forward(x, packed)
    jax.block_until_ready((mean, std, value))

    r_mean, r_std, r_value = reference_forward(x, params)
    assert mean.shape == (B, 1) and std.shape == (B, 1) and value.shape == (B, 1)
    # bf16 MXU operands (f32 accumulation) => loose tolerance vs the pure-f32 reference.
    assert jnp.allclose(mean, r_mean, atol=5e-2, rtol=5e-2), "mean mismatch"
    assert jnp.allclose(std, r_std, atol=5e-2, rtol=5e-2), "std mismatch"
    assert jnp.allclose(value, r_value, atol=5e-2, rtol=5e-2), "value mismatch"

    print("KERNEL_OK")
</pallas_src>

<mosaic_0001>
module attributes {stable_mosaic.version = 11 : i64} {
  func.func @actor_critic_kernel(%arg0: memref<128x16xbf16, #tpu.memory_space<vmem>>, %arg1: memref<400x512xbf16, #tpu.memory_space<vmem>>, %arg2: memref<4x512xf32, #tpu.memory_space<vmem>>, %arg3: memref<320x192xbf16, #tpu.memory_space<vmem>>, %arg4: memref<16x128xf32, #tpu.memory_space<vmem>>, %arg5: memref<128x512xf32, #tpu.memory_space<vmem>>) attributes {dimension_semantics = [], scalar_prefetch = 0 : i64, scratch_operands = 1 : i64, tpu.core_type = #tpu.core_type<tc>} {
    %c0 = arith.constant 0 : index
    %c0_0 = arith.constant 0 : index
    %0 = vector.load %arg0[%c0, %c0_0] : memref<128x16xbf16, #tpu.memory_space<vmem>>, vector<128x16xbf16>
    %c0_1 = arith.constant 0 : index
    %c0_2 = arith.constant 0 : index
    %1 = vector.load %arg1[%c0_1, %c0_2] : memref<400x512xbf16, #tpu.memory_space<vmem>>, vector<16x512xbf16>
    %cst = arith.constant dense<0.000000e+00> : vector<128x512xf32>
    %2 = tpu.matmul %0, %1, %cst {dimension_numbers = #tpu.dot_dimension_numbers<[1], [0], [0], [1], [0, 0, 1, 1], [], []>} : vector<128x16xbf16>, vector<16x512xbf16>, vector<128x512xf32> -> vector<128x512xf32>
    %c0_3 = arith.constant 0 : index
    %c0_4 = arith.constant 0 : index
    %3 = vector.load %arg2[%c0_3, %c0_4] : memref<4x512xf32, #tpu.memory_space<vmem>>, vector<1x512xf32>
    %4 = vector.broadcast %3 : vector<1x512xf32> to vector<128x512xf32>
    %5 = arith.addf %2, %4 : vector<128x512xf32>
    %c0_5 = arith.constant 0 : index
    %c0_6 = arith.constant 0 : index
    %6 = vector.load %arg5[%c0_5, %c0_6] : memref<128x512xf32, #tpu.memory_space<vmem>>, vector<128x512xf32>
    tpu.vector_store %arg5[%c0_5, %c0_6], %5 {strides = array<i32>} : memref<128x512xf32, #tpu.memory_space<vmem>>, vector<128x512xf32>,
    %c16 = arith.constant 16 : index
    %c0_7 = arith.constant 0 : index
    %7 = vector.load %arg1[%c16, %c0_7] : memref<400x512xbf16, #tpu.memory_space<vmem>>, vector<128x512xbf16>
    %c144 = arith.constant 144 : index
    %c0_8 = arith.constant 0 : index
    %8 = vector.load %arg1[%c144, %c0_8] : memref<400x512xbf16, #tpu.memory_space<vmem>>, vector<128x512xbf16>
    %c272 = arith.constant 272 : index
    %c0_9 = arith.constant 0 : index
    %9 = vector.load %arg1[%c272, %c0_9] : memref<400x512xbf16, #tpu.memory_space<vmem>>, vector<128x512xbf16>
    %c1 = arith.constant 1 : index
    %c0_10 = arith.constant 0 : index
    %10 = vector.load %arg2[%c1, %c0_10] : memref<4x512xf32, #tpu.memory_space<vmem>>, vector<1x512xf32>
    %11 = vector.shape_cast %10 : vector<1x512xf32> to vector<1x512xf32>
    %12 = vector.broadcast %11 : vector<1x512xf32> to vector<16x512xf32>
    %cst_11 = arith.constant 0.000000e+00 : bf16
    %13 = vector.broadcast %cst_11 : bf16 to vector<16x128xbf16>
    %cst_12 = arith.constant 0.000000e+00 : f32
    %14 = vector.broadcast %cst_12 : f32 to vector<16x128xf32>
    %c0_i32 = arith.constant 0 : i32
    %c16_i32 = arith.constant 16 : i32
    %15 = arith.muli %c0_i32, %c16_i32 : i32
    %16 = tpu.assume_multiple %15, 16 : i32
    %17 = arith.index_cast %16 : i32 to index
    %c0_13 = arith.constant 0 : index
    %18 = vector.load %arg5[%17, %c0_13] : memref<128x512xf32, #tpu.memory_space<vmem>>, vector<16x512xf32>
    %cst_14 = arith.constant dense<0.000000e+00> : vector<16x512xf32>
    %19 = tpu.matmul %13, %7, %cst_14 {dimension_numbers = #tpu.dot_dimension_numbers<[1], [0], [0], [1], [0, 0, 1, 1], [], []>} : vector<16x128xbf16>, vector<128x512xbf16>, vector<16x512xf32> -> vector<16x512xf32>
    %20 = arith.addf %18, %19 : vector<16x512xf32>
    %21 = vector.extract_strided_slice %20 {offsets = [0, 0], sizes = [16, 128], strides = [1, 1]} : vector<16x512xf32> to vector<16x128xf32>
    %cst_15 = arith.constant 5.000000e-01 : f32
    %22 = vector.broadcast %cst_15 : f32 to vector<16x128xf32>
    %23 = arith.mulf %22, %21 : vector<16x128xf32>
    %24 = math.tanh %23 : vector<16x128xf32>
    %cst_16 = arith.constant 5.000000e-01 : f32
    %25 = vector.broadcast %cst_16 : f32 to vector<16x128xf32>
    %26 = arith.mulf %25, %24 : vector<16x128xf32>
    %cst_17 = arith.constant 5.000000e-01 : f32
    %27 = vector.broadcast %cst_17 : f32 to vector<16x128xf32>
    %28 = arith.addf %26, %27 : vector<16x128xf32>
    %29 = vector.extract_strided_slice %20 {offsets = [0, 128], sizes = [16, 128], strides = [1, 1]} : vector<16x512xf32> to vector<16x128xf32>
    %cst_18 = arith.constant 5.000000e-01 : f32
    %30 = vector.broadcast %cst_18 : f32 to vector<16x128xf32>
    %31 = arith.mulf %30, %29 : vector<16x128xf32>
    %32 = math.tanh %31 : vector<16x128xf32>
    %cst_19 = arith.constant 5.000000e-01 : f32
    %33 = vector.broadcast %cst_19 : f32 to vector<16x128xf32>
    %34 = arith.mulf %33, %32 : vector<16x128xf32>
    %cst_20 = arith.constant 5.000000e-01 : f32
    %35 = vector.broadcast %cst_20 : f32 to vector<16x128xf32>
    %36 = arith.addf %34, %35 : vector<16x128xf32>
    %37 = vector.extract_strided_slice %20 {offsets = [0, 256], sizes = [16, 128], strides = [1, 1]} : vector<16x512xf32> to vector<16x128xf32>
    %38 = math.tanh %37 : vector<16x128xf32>
    %39 = vector.extract_strided_slice %20 {offsets = [0, 384], sizes = [16, 128], strides = [1, 1]} : vector<16x512xf32> to vector<16x128xf32>
    %cst_21 = arith.constant 5.000000e-01 : f32
    %40 = vector.broadcast %cst_21 : f32 to vector<16x128xf32>
    %41 = arith.mulf %40, %39 : vector<16x128xf32>
    %42 = math.tanh %41 : vector<16x128xf32>
    %cst_22 = arith.constant 5.000000e-01 : f32
    %43 = vector.broadcast %cst_22 : f32 to vector<16x128xf32>
    %44 = arith.mulf %43, %42 : vector<16x128xf32>
    %cst_23 = arith.constant 5.000000e-01 : f32
    %45 = vector.broadcast %cst_23 : f32 to vector<16x128xf32>
    %46 = arith.addf %44, %45 : vector<16x128xf32>
    %47 = arith.mulf %36, %14 : vector<16x128xf32>
    %48 = arith.mulf %28, %38 : vector<16x128xf32>
    %49 = arith.addf %47, %48 : vector<16x128xf32>
    %50 = math.tanh %49 : vector<16x128xf32>
    %51 = arith.mulf %46, %50 : vector<16x128xf32>
    %52 = arith.truncf %51 : vector<16x128xf32> to vector<16x128xbf16>
    %cst_24 = arith.constant dense<0.000000e+00> : vector<16x512xf32>
    %53 = tpu.matmul %52, %8, %cst_24 {dimension_numbers = #tpu.dot_dimension_numbers<[1], [0], [0], [1], [0, 0, 1, 1], [], []>} : vector<16x128xbf16>, vector<128x512xbf16>, vector<16x512xf32> -> vector<16x512xf32>
    %cst_25 = arith.constant dense<0.000000e+00> : vector<16x512xf32>
    %54 = tpu.matmul %13, %9, %cst_25 {dimension_numbers = #tpu.dot_dimension_numbers<[1], [0], [0], [1], [0, 0, 1, 1], [], []>} : vector<16x128xbf16>, vector<128x512xbf16>, vector<16x512xf32> -> vector<16x512xf32>
    %55 = arith.addf %53, %54 : vector<16x512xf32>
    %56 = arith.addf %55, %12 : vector<16x512xf32>
    %57 = vector.extract_strided_slice %56 {offsets = [0, 0], sizes = [16, 128], strides = [1, 1]} : vector<16x512xf32> to vector<16x128xf32>
    %cst_26 = arith.constant 5.000000e-01 : f32
    %58 = vector.broadcast %cst_26 : f32 to vector<16x128xf32>
    %59 = arith.mulf %58, %57 : vector<16x128xf32>
    %60 = math.tanh %59 : vector<16x128xf32>
    %cst_27 = arith.constant 5.000000e-01 : f32
    %61 = vector.broadcast %cst_27 : f32 to vector<16x128xf32>
    %62 = arith.mulf %61, %60 : vector<16x128xf32>
    %cst_28 = arith.constant 5.000000e-01 : f32
    %63 = vector.broadcast %cst_28 : f32 to vector<16x128xf32>
    %64 = arith.addf %62, %63 : vector<16x128xf32>
    %65 = vector.extract_strided_slice %56 {offsets = [0, 128], sizes = [16, 128], strides = [1, 1]} : vector<16x512xf32> to vector<16x128xf32>
    %cst_29 = arith.constant 5.000000e-01 : f32
    %66 = vector.broadcast %cst_29 : f32 to vector<16x128xf32>
    %67 = arith.mulf %66, %65 : vector<16x128xf32>
    %68 = math.tanh %67 : vector<16x128xf32>
    %cst_30 = arith.constant 5.000000e-01 : f32
    %69 = vector.broadcast %cst_30 : f32 to vector<16x128xf32>
    %70 = arith.mulf %69, %68 : vector<16x128xf32>
    %cst_31 = arith.constant 5.000000e-01 : f32
    %71 = vector.broadcast %cst_31 : f32 to vector<16x128xf32>
    %72 = arith.addf %70, %71 : vector<16x128xf32>
    %73 = vector.extract_strided_slice %56 {offsets = [0, 256], sizes = [16, 128], strides = [1, 1]} : vector<16x512xf32> to vector<16x128xf32>
    %74 = math.tanh %73 : vector<16x128xf32>
    %75 = vector.extract_strided_slice %56 {offsets = [0, 384], sizes = [16, 128], strides = [1, 1]} : vector<16x512xf32> to vector<16x128xf32>
    %cst_32 = arith.constant 5.000000e-01 : f32
    %76 = vector.broadcast %cst_32 : f32 to vector<16x128xf32>
    %77 = arith.mulf %76, %75 : vector<16x128xf32>
    %78 = math.tanh %77 : vector<16x128xf32>
    %cst_33 = arith.constant 5.000000e-01 : f32
    %79 = vector.broadcast %cst_33 : f32 to vector<16x128xf32>
    %80 = arith.mulf %79, %78 : vector<16x128xf32>
    %cst_34 = arith.constant 5.000000e-01 : f32
    %81 = vector.broadcast %cst_34 : f32 to vector<16x128xf32>
    %82 = arith.addf %80, %81 : vector<16x128xf32>
    %83 = arith.mulf %72, %14 : vector<16x128xf32>
    %84 = arith.mulf %64, %74 : vector<16x128xf32>
    %85 = arith.addf %83, %84 : vector<16x128xf32>
    %86 = math.tanh %85 : vector<16x128xf32>
    %87 = arith.mulf %82, %86 : vector<16x128xf32>
    %88 = arith.truncf %87 : vector<16x128xf32> to vector<16x128xbf16>
    %c1_i32 = arith.constant 1 : i32
    %c16_i32_35 = arith.constant 16 : i32
    %89 = arith.muli %c1_i32, %c16_i32_35 : i32
    %90 = tpu.assume_multiple %89, 16 : i32
    %91 = arith.index_cast %90 : i32 to index
    %c0_36 = arith.constant 0 : index
    %92 = vector.load %arg5[%91, %c0_36] : memref<128x512xf32, #tpu.memory_space<vmem>>, vector<16x512xf32>
    %cst_37 = arith.constant dense<0.000000e+00> : vector<16x512xf32>
    %93 = tpu.matmul %52, %7, %cst_37 {dimension_numbers = #tpu.dot_dimension_numbers<[1], [0], [0], [1], [0, 0, 1, 1], [], []>} : vector<16x128xbf16>, vector<128x512xbf16>, vector<16x512xf32> -> vector<16x512xf32>
    %94 = arith.addf %92, %93 : vector<16x512xf32>
    %95 = vector.extract_strided_slice %94 {offsets = [0, 0], sizes = [16, 128], strides = [1, 1]} : vector<16x512xf32> to vector<16x128xf32>
    %cst_38 = arith.constant 5.000000e-01 : f32
    %96 = vector.broadcast %cst_38 : f32 to vector<16x128xf32>
    %97 = arith.mulf %96, %95 : vector<16x128xf32>
    %98 = math.tanh %97 : vector<16x128xf32>
    %cst_39 = arith.constant 5.000000e-01 : f32
    %99 = vector.broadcast %cst_39 : f32 to vector<16x128xf32>
    %100 = arith.mulf %99, %98 : vector<16x128xf32>
    %cst_40 = arith.constant 5.000000e-01 : f32
    %101 = vector.broadcast %cst_40 : f32 to vector<16x128xf32>
    %102 = arith.addf %100, %101 : vector<16x128xf32>
    %103 = vector.extract_strided_slice %94 {offsets = [0, 128], sizes = [16, 128], strides = [1, 1]} : vector<16x512xf32> to vector<16x128xf32>
    %cst_41 = arith.constant 5.000000e-01 : f32
    %104 = vector.broadcast %cst_41 : f32 to vector<16x128xf32>
    %105 = arith.mulf %104, %103 : vector<16x128xf32>
    %106 = math.tanh %105 : vector<16x128xf32>
    %cst_42 = arith.constant 5.000000e-01 : f32
    %107 = vector.broadcast %cst_42 : f32 to vector<16x128xf32>
    %108 = arith.mulf %107, %106 : vector<16x128xf32>
    %cst_43 = arith.constant 5.000000e-01 : f32
    %109 = vector.broadcast %cst_43 : f32 to vector<16x128xf32>
    %110 = arith.addf %108, %109 : vector<16x128xf32>
    %111 = vector.extract_strided_slice %94 {offsets = [0, 256], sizes = [16, 128], strides = [1, 1]} : vector<16x512xf32> to vector<16x128xf32>
    %112 = math.tanh %111 : vector<16x128xf32>
    %113 = vector.extract_strided_slice %94 {offsets = [0, 384], sizes = [16, 128], strides = [1, 1]} : vector<16x512xf32> to vector<16x128xf32>
    %cst_44 = arith.constant 5.000000e-01 : f32
    %114 = vector.broadcast %cst_44 : f32 to vector<16x128xf32>
    %115 = arith.mulf %114, %113 : vector<16x128xf32>
    %116 = math.tanh %115 : vector<16x128xf32>
    %cst_45 = arith.constant 5.000000e-01 : f32
    %117 = vector.broadcast %cst_45 : f32 to vector<16x128xf32>
    %118 = arith.mulf %117, %116 : vector<16x128xf32>
    %cst_46 = arith.constant 5.000000e-01 : f32
    %119 = vector.broadcast %cst_46 : f32 to vector<16x128xf32>
    %120 = arith.addf %118, %119 : vector<16x128xf32>
    %121 = arith.mulf %110, %49 : vector<16x128xf32>
    %122 = arith.mulf %102, %112 : vector<16x128xf32>
    %123 = arith.addf %121, %122 : vector<16x128xf32>
    %124 = math.tanh %123 : vector<16x128xf32>
    %125 = arith.mulf %120, %124 : vector<16x128xf32>
    %126 = arith.truncf %125 : vector<16x128xf32> to vector<16x128xbf16>
    %cst_47 = arith.constant dense<0.000000e+00> : vector<16x512xf32>
    %127 = tpu.matmul %126, %8, %cst_47 {dimension_numbers = #tpu.dot_dimension_numbers<[1], [0], [0], [1], [0, 0, 1, 1], [], []>} : vector<16x128xbf16>, vector<128x512xbf16>, vector<16x512xf32> -> vector<16x512xf32>
    %cst_48 = arith.constant dense<0.000000e+00> : vector<16x512xf32>
    %128 = tpu.matmul %88, %9, %cst_48 {dimension_numbers = #tpu.dot_dimension_numbers<[1], [0], [0], [1], [0, 0, 1, 1], [], []>} : vector<16x128xbf16>, vector<128x512xbf16>, vector<16x512xf32> -> vector<16x512xf32>
    %129 = arith.addf %127, %128 : vector<16x512xf32>
    %130 = arith.addf %129, %12 : vector<16x512xf32>
    %131 = vector.extract_strided_slice %130 {offsets = [0, 0], sizes = [16, 128], strides = [1, 1]} : vector<16x512xf32> to vector<16x128xf32>
    %cst_49 = arith.constant 5.000000e-01 : f32
    %132 = vector.broadcast %cst_49 : f32 to vector<16x128xf32>
    %133 = arith.mulf %132, %131 : vector<16x128xf32>
    %134 = math.tanh %133 : vector<16x128xf32>
    %cst_50 = arith.constant 5.000000e-01 : f32
    %135 = vector.broadcast %cst_50 : f32 to vector<16x128xf32>
    %136 = arith.mulf %135, %134 : vector<16x128xf32>
    %cst_51 = arith.constant 5.000000e-01 : f32
    %137 = vector.broadcast %cst_51 : f32 to vector<16x128xf32>
    %138 = arith.addf %136, %137 : vector<16x128xf32>
    %139 = vector.extract_strided_slice %130 {offsets = [0, 128], sizes = [16, 128], strides = [1, 1]} : vector<16x512xf32> to vector<16x128xf32>
    %cst_52 = arith.constant 5.000000e-01 : f32
    %140 = vector.broadcast %cst_52 : f32 to vector<16x128xf32>
    %141 = arith.mulf %140, %139 : vector<16x128xf32>
    %142 = math.tanh %141 : vector<16x128xf32>
    %cst_53 = arith.constant 5.000000e-01 : f32
    %143 = vector.broadcast %cst_53 : f32 to vector<16x128xf32>
    %144 = arith.mulf %143, %142 : vector<16x128xf32>
    %cst_54 = arith.constant 5.000000e-01 : f32
    %145 = vector.broadcast %cst_54 : f32 to vector<16x128xf32>
    %146 = arith.addf %144, %145 : vector<16x128xf32>
    %147 = vector.extract_strided_slice %130 {offsets = [0, 256], sizes = [16, 128], strides = [1, 1]} : vector<16x512xf32> to vector<16x128xf32>
    %148 = math.tanh %147 : vector<16x128xf32>
    %149 = vector.extract_strided_slice %130 {offsets = [0, 384], sizes = [16, 128], strides = [1, 1]} : vector<16x512xf32> to vector<16x128xf32>
    %cst_55 = arith.constant 5.000000e-01 : f32
    %150 = vector.broadcast %cst_55 : f32 to vector<16x128xf32>
    %151 = arith.mulf %150, %149 : vector<16x128xf32>
    %152 = math.tanh %151 : vector<16x128xf32>
    %cst_56 = arith.constant 5.000000e-01 : f32
    %153 = vector.broadcast %cst_56 : f32 to vector<16x128xf32>
    %154 = arith.mulf %153, %152 : vector<16x128xf32>
    %cst_57 = arith.constant 5.000000e-01 : f32
    %155 = vector.broadcast %cst_57 : f32 to vector<16x128xf32>
    %156 = arith.addf %154, %155 : vector<16x128xf32>
    %157 = arith.mulf %146, %85 : vector<16x128xf32>
    %158 = arith.mulf %138, %148 : vector<16x128xf32>
    %159 = arith.addf %157, %158 : vector<16x128xf32>
    %160 = math.tanh %159 : vector<16x128xf32>
    %161 = arith.mulf %156, %160 : vector<16x128xf32>
    %162 = arith.truncf %161 : vector<16x128xf32> to vector<16x128xbf16>
    %c2_i32 = arith.constant 2 : i32
    %c16_i32_58 = arith.constant 16 : i32
    %163 = arith.muli %c2_i32, %c16_i32_58 : i32
    %164 = tpu.assume_multiple %163, 16 : i32
    %165 = arith.index_cast %164 : i32 to index
    %c0_59 = arith.constant 0 : index
    %166 = vector.load %arg5[%165, %c0_59] : memref<128x512xf32, #tpu.memory_space<vmem>>, vector<16x512xf32>
    %cst_60 = arith.constant dense<0.000000e+00> : vector<16x512xf32>
    %167 = tpu.matmul %126, %7, %cst_60 {dimension_numbers = #tpu.dot_dimension_numbers<[1], [0], [0], [1], [0, 0, 1, 1], [], []>} : vector<16x128xbf16>, vector<128x512xbf16>, vector<16x512xf32> -> vector<16x512xf32>
    %168 = arith.addf %166, %167 : vector<16x512xf32>
    %169 = vector.extract_strided_slice %168 {offsets = [0, 0], sizes = [16, 128], strides = [1, 1]} : vector<16x512xf32> to vector<16x128xf32>
    %cst_61 = arith.constant 5.000000e-01 : f32
    %170 = vector.broadcast %cst_61 : f32 to vector<16x128xf32>
    %171 = arith.mulf %170, %169 : vector<16x128xf32>
    %172 = math.tanh %171 : vector<16x128xf32>
    %cst_62 = arith.constant 5.000000e-01 : f32
    %173 = vector.broadcast %cst_62 : f32 to vector<16x128xf32>
    %174 = arith.mulf %173, %172 : vector<16x128xf32>
    %cst_63 = arith.constant 5.000000e-01 : f32
    %175 = vector.broadcast %cst_63 : f32 to vector<16x128xf32>
    %176 = arith.addf %174, %175 : vector<16x128xf32>
    %177 = vector.extract_strided_slice %168 {offsets = [0, 128], sizes = [16, 128], strides = [1, 1]} : vector<16x512xf32> to vector<16x128xf32>
    %cst_64 = arith.constant 5.000000e-01 : f32
    %178 = vector.broadcast %cst_64 : f32 to vector<16x128xf32>
    %179 = arith.mulf %178, %177 : vector<16x128xf32>
    %180 = math.tanh %179 : vector<16x128xf32>
    %cst_65 = arith.constant 5.000000e-01 : f32
    %181 = vector.broadcast %cst_65 : f32 to vector<16x128xf32>
    %182 = arith.mulf %181, %180 : vector<16x128xf32>
    %cst_66 = arith.constant 5.000000e-01 : f32
    %183 = vector.broadcast %cst_66 : f32 to vector<16x128xf32>
    %184 = arith.addf %182, %183 : vector<16x128xf32>
    %185 = vector.extract_strided_slice %168 {offsets = [0, 256], sizes = [16, 128], strides = [1, 1]} : vector<16x512xf32> to vector<16x128xf32>
    %186 = math.tanh %185 : vector<16x128xf32>
    %187 = vector.extract_strided_slice %168 {offsets = [0, 384], sizes = [16, 128], strides = [1, 1]} : vector<16x512xf32> to vector<16x128xf32>
    %cst_67 = arith.constant 5.000000e-01 : f32
    %188 = vector.broadcast %cst_67 : f32 to vector<16x128xf32>
    %189 = arith.mulf %188, %187 : vector<16x128xf32>
    %190 = math.tanh %189 : vector<16x128xf32>
    %cst_68 = arith.constant 5.000000e-01 : f32
    %191 = vector.broadcast %cst_68 : f32 to vector<16x128xf32>
    %192 = arith.mulf %191, %190 : vector<16x128xf32>
    %cst_69 = arith.constant 5.000000e-01 : f32
    %193 = vector.broadcast %cst_69 : f32 to vector<16x128xf32>
    %194 = arith.addf %192, %193 : vector<16x128xf32>
    %195 = arith.mulf %184, %123 : vector<16x128xf32>
    %196 = arith.mulf %176, %186 : vector<16x128xf32>
    %197 = arith.addf %195, %196 : vector<16x128xf32>
    %198 = math.tanh %197 : vector<16x128xf32>
    %199 = arith.mulf %194, %198 : vector<16x128xf32>
    %200 = arith.truncf %199 : vector<16x128xf32> to vector<16x128xbf16>
    %cst_70 = arith.constant dense<0.000000e+00> : vector<16x512xf32>
    %201 = tpu.matmul %200, %8, %cst_70 {dimension_numbers = #tpu.dot_dimension_numbers<[1], [0], [0], [1], [0, 0, 1, 1], [], []>} : vector<16x128xbf16>, vector<128x512xbf16>, vector<16x512xf32> -> vector<16x512xf32>
    %cst_71 = arith.constant dense<0.000000e+00> : vector<16x512xf32>
    %202 = tpu.matmul %162, %9, %cst_71 {dimension_numbers = #tpu.dot_dimension_numbers<[1], [0], [0], [1], [0, 0, 1, 1], [], []>} : vector<16x128xbf16>, vector<128x512xbf16>, vector<16x512xf32> -> vector<16x512xf32>
    %203 = arith.addf %201, %202 : vector<16x512xf32>
    %204 = arith.addf %203, %12 : vector<16x512xf32>
    %205 = vector.extract_strided_slice %204 {offsets = [0, 0], sizes = [16, 128], strides = [1, 1]} : vector<16x512xf32> to vector<16x128xf32>
    %cst_72 = arith.constant 5.000000e-01 : f32
    %206 = vector.broadcast %cst_72 : f32 to vector<16x128xf32>
    %207 = arith.mulf %206, %205 : vector<16x128xf32>
    %208 = math.tanh %207 : vector<16x128xf32>
    %cst_73 = arith.constant 5.000000e-01 : f32
    %209 = vector.broadcast %cst_73 : f32 to vector<16x128xf32>
    %210 = arith.mulf %209, %208 : vector<16x128xf32>
    %cst_74 = arith.constant 5.000000e-01 : f32
    %211 = vector.broadcast %cst_74 : f32 to vector<16x128xf32>
    %212 = arith.addf %210, %211 : vector<16x128xf32>
    %213 = vector.extract_strided_slice %204 {offsets = [0, 128], sizes = [16, 128], strides = [1, 1]} : vector<16x512xf32> to vector<16x128xf32>
    %cst_75 = arith.constant 5.000000e-01 : f32
    %214 = vector.broadcast %cst_75 : f32 to vector<16x128xf32>
    %215 = arith.mulf %214, %213 : vector<16x128xf32>
    %216 = math.tanh %215 : vector<16x128xf32>
    %cst_76 = arith.constant 5.000000e-01 : f32
    %217 = vector.broadcast %cst_76 : f32 to vector<16x128xf32>
    %218 = arith.mulf %217, %216 : vector<16x128xf32>
    %cst_77 = arith.constant 5.000000e-01 : f32
    %219 = vector.broadcast %cst_77 : f32 to vector<16x128xf32>
    %220 = arith.addf %218, %219 : vector<16x128xf32>
    %221 = vector.extract_strided_slice %204 {offsets = [0, 256], sizes = [16, 128], strides = [1, 1]} : vector<16x512xf32> to vector<16x128xf32>
    %222 = math.tanh %221 : vector<16x128xf32>
    %223 = vector.extract_strided_slice %204 {offsets = [0, 384], sizes = [16, 128], strides = [1, 1]} : vector<16x512xf32> to vector<16x128xf32>
    %cst_78 = arith.constant 5.000000e-01 : f32
    %224 = vector.broadcast %cst_78 : f32 to vector<16x128xf32>
    %225 = arith.mulf %224, %223 : vector<16x128xf32>
    %226 = math.tanh %225 : vector<16x128xf32>
    %cst_79 = arith.constant 5.000000e-01 : f32
    %227 = vector.broadcast %cst_79 : f32 to vector<16x128xf32>
    %228 = arith.mulf %227, %226 : vector<16x128xf32>
    %cst_80 = arith.constant 5.000000e-01 : f32
    %229 = vector.broadcast %cst_80 : f32 to vector<16x128xf32>
    %230 = arith.addf %228, %229 : vector<16x128xf32>
    %231 = arith.mulf %220, %159 : vector<16x128xf32>
    %232 = arith.mulf %212, %222 : vector<16x128xf32>
    %233 = arith.addf %231, %232 : vector<16x128xf32>
    %234 = math.tanh %233 : vector<16x128xf32>
    %235 = arith.mulf %230, %234 : vector<16x128xf32>
    %236 = arith.truncf %235 : vector<16x128xf32> to vector<16x128xbf16>
    %c3_i32 = arith.constant 3 : i32
    %c16_i32_81 = arith.constant 16 : i32
    %237 = arith.muli %c3_i32, %c16_i32_81 : i32
    %238 = tpu.assume_multiple %237, 16 : i32
    %239 = arith.index_cast %238 : i32 to index
    %c0_82 = arith.constant 0 : index
    %240 = vector.load %arg5[%239, %c0_82] : memref<128x512xf32, #tpu.memory_space<vmem>>, vector<16x512xf32>
    %cst_83 = arith.constant dense<0.000000e+00> : vector<16x512xf32>
    %241 = tpu.matmul %200, %7, %cst_83 {dimension_numbers = #tpu.dot_dimension_numbers<[1], [0], [0], [1], [0, 0, 1, 1], [], []>} : vector<16x128xbf16>, vector<128x512xbf16>, vector<16x512xf32> -> vector<16x512xf32>
    %242 = arith.addf %240, %241 : vector<16x512xf32>
    %243 = vector.extract_strided_slice %242 {offsets = [0, 0], sizes = [16, 128], strides = [1, 1]} : vector<16x512xf32> to vector<16x128xf32>
    %cst_84 = arith.constant 5.000000e-01 : f32
    %244 = vector.broadcast %cst_84 : f32 to vector<16x128xf32>
    %245 = arith.mulf %244, %243 : vector<16x128xf32>
    %246 = math.tanh %245 : vector<16x128xf32>
    %cst_85 = arith.constant 5.000000e-01 : f32
    %247 = vector.broadcast %cst_85 : f32 to vector<16x128xf32>
    %248 = arith.mulf %247, %246 : vector<16x128xf32>
    %cst_86 = arith.constant 5.000000e-01 : f32
    %249 = vector.broadcast %cst_86 : f32 to vector<16x128xf32>
    %250 = arith.addf %248, %249 : vector<16x128xf32>
    %251 = vector.extract_strided_slice %242 {offsets = [0, 128], sizes = [16, 128], strides = [1, 1]} : vector<16x512xf32> to vector<16x128xf32>
    %cst_87 = arith.constant 5.000000e-01 : f32
    %252 = vector.broadcast %cst_87 : f32 to vector<16x128xf32>
    %253 = arith.mulf %252, %251 : vector<16x128xf32>
    %254 = math.tanh %253 : vector<16x128xf32>
    %cst_88 = arith.constant 5.000000e-01 : f32
    %255 = vector.broadcast %cst_88 : f32 to vector<16x128xf32>
    %256 = arith.mulf %255, %254 : vector<16x128xf32>
    %cst_89 = arith.constant 5.000000e-01 : f32
    %257 = vector.broadcast %cst_89 : f32 to vector<16x128xf32>
    %258 = arith.addf %256, %257 : vector<16x128xf32>
    %259 = vector.extract_strided_slice %242 {offsets = [0, 256], sizes = [16, 128], strides = [1, 1]} : vector<16x512xf32> to vector<16x128xf32>
    %260 = math.tanh %259 : vector<16x128xf32>
    %261 = vector.extract_strided_slice %242 {offsets = [0, 384], sizes = [16, 128], strides = [1, 1]} : vector<16x512xf32> to vector<16x128xf32>
    %cst_90 = arith.constant 5.000000e-01 : f32
    %262 = vector.broadcast %cst_90 : f32 to vector<16x128xf32>
    %263 = arith.mulf %262, %261 : vector<16x128xf32>
    %264 = math.tanh %263 : vector<16x128xf32>
    %cst_91 = arith.constant 5.000000e-01 : f32
    %265 = vector.broadcast %cst_91 : f32 to vector<16x128xf32>
    %266 = arith.mulf %265, %264 : vector<16x128xf32>
    %cst_92 = arith.constant 5.000000e-01 : f32
    %267 = vector.broadcast %cst_92 : f32 to vector<16x128xf32>
    %268 = arith.addf %266, %267 : vector<16x128xf32>
    %269 = arith.mulf %258, %197 : vector<16x128xf32>
    %270 = arith.mulf %250, %260 : vector<16x128xf32>
    %271 = arith.addf %269, %270 : vector<16x128xf32>
    %272 = math.tanh %271 : vector<16x128xf32>
    %273 = arith.mulf %268, %272 : vector<16x128xf32>
    %274 = arith.truncf %273 : vector<16x128xf32> to vector<16x128xbf16>
    %cst_93 = arith.constant dense<0.000000e+00> : vector<16x512xf32>
    %275 = tpu.matmul %274, %8, %cst_93 {dimension_numbers = #tpu.dot_dimension_numbers<[1], [0], [0], [1], [0, 0, 1, 1], [], []>} : vector<16x128xbf16>, vector<128x512xbf16>, vector<16x512xf32> -> vector<16x512xf32>
    %cst_94 = arith.constant dense<0.000000e+00> : vector<16x512xf32>
    %276 = tpu.matmul %236, %9, %cst_94 {dimension_numbers = #tpu.dot_dimension_numbers<[1], [0], [0], [1], [0, 0, 1, 1], [], []>} : vector<16x128xbf16>, vector<128x512xbf16>, vector<16x512xf32> -> vector<16x512xf32>
    %277 = arith.addf %275, %276 : vector<16x512xf32>
    %278 = arith.addf %277, %12 : vector<16x512xf32>
    %279 = vector.extract_strided_slice %278 {offsets = [0, 0], sizes = [16, 128], strides = [1, 1]} : vector<16x512xf32> to vector<16x128xf32>
    %cst_95 = arith.constant 5.000000e-01 : f32
    %280 = vector.broadcast %cst_95 : f32 to vector<16x128xf32>
    %281 = arith.mulf %280, %279 : vector<16x128xf32>
    %282 = math.tanh %281 : vector<16x128xf32>
    %cst_96 = arith.constant 5.000000e-01 : f32
    %283 = vector.broadcast %cst_96 : f32 to vector<16x128xf32>
    %284 = arith.mulf %283, %282 : vector<16x128xf32>
    %cst_97 = arith.constant 5.000000e-01 : f32
    %285 = vector.broadcast %cst_97 : f32 to vector<16x128xf32>
    %286 = arith.addf %284, %285 : vector<16x128xf32>
    %287 = vector.extract_strided_slice %278 {offsets = [0, 128], sizes = [16, 128], strides = [1, 1]} : vector<16x512xf32> to vector<16x128xf32>
    %cst_98 = arith.constant 5.000000e-01 : f32
    %288 = vector.broadcast %cst_98 : f32 to vector<16x128xf32>
    %289 = arith.mulf %288, %287 : vector<16x128xf32>
    %290 = math.tanh %289 : vector<16x128xf32>
    %cst_99 = arith.constant 5.000000e-01 : f32
    %291 = vector.broadcast %cst_99 : f32 to vector<16x128xf32>
    %292 = arith.mulf %291, %290 : vector<16x128xf32>
    %cst_100 = arith.constant 5.000000e-01 : f32
    %293 = vector.broadcast %cst_100 : f32 to vector<16x128xf32>
    %294 = arith.addf %292, %293 : vector<16x128xf32>
    %295 = vector.extract_strided_slice %278 {offsets = [0, 256], sizes = [16, 128], strides = [1, 1]} : vector<16x512xf32> to vector<16x128xf32>
    %296 = math.tanh %295 : vector<16x128xf32>
    %297 = vector.extract_strided_slice %278 {offsets = [0, 384], sizes = [16, 128], strides = [1, 1]} : vector<16x512xf32> to vector<16x128xf32>
    %cst_101 = arith.constant 5.000000e-01 : f32
    %298 = vector.broadcast %cst_101 : f32 to vector<16x128xf32>
    %299 = arith.mulf %298, %297 : vector<16x128xf32>
    %300 = math.tanh %299 : vector<16x128xf32>
    %cst_102 = arith.constant 5.000000e-01 : f32
    %301 = vector.broadcast %cst_102 : f32 to vector<16x128xf32>
    %302 = arith.mulf %301, %300 : vector<16x128xf32>
    %cst_103 = arith.constant 5.000000e-01 : f32
    %303 = vector.broadcast %cst_103 : f32 to vector<16x128xf32>
    %304 = arith.addf %302, %303 : vector<16x128xf32>
    %305 = arith.mulf %294, %233 : vector<16x128xf32>
    %306 = arith.mulf %286, %296 : vector<16x128xf32>
    %307 = arith.addf %305, %306 : vector<16x128xf32>
    %308 = math.tanh %307 : vector<16x128xf32>
    %309 = arith.mulf %304, %308 : vector<16x128xf32>
    %310 = arith.truncf %309 : vector<16x128xf32> to vector<16x128xbf16>
    %c4_i32 = arith.constant 4 : i32
    %c16_i32_104 = arith.constant 16 : i32
    %311 = arith.muli %c4_i32, %c16_i32_104 : i32
    %312 = tpu.assume_multiple %311, 16 : i32
    %313 = arith.index_cast %312 : i32 to index
    %c0_105 = arith.constant 0 : index
    %314 = vector.load %arg5[%313, %c0_105] : memref<128x512xf32, #tpu.memory_space<vmem>>, vector<16x512xf32>
    %cst_106 = arith.constant dense<0.000000e+00> : vector<16x512xf32>
    %315 = tpu.matmul %274, %7, %cst_106 {dimension_numbers = #tpu.dot_dimension_numbers<[1], [0], [0], [1], [0, 0, 1, 1], [], []>} : vector<16x128xbf16>, vector<128x512xbf16>, vector<16x512xf32> -> vector<16x512xf32>
    %316 = arith.addf %314, %315 : vector<16x512xf32>
    %317 = vector.extract_strided_slice %316 {offsets = [0, 0], sizes = [16, 128], strides = [1, 1]} : vector<16x512xf32> to vector<16x128xf32>
    %cst_107 = arith.constant 5.000000e-01 : f32
    %318 = vector.broadcast %cst_107 : f32 to vector<16x128xf32>
    %319 = arith.mulf %318, %317 : vector<16x128xf32>
    %320 = math.tanh %319 : vector<16x128xf32>
    %cst_108 = arith.constant 5.000000e-01 : f32
    %321 = vector.broadcast %cst_108 : f32 to vector<16x128xf32>
    %322 = arith.mulf %321, %320 : vector<16x128xf32>
    %cst_109 = arith.constant 5.000000e-01 : f32
    %323 = vector.broadcast %cst_109 : f32 to vector<16x128xf32>
    %324 = arith.addf %322, %323 : vector<16x128xf32>
    %325 = vector.extract_strided_slice %316 {offsets = [0, 128], sizes = [16, 128], strides = [1, 1]} : vector<16x512xf32> to vector<16x128xf32>
    %cst_110 = arith.constant 5.000000e-01 : f32
    %326 = vector.broadcast %cst_110 : f32 to vector<16x128xf32>
    %327 = arith.mulf %326, %325 : vector<16x128xf32>
    %328 = math.tanh %327 : vector<16x128xf32>
    %cst_111 = arith.constant 5.000000e-01 : f32
    %329 = vector.broadcast %cst_111 : f32 to vector<16x128xf32>
    %330 = arith.mulf %329, %328 : vector<16x128xf32>
    %cst_112 = arith.constant 5.000000e-01 : f32
    %331 = vector.broadcast %cst_112 : f32 to vector<16x128xf32>
    %332 = arith.addf %330, %331 : vector<16x128xf32>
    %333 = vector.extract_strided_slice %316 {offsets = [0, 256], sizes = [16, 128], strides = [1, 1]} : vector<16x512xf32> to vector<16x128xf32>
    %334 = math.tanh %333 : vector<16x128xf32>
    %335 = vector.extract_strided_slice %316 {offsets = [0, 384], sizes = [16, 128], strides = [1, 1]} : vector<16x512xf32> to vector<16x128xf32>
    %cst_113 = arith.constant 5.000000e-01 : f32
    %336 = vector.broadcast %cst_113 : f32 to vector<16x128xf32>
    %337 = arith.mulf %336, %335 : vector<16x128xf32>
    %338 = math.tanh %337 : vector<16x128xf32>
    %cst_114 = arith.constant 5.000000e-01 : f32
    %339 = vector.broadcast %cst_114 : f32 to vector<16x128xf32>
    %340 = arith.mulf %339, %338 : vector<16x128xf32>
    %cst_115 = arith.constant 5.000000e-01 : f32
    %341 = vector.broadcast %cst_115 : f32 to vector<16x128xf32>
    %342 = arith.addf %340, %341 : vector<16x128xf32>
    %343 = arith.mulf %332, %271 : vector<16x128xf32>
    %344 = arith.mulf %324, %334 : vector<16x128xf32>
    %345 = arith.addf %343, %344 : vector<16x128xf32>
    %346 = math.tanh %345 : vector<16x128xf32>
    %347 = arith.mulf %342, %346 : vector<16x128xf32>
    %348 = arith.truncf %347 : vector<16x128xf32> to vector<16x128xbf16>
    %cst_116 = arith.constant dense<0.000000e+00> : vector<16x512xf32>
    %349 = tpu.matmul %348, %8, %cst_116 {dimension_numbers = #tpu.dot_dimension_numbers<[1], [0], [0], [1], [0, 0, 1, 1], [], []>} : vector<16x128xbf16>, vector<128x512xbf16>, vector<16x512xf32> -> vector<16x512xf32>
    %cst_117 = arith.constant dense<0.000000e+00> : vector<16x512xf32>
    %350 = tpu.matmul %310, %9, %cst_117 {dimension_numbers = #tpu.dot_dimension_numbers<[1], [0], [0], [1], [0, 0, 1, 1], [], []>} : vector<16x128xbf16>, vector<128x512xbf16>, vector<16x512xf32> -> vector<16x512xf32>
    %351 = arith.addf %349, %350 : vector<16x512xf32>
    %352 = arith.addf %351, %12 : vector<16x512xf32>
    %353 = vector.extract_strided_slice %352 {offsets = [0, 0], sizes = [16, 128], strides = [1, 1]} : vector<16x512xf32> to vector<16x128xf32>
    %cst_118 = arith.constant 5.000000e-01 : f32
    %354 = vector.broadcast %cst_118 : f32 to vector<16x128xf32>
    %355 = arith.mulf %354, %353 : vector<16x128xf32>
    %356 = math.tanh %355 : vector<16x128xf32>
    %cst_119 = arith.constant 5.000000e-01 : f32
    %357 = vector.broadcast %cst_119 : f32 to vector<16x128xf32>
    %358 = arith.mulf %357, %356 : vector<16x128xf32>
    %cst_120 = arith.constant 5.000000e-01 : f32
    %359 = vector.broadcast %cst_120 : f32 to vector<16x128xf32>
    %360 = arith.addf %358, %359 : vector<16x128xf32>
    %361 = vector.extract_strided_slice %352 {offsets = [0, 128], sizes = [16, 128], strides = [1, 1]} : vector<16x512xf32> to vector<16x128xf32>
    %cst_121 = arith.constant 5.000000e-01 : f32
    %362 = vector.broadcast %cst_121 : f32 to vector<16x128xf32>
    %363 = arith.mulf %362, %361 : vector<16x128xf32>
    %364 = math.tanh %363 : vector<16x128xf32>
    %cst_122 = arith.constant 5.000000e-01 : f32
    %365 = vector.broadcast %cst_122 : f32 to vector<16x128xf32>
    %366 = arith.mulf %365, %364 : vector<16x128xf32>
    %cst_123 = arith.constant 5.000000e-01 : f32
    %367 = vector.broadcast %cst_123 : f32 to vector<16x128xf32>
    %368 = arith.addf %366, %367 : vector<16x128xf32>
    %369 = vector.extract_strided_slice %352 {offsets = [0, 256], sizes = [16, 128], strides = [1, 1]} : vector<16x512xf32> to vector<16x128xf32>
    %370 = math.tanh %369 : vector<16x128xf32>
    %371 = vector.extract_strided_slice %352 {offsets = [0, 384], sizes = [16, 128], strides = [1, 1]} : vector<16x512xf32> to vector<16x128xf32>
    %cst_124 = arith.constant 5.000000e-01 : f32
    %372 = vector.broadcast %cst_124 : f32 to vector<16x128xf32>
    %373 = arith.mulf %372, %371 : vector<16x128xf32>
    %374 = math.tanh %373 : vector<16x128xf32>
    %cst_125 = arith.constant 5.000000e-01 : f32
    %375 = vector.broadcast %cst_125 : f32 to vector<16x128xf32>
    %376 = arith.mulf %375, %374 : vector<16x128xf32>
    %cst_126 = arith.constant 5.000000e-01 : f32
    %377 = vector.broadcast %cst_126 : f32 to vector<16x128xf32>
    %378 = arith.addf %376, %377 : vector<16x128xf32>
    %379 = arith.mulf %368, %307 : vector<16x128xf32>
    %380 = arith.mulf %360, %370 : vector<16x128xf32>
    %381 = arith.addf %379, %380 : vector<16x128xf32>
    %382 = math.tanh %381 : vector<16x128xf32>
    %383 = arith.mulf %378, %382 : vector<16x128xf32>
    %384 = arith.truncf %383 : vector<16x128xf32> to vector<16x128xbf16>
    %c5_i32 = arith.constant 5 : i32
    %c16_i32_127 = arith.constant 16 : i32
    %385 = arith.muli %c5_i32, %c16_i32_127 : i32
    %386 = tpu.assume_multiple %385, 16 : i32
    %387 = arith.index_cast %386 : i32 to index
    %c0_128 = arith.constant 0 : index
    %388 = vector.load %arg5[%387, %c0_128] : memref<128x512xf32, #tpu.memory_space<vmem>>, vector<16x512xf32>
    %cst_129 = arith.constant dense<0.000000e+00> : vector<16x512xf32>
    %389 = tpu.matmul %348, %7, %cst_129 {dimension_numbers = #tpu.dot_dimension_numbers<[1], [0], [0], [1], [0, 0, 1, 1], [], []>} : vector<16x128xbf16>, vector<128x512xbf16>, vector<16x512xf32> -> vector<16x512xf32>
    %390 = arith.addf %388, %389 : vector<16x512xf32>
    %391 = vector.extract_strided_slice %390 {offsets = [0, 0], sizes = [16, 128], strides = [1, 1]} : vector<16x512xf32> to vector<16x128xf32>
    %cst_130 = arith.constant 5.000000e-01 : f32
    %392 = vector.broadcast %cst_130 : f32 to vector<16x128xf32>
    %393 = arith.mulf %392, %391 : vector<16x128xf32>
    %394 = math.tanh %393 : vector<16x128xf32>
    %cst_131 = arith.constant 5.000000e-01 : f32
    %395 = vector.broadcast %cst_131 : f32 to vector<16x128xf32>
    %396 = arith.mulf %395, %394 : vector<16x128xf32>
    %cst_132 = arith.constant 5.000000e-01 : f32
    %397 = vector.broadcast %cst_132 : f32 to vector<16x128xf32>
    %398 = arith.addf %396, %397 : vector<16x128xf32>
    %399 = vector.extract_strided_slice %390 {offsets = [0, 128], sizes = [16, 128], strides = [1, 1]} : vector<16x512xf32> to vector<16x128xf32>
    %cst_133 = arith.constant 5.000000e-01 : f32
    %400 = vector.broadcast %cst_133 : f32 to vector<16x128xf32>
    %401 = arith.mulf %400, %399 : vector<16x128xf32>
    %402 = math.tanh %401 : vector<16x128xf32>
    %cst_134 = arith.constant 5.000000e-01 : f32
    %403 = vector.broadcast %cst_134 : f32 to vector<16x128xf32>
    %404 = arith.mulf %403, %402 : vector<16x128xf32>
    %cst_135 = arith.constant 5.000000e-01 : f32
    %405 = vector.broadcast %cst_135 : f32 to vector<16x128xf32>
    %406 = arith.addf %404, %405 : vector<16x128xf32>
    %407 = vector.extract_strided_slice %390 {offsets = [0, 256], sizes = [16, 128], strides = [1, 1]} : vector<16x512xf32> to vector<16x128xf32>
    %408 = math.tanh %407 : vector<16x128xf32>
    %409 = vector.extract_strided_slice %390 {offsets = [0, 384], sizes = [16, 128], strides = [1, 1]} : vector<16x512xf32> to vector<16x128xf32>
    %cst_136 = arith.constant 5.000000e-01 : f32
    %410 = vector.broadcast %cst_136 : f32 to vector<16x128xf32>
    %411 = arith.mulf %410, %409 : vector<16x128xf32>
    %412 = math.tanh %411 : vector<16x128xf32>
    %cst_137 = arith.constant 5.000000e-01 : f32
    %413 = vector.broadcast %cst_137 : f32 to vector<16x128xf32>
    %414 = arith.mulf %413, %412 : vector<16x128xf32>
    %cst_138 = arith.constant 5.000000e-01 : f32
    %415 = vector.broadcast %cst_138 : f32 to vector<16x128xf32>
    %416 = arith.addf %414, %415 : vector<16x128xf32>
    %417 = arith.mulf %406, %345 : vector<16x128xf32>
    %418 = arith.mulf %398, %408 : vector<16x128xf32>
    %419 = arith.addf %417, %418 : vector<16x128xf32>
    %420 = math.tanh %419 : vector<16x128xf32>
    %421 = arith.mulf %416, %420 : vector<16x128xf32>
    %422 = arith.truncf %421 : vector<16x128xf32> to vector<16x128xbf16>
    %cst_139 = arith.constant dense<0.000000e+00> : vector<16x512xf32>
    %423 = tpu.matmul %422, %8, %cst_139 {dimension_numbers = #tpu.dot_dimension_numbers<[1], [0], [0], [1], [0, 0, 1, 1], [], []>} : vector<16x128xbf16>, vector<128x512xbf16>, vector<16x512xf32> -> vector<16x512xf32>
    %cst_140 = arith.constant dense<0.000000e+00> : vector<16x512xf32>
    %424 = tpu.matmul %384, %9, %cst_140 {dimension_numbers = #tpu.dot_dimension_numbers<[1], [0], [0], [1], [0, 0, 1, 1], [], []>} : vector<16x128xbf16>, vector<128x512xbf16>, vector<16x512xf32> -> vector<16x512xf32>
    %425 = arith.addf %423, %424 : vector<16x512xf32>
    %426 = arith.addf %425, %12 : vector<16x512xf32>
    %427 = vector.extract_strided_slice %426 {offsets = [0, 0], sizes = [16, 128], strides = [1, 1]} : vector<16x512xf32> to vector<16x128xf32>
    %cst_141 = arith.constant 5.000000e-01 : f32
    %428 = vector.broadcast %cst_141 : f32 to vector<16x128xf32>
    %429 = arith.mulf %428, %427 : vector<16x128xf32>
    %430 = math.tanh %429 : vector<16x128xf32>
    %cst_142 = arith.constant 5.000000e-01 : f32
    %431 = vector.broadcast %cst_142 : f32 to vector<16x128xf32>
    %432 = arith.mulf %431, %430 : vector<16x128xf32>
    %cst_143 = arith.constant 5.000000e-01 : f32
    %433 = vector.broadcast %cst_143 : f32 to vector<16x128xf32>
    %434 = arith.addf %432, %433 : vector<16x128xf32>
    %435 = vector.extract_strided_slice %426 {offsets = [0, 128], sizes = [16, 128], strides = [1, 1]} : vector<16x512xf32> to vector<16x128xf32>
    %cst_144 = arith.constant 5.000000e-01 : f32
    %436 = vector.broadcast %cst_144 : f32 to vector<16x128xf32>
    %437 = arith.mulf %436, %435 : vector<16x128xf32>
    %438 = math.tanh %437 : vector<16x128xf32>
    %cst_145 = arith.constant 5.000000e-01 : f32
    %439 = vector.broadcast %cst_145 : f32 to vector<16x128xf32>
    %440 = arith.mulf %439, %438 : vector<16x128xf32>
    %cst_146 = arith.constant 5.000000e-01 : f32
    %441 = vector.broadcast %cst_146 : f32 to vector<16x128xf32>
    %442 = arith.addf %440, %441 : vector<16x128xf32>
    %443 = vector.extract_strided_slice %426 {offsets = [0, 256], sizes = [16, 128], strides = [1, 1]} : vector<16x512xf32> to vector<16x128xf32>
    %444 = math.tanh %443 : vector<16x128xf32>
    %445 = vector.extract_strided_slice %426 {offsets = [0, 384], sizes = [16, 128], strides = [1, 1]} : vector<16x512xf32> to vector<16x128xf32>
    %cst_147 = arith.constant 5.000000e-01 : f32
    %446 = vector.broadcast %cst_147 : f32 to vector<16x128xf32>
    %447 = arith.mulf %446, %445 : vector<16x128xf32>
    %448 = math.tanh %447 : vector<16x128xf32>
    %cst_148 = arith.constant 5.000000e-01 : f32
    %449 = vector.broadcast %cst_148 : f32 to vector<16x128xf32>
    %450 = arith.mulf %449, %448 : vector<16x128xf32>
    %cst_149 = arith.constant 5.000000e-01 : f32
    %451 = vector.broadcast %cst_149 : f32 to vector<16x128xf32>
    %452 = arith.addf %450, %451 : vector<16x128xf32>
    %453 = arith.mulf %442, %381 : vector<16x128xf32>
    %454 = arith.mulf %434, %444 : vector<16x128xf32>
    %455 = arith.addf %453, %454 : vector<16x128xf32>
    %456 = math.tanh %455 : vector<16x128xf32>
    %457 = arith.mulf %452, %456 : vector<16x128xf32>
    %458 = arith.truncf %457 : vector<16x128xf32> to vector<16x128xbf16>
    %c6_i32 = arith.constant 6 : i32
    %c16_i32_150 = arith.constant 16 : i32
    %459 = arith.muli %c6_i32, %c16_i32_150 : i32
    %460 = tpu.assume_multiple %459, 16 : i32
    %461 = arith.index_cast %460 : i32 to index
    %c0_151 = arith.constant 0 : index
    %462 = vector.load %arg5[%461, %c0_151] : memref<128x512xf32, #tpu.memory_space<vmem>>, vector<16x512xf32>
    %cst_152 = arith.constant dense<0.000000e+00> : vector<16x512xf32>
    %463 = tpu.matmul %422, %7, %cst_152 {dimension_numbers = #tpu.dot_dimension_numbers<[1], [0], [0], [1], [0, 0, 1, 1], [], []>} : vector<16x128xbf16>, vector<128x512xbf16>, vector<16x512xf32> -> vector<16x512xf32>
    %464 = arith.addf %462, %463 : vector<16x512xf32>
    %465 = vector.extract_strided_slice %464 {offsets = [0, 0], sizes = [16, 128], strides = [1, 1]} : vector<16x512xf32> to vector<16x128xf32>
    %cst_153 = arith.constant 5.000000e-01 : f32
    %466 = vector.broadcast %cst_153 : f32 to vector<16x128xf32>
    %467 = arith.mulf %466, %465 : vector<16x128xf32>
    %468 = math.tanh %467 : vector<16x128xf32>
    %cst_154 = arith.constant 5.000000e-01 : f32
    %469 = vector.broadcast %cst_154 : f32 to vector<16x128xf32>
    %470 = arith.mulf %469, %468 : vector<16x128xf32>
    %cst_155 = arith.constant 5.000000e-01 : f32
    %471 = vector.broadcast %cst_155 : f32 to vector<16x128xf32>
    %472 = arith.addf %470, %471 : vector<16x128xf32>
    %473 = vector.extract_strided_slice %464 {offsets = [0, 128], sizes = [16, 128], strides = [1, 1]} : vector<16x512xf32> to vector<16x128xf32>
    %cst_156 = arith.constant 5.000000e-01 : f32
    %474 = vector.broadcast %cst_156 : f32 to vector<16x128xf32>
    %475 = arith.mulf %474, %473 : vector<16x128xf32>
    %476 = math.tanh %475 : vector<16x128xf32>
    %cst_157 = arith.constant 5.000000e-01 : f32
    %477 = vector.broadcast %cst_157 : f32 to vector<16x128xf32>
    %478 = arith.mulf %477, %476 : vector<16x128xf32>
    %cst_158 = arith.constant 5.000000e-01 : f32
    %479 = vector.broadcast %cst_158 : f32 to vector<16x128xf32>
    %480 = arith.addf %478, %479 : vector<16x128xf32>
    %481 = vector.extract_strided_slice %464 {offsets = [0, 256], sizes = [16, 128], strides = [1, 1]} : vector<16x512xf32> to vector<16x128xf32>
    %482 = math.tanh %481 : vector<16x128xf32>
    %483 = vector.extract_strided_slice %464 {offsets = [0, 384], sizes = [16, 128], strides = [1, 1]} : vector<16x512xf32> to vector<16x128xf32>
    %cst_159 = arith.constant 5.000000e-01 : f32
    %484 = vector.broadcast %cst_159 : f32 to vector<16x128xf32>
    %485 = arith.mulf %484, %483 : vector<16x128xf32>
    %486 = math.tanh %485 : vector<16x128xf32>
    %cst_160 = arith.constant 5.000000e-01 : f32
    %487 = vector.broadcast %cst_160 : f32 to vector<16x128xf32>
    %488 = arith.mulf %487, %486 : vector<16x128xf32>
    %cst_161 = arith.constant 5.000000e-01 : f32
    %489 = vector.broadcast %cst_161 : f32 to vector<16x128xf32>
    %490 = arith.addf %488, %489 : vector<16x128xf32>
    %491 = arith.mulf %480, %419 : vector<16x128xf32>
    %492 = arith.mulf %472, %482 : vector<16x128xf32>
    %493 = arith.addf %491, %492 : vector<16x128xf32>
    %494 = math.tanh %493 : vector<16x128xf32>
    %495 = arith.mulf %490, %494 : vector<16x128xf32>
    %496 = arith.truncf %495 : vector<16x128xf32> to vector<16x128xbf16>
    %cst_162 = arith.constant dense<0.000000e+00> : vector<16x512xf32>
    %497 = tpu.matmul %496, %8, %cst_162 {dimension_numbers = #tpu.dot_dimension_numbers<[1], [0], [0], [1], [0, 0, 1, 1], [], []>} : vector<16x128xbf16>, vector<128x512xbf16>, vector<16x512xf32> -> vector<16x512xf32>
    %cst_163 = arith.constant dense<0.000000e+00> : vector<16x512xf32>
    %498 = tpu.matmul %458, %9, %cst_163 {dimension_numbers = #tpu.dot_dimension_numbers<[1], [0], [0], [1], [0, 0, 1, 1], [], []>} : vector<16x128xbf16>, vector<128x512xbf16>, vector<16x512xf32> -> vector<16x512xf32>
    %499 = arith.addf %497, %498 : vector<16x512xf32>
    %500 = arith.addf %499, %12 : vector<16x512xf32>
    %501 = vector.extract_strided_slice %500 {offsets = [0, 0], sizes = [16, 128], strides = [1, 1]} : vector<16x512xf32> to vector<16x128xf32>
    %cst_164 = arith.constant 5.000000e-01 : f32
    %502 = vector.broadcast %cst_164 : f32 to vector<16x128xf32>
    %503 = arith.mulf %502, %501 : vector<16x128xf32>
    %504 = math.tanh %503 : vector<16x128xf32>
    %cst_165 = arith.constant 5.000000e-01 : f32
    %505 = vector.broadcast %cst_165 : f32 to vector<16x128xf32>
    %506 = arith.mulf %505, %504 : vector<16x128xf32>
    %cst_166 = arith.constant 5.000000e-01 : f32
    %507 = vector.broadcast %cst_166 : f32 to vector<16x128xf32>
    %508 = arith.addf %506, %507 : vector<16x128xf32>
    %509 = vector.extract_strided_slice %500 {offsets = [0, 128], sizes = [16, 128], strides = [1, 1]} : vector<16x512xf32> to vector<16x128xf32>
    %cst_167 = arith.constant 5.000000e-01 : f32
    %510 = vector.broadcast %cst_167 : f32 to vector<16x128xf32>
    %511 = arith.mulf %510, %509 : vector<16x128xf32>
    %512 = math.tanh %511 : vector<16x128xf32>
    %cst_168 = arith.constant 5.000000e-01 : f32
    %513 = vector.broadcast %cst_168 : f32 to vector<16x128xf32>
    %514 = arith.mulf %513, %512 : vector<16x128xf32>
    %cst_169 = arith.constant 5.000000e-01 : f32
    %515 = vector.broadcast %cst_169 : f32 to vector<16x128xf32>
    %516 = arith.addf %514, %515 : vector<16x128xf32>
    %517 = vector.extract_strided_slice %500 {offsets = [0, 256], sizes = [16, 128], strides = [1, 1]} : vector<16x512xf32> to vector<16x128xf32>
    %518 = math.tanh %517 : vector<16x128xf32>
    %519 = vector.extract_strided_slice %500 {offsets = [0, 384], sizes = [16, 128], strides = [1, 1]} : vector<16x512xf32> to vector<16x128xf32>
    %cst_170 = arith.constant 5.000000e-01 : f32
    %520 = vector.broadcast %cst_170 : f32 to vector<16x128xf32>
    %521 = arith.mulf %520, %519 : vector<16x128xf32>
    %522 = math.tanh %521 : vector<16x128xf32>
    %cst_171 = arith.constant 5.000000e-01 : f32
    %523 = vector.broadcast %cst_171 : f32 to vector<16x128xf32>
    %524 = arith.mulf %523, %522 : vector<16x128xf32>
    %cst_172 = arith.constant 5.000000e-01 : f32
    %525 = vector.broadcast %cst_172 : f32 to vector<16x128xf32>
    %526 = arith.addf %524, %525 : vector<16x128xf32>
    %527 = arith.mulf %516, %455 : vector<16x128xf32>
    %528 = arith.mulf %508, %518 : vector<16x128xf32>
    %529 = arith.addf %527, %528 : vector<16x128xf32>
    %530 = math.tanh %529 : vector<16x128xf32>
    %531 = arith.mulf %526, %530 : vector<16x128xf32>
    %532 = arith.truncf %531 : vector<16x128xf32> to vector<16x128xbf16>
    %c7_i32 = arith.constant 7 : i32
    %c16_i32_173 = arith.constant 16 : i32
    %533 = arith.muli %c7_i32, %c16_i32_173 : i32
    %534 = tpu.assume_multiple %533, 16 : i32
    %535 = arith.index_cast %534 : i32 to index
    %c0_174 = arith.constant 0 : index
    %536 = vector.load %arg5[%535, %c0_174] : memref<128x512xf32, #tpu.memory_space<vmem>>, vector<16x512xf32>
    %cst_175 = arith.constant dense<0.000000e+00> : vector<16x512xf32>
    %537 = tpu.matmul %496, %7, %cst_175 {dimension_numbers = #tpu.dot_dimension_numbers<[1], [0], [0], [1], [0, 0, 1, 1], [], []>} : vector<16x128xbf16>, vector<128x512xbf16>, vector<16x512xf32> -> vector<16x512xf32>
    %538 = arith.addf %536, %537 : vector<16x512xf32>
    %539 = vector.extract_strided_slice %538 {offsets = [0, 0], sizes = [16, 128], strides = [1, 1]} : vector<16x512xf32> to vector<16x128xf32>
    %cst_176 = arith.constant 5.000000e-01 : f32
    %540 = vector.broadcast %cst_176 : f32 to vector<16x128xf32>
    %541 = arith.mulf %540, %539 : vector<16x128xf32>
    %542 = math.tanh %541 : vector<16x128xf32>
    %cst_177 = arith.constant 5.000000e-01 : f32
    %543 = vector.broadcast %cst_177 : f32 to vector<16x128xf32>
    %544 = arith.mulf %543, %542 : vector<16x128xf32>
    %cst_178 = arith.constant 5.000000e-01 : f32
    %545 = vector.broadcast %cst_178 : f32 to vector<16x128xf32>
    %546 = arith.addf %544, %545 : vector<16x128xf32>
    %547 = vector.extract_strided_slice %538 {offsets = [0, 128], sizes = [16, 128], strides = [1, 1]} : vector<16x512xf32> to vector<16x128xf32>
    %cst_179 = arith.constant 5.000000e-01 : f32
    %548 = vector.broadcast %cst_179 : f32 to vector<16x128xf32>
    %549 = arith.mulf %548, %547 : vector<16x128xf32>
    %550 = math.tanh %549 : vector<16x128xf32>
    %cst_180 = arith.constant 5.000000e-01 : f32
    %551 = vector.broadcast %cst_180 : f32 to vector<16x128xf32>
    %552 = arith.mulf %551, %550 : vector<16x128xf32>
    %cst_181 = arith.constant 5.000000e-01 : f32
    %553 = vector.broadcast %cst_181 : f32 to vector<16x128xf32>
    %554 = arith.addf %552, %553 : vector<16x128xf32>
    %555 = vector.extract_strided_slice %538 {offsets = [0, 256], sizes = [16, 128], strides = [1, 1]} : vector<16x512xf32> to vector<16x128xf32>
    %556 = math.tanh %555 : vector<16x128xf32>
    %557 = vector.extract_strided_slice %538 {offsets = [0, 384], sizes = [16, 128], strides = [1, 1]} : vector<16x512xf32> to vector<16x128xf32>
    %cst_182 = arith.constant 5.000000e-01 : f32
    %558 = vector.broadcast %cst_182 : f32 to vector<16x128xf32>
    %559 = arith.mulf %558, %557 : vector<16x128xf32>
    %560 = math.tanh %559 : vector<16x128xf32>
    %cst_183 = arith.constant 5.000000e-01 : f32
    %561 = vector.broadcast %cst_183 : f32 to vector<16x128xf32>
    %562 = arith.mulf %561, %560 : vector<16x128xf32>
    %cst_184 = arith.constant 5.000000e-01 : f32
    %563 = vector.broadcast %cst_184 : f32 to vector<16x128xf32>
    %564 = arith.addf %562, %563 : vector<16x128xf32>
    %565 = arith.mulf %554, %493 : vector<16x128xf32>
    %566 = arith.mulf %546, %556 : vector<16x128xf32>
    %567 = arith.addf %565, %566 : vector<16x128xf32>
    %568 = math.tanh %567 : vector<16x128xf32>
    %569 = arith.mulf %564, %568 : vector<16x128xf32>
    %570 = arith.truncf %569 : vector<16x128xf32> to vector<16x128xbf16>
    %cst_185 = arith.constant dense<0.000000e+00> : vector<16x512xf32>
    %571 = tpu.matmul %570, %8, %cst_185 {dimension_numbers = #tpu.dot_dimension_numbers<[1], [0], [0], [1], [0, 0, 1, 1], [], []>} : vector<16x128xbf16>, vector<128x512xbf16>, vector<16x512xf32> -> vector<16x512xf32>
    %cst_186 = arith.constant dense<0.000000e+00> : vector<16x512xf32>
    %572 = tpu.matmul %532, %9, %cst_186 {dimension_numbers = #tpu.dot_dimension_numbers<[1], [0], [0], [1], [0, 0, 1, 1], [], []>} : vector<16x128xbf16>, vector<128x512xbf16>, vector<16x512xf32> -> vector<16x512xf32>
    %573 = arith.addf %571, %572 : vector<16x512xf32>
    %574 = arith.addf %573, %12 : vector<16x512xf32>
    %575 = vector.extract_strided_slice %574 {offsets = [0, 0], sizes = [16, 128], strides = [1, 1]} : vector<16x512xf32> to vector<16x128xf32>
    %cst_187 = arith.constant 5.000000e-01 : f32
    %576 = vector.broadcast %cst_187 : f32 to vector<16x128xf32>
    %577 = arith.mulf %576, %575 : vector<16x128xf32>
    %578 = math.tanh %577 : vector<16x128xf32>
    %cst_188 = arith.constant 5.000000e-01 : f32
    %579 = vector.broadcast %cst_188 : f32 to vector<16x128xf32>
    %580 = arith.mulf %579, %578 : vector<16x128xf32>
    %cst_189 = arith.constant 5.000000e-01 : f32
    %581 = vector.broadcast %cst_189 : f32 to vector<16x128xf32>
    %582 = arith.addf %580, %581 : vector<16x128xf32>
    %583 = vector.extract_strided_slice %574 {offsets = [0, 128], sizes = [16, 128], strides = [1, 1]} : vector<16x512xf32> to vector<16x128xf32>
    %cst_190 = arith.constant 5.000000e-01 : f32
    %584 = vector.broadcast %cst_190 : f32 to vector<16x128xf32>
    %585 = arith.mulf %584, %583 : vector<16x128xf32>
    %586 = math.tanh %585 : vector<16x128xf32>
    %cst_191 = arith.constant 5.000000e-01 : f32
    %587 = vector.broadcast %cst_191 : f32 to vector<16x128xf32>
    %588 = arith.mulf %587, %586 : vector<16x128xf32>
    %cst_192 = arith.constant 5.000000e-01 : f32
    %589 = vector.broadcast %cst_192 : f32 to vector<16x128xf32>
    %590 = arith.addf %588, %589 : vector<16x128xf32>
    %591 = vector.extract_strided_slice %574 {offsets = [0, 256], sizes = [16, 128], strides = [1, 1]} : vector<16x512xf32> to vector<16x128xf32>
    %592 = math.tanh %591 : vector<16x128xf32>
    %593 = vector.extract_strided_slice %574 {offsets = [0, 384], sizes = [16, 128], strides = [1, 1]} : vector<16x512xf32> to vector<16x128xf32>
    %cst_193 = arith.constant 5.000000e-01 : f32
    %594 = vector.broadcast %cst_193 : f32 to vector<16x128xf32>
    %595 = arith.mulf %594, %593 : vector<16x128xf32>
    %596 = math.tanh %595 : vector<16x128xf32>
    %cst_194 = arith.constant 5.000000e-01 : f32
    %597 = vector.broadcast %cst_194 : f32 to vector<16x128xf32>
    %598 = arith.mulf %597, %596 : vector<16x128xf32>
    %cst_195 = arith.constant 5.000000e-01 : f32
    %599 = vector.broadcast %cst_195 : f32 to vector<16x128xf32>
    %600 = arith.addf %598, %599 : vector<16x128xf32>
    %601 = arith.mulf %590, %529 : vector<16x128xf32>
    %602 = arith.mulf %582, %592 : vector<16x128xf32>
    %603 = arith.addf %601, %602 : vector<16x128xf32>
    %604 = math.tanh %603 : vector<16x128xf32>
    %605 = arith.mulf %600, %604 : vector<16x128xf32>
    %606 = arith.truncf %605 : vector<16x128xf32> to vector<16x128xbf16>
    %c8_i32 = arith.constant 8 : i32
    %c0_196 = arith.constant 0 : index
    %c0_197 = arith.constant 0 : index
    %607 = vector.load %arg3[%c0_196, %c0_197] : memref<320x192xbf16, #tpu.memory_space<vmem>>, vector<128x192xbf16>
    %c128 = arith.constant 128 : index
    %c0_198 = arith.constant 0 : index
    %608 = vector.load %arg3[%c128, %c0_198] : memref<320x192xbf16, #tpu.memory_space<vmem>>, vector<192x128xbf16>
    %cst_199 = arith.constant dense<0.000000e+00> : vector<16x192xf32>
    %609 = tpu.matmul %606, %607, %cst_199 {dimension_numbers = #tpu.dot_dimension_numbers<[1], [0], [0], [1], [0, 0, 1, 1], [], []>} : vector<16x128xbf16>, vector<128x192xbf16>, vector<16x192xf32> -> vector<16x192xf32>
    %c2 = arith.constant 2 : index
    %c0_200 = arith.constant 0 : index
    %610 = vector.load %arg2[%c2, %c0_200] : memref<4x512xf32, #tpu.memory_space<vmem>>, vector<1x192xf32>
    %611 = vector.broadcast %610 : vector<1x192xf32> to vector<16x192xf32>
    %612 = arith.addf %609, %611 : vector<16x192xf32>
    %cst_201 = arith.constant 0.000000e+00 : f32
    %613 = vector.broadcast %cst_201 : f32 to vector<16x192xf32>
    %614 = arith.maximumf %612, %613 : vector<16x192xf32>
    %615 = arith.truncf %614 : vector<16x192xf32> to vector<16x192xbf16>
    %cst_202 = arith.constant dense<0.000000e+00> : vector<16x128xf32>
    %616 = tpu.matmul %615, %608, %cst_202 {dimension_numbers = #tpu.dot_dimension_numbers<[1], [0], [0], [1], [0, 0, 1, 1], [], []>} : vector<16x192xbf16>, vector<192x128xbf16>, vector<16x128xf32> -> vector<16x128xf32>
    %c3 = arith.constant 3 : index
    %c0_203 = arith.constant 0 : index
    %617 = vector.load %arg2[%c3, %c0_203] : memref<4x512xf32, #tpu.memory_space<vmem>>, vector<1x128xf32>
    %618 = vector.broadcast %617 : vector<1x128xf32> to vector<16x128xf32>
    %619 = arith.addf %616, %618 : vector<16x128xf32>
    %620 = tpu.iota {dimensions = array<i32: 1>} : vector<16x128xi32>
    %621 = math.tanh %619 : vector<16x128xf32>
    %cst_204 = arith.constant 0.000000e+00 : f32
    %622 = vector.broadcast %cst_204 : f32 to vector<16x128xf32>
    %623 = arith.maximumf %619, %622 : vector<16x128xf32>
    %624 = math.absf %619 : vector<16x128xf32>
    %cst_205 = arith.constant 0.000000e+00 : f32
    %625 = vector.broadcast %cst_205 : f32 to vector<16x128xf32>
    %626 = arith.subf %625, %624 : vector<16x128xf32>
    %627 = math.exp %626 : vector<16x128xf32>
    %628 = math.log1p %627 : vector<16x128xf32>
    %629 = arith.addf %623, %628 : vector<16x128xf32>
    %cst_206 = arith.constant 9.99999997E-7 : f32
    %630 = vector.broadcast %cst_206 : f32 to vector<16x128xf32>
    %631 = arith.addf %629, %630 : vector<16x128xf32>
    %c0_i32_207 = arith.constant 0 : i32
    %632 = vector.broadcast %c0_i32_207 : i32 to vector<16x128xi32>
    %633 = arith.cmpi eq, %620, %632 : vector<16x128xi32>
    %c1_i32_208 = arith.constant 1 : i32
    %634 = vector.broadcast %c1_i32_208 : i32 to vector<16x128xi32>
    %635 = arith.cmpi eq, %620, %634 : vector<16x128xi32>
    %636 = arith.select %635, %631, %619 : vector<16x128xi1>, vector<16x128xf32>
    %637 = arith.select %633, %621, %636 : vector<16x128xi1>, vector<16x128xf32>
    %c0_209 = arith.constant 0 : index
    %c0_210 = arith.constant 0 : index
    %638 = vector.load %arg4[%c0_209, %c0_210] : memref<16x128xf32, #tpu.memory_space<vmem>>, vector<16x128xf32>
    tpu.vector_store %arg4[%c0_209, %c0_210], %637 {strides = array<i32>} : memref<16x128xf32, #tpu.memory_space<vmem>>, vector<16x128xf32>,
    return
  }
}

</mosaic_0001>

<llo_original>
// kernel: actor_critic_forward.1
$region0: #{actor_critic_forward.1}
  #allocation0 [shape = 'u32[]', space=smem, size = 0x4, offset = 0x4, fixed_abs, tag = 'smem constant byte address 0x4 - core index']
  #allocation1 [shape = 'u32[144,128]{1,0:T(1,128)}', space=vmem, size = 0x12000, scoped, tag = 'internal scratch']
  #allocation2 [shape = 'f32[128,512]{1,0:T(8,128)}', space=vmem, size = 0x40000, scoped, tag = 'scratch operand']
  %s0 = inlined_call_operand.vmem [shape: bf16[128,16], index: 0, kind: input, shape index: {}]
  %s1 = inlined_call_operand.vmem [shape: bf16[400,512], index: 1, kind: input, shape index: {}]
  %s2 = inlined_call_operand.vmem [shape: f32[4,512], index: 2, kind: input, shape index: {}]
  %s3 = inlined_call_operand.vmem [shape: bf16[320,192], index: 3, kind: input, shape index: {}]
  %s4 = inlined_call_operand.vmem [shape: f32[16,128], index: 4, kind: output, shape index: {}]
  %s5 = sld [smem:[#allocation0]]
  $region26: #{actor_critic_forward.1} parent=0
    _
  %s7 = ssub.s32 1, %s5
  %s8 = scalar_select 0, %s7, %s5
  // Predicated region
  $region2: #{actor_critic_forward.1} parent=0 // pred_check
    _
  $region3: #{actor_critic_forward.1} parent=0 // pred_check_branch
    %10 = sbr.rel (0) target = $region5
  $region4: #{actor_critic_forward.1} parent=0 // pred_region
    _
  $region5: #{actor_critic_forward.1} parent=0 // pred_fallthru
    _
  // Predicated region
  $region6: #{actor_critic_forward.1} parent=0 // pred_check
    _
  $region7: #{actor_critic_forward.1} parent=0 // pred_check_branch
    %12 = sbr.rel (0) target = $region9
  $region8: #{actor_critic_forward.1} parent=0 // pred_region
    _
  $region9: #{actor_critic_forward.1} parent=0 // pred_fallthru
    _
  // Predicated region
  $region10: #{actor_critic_forward.1} parent=0 // pred_check
    _
  $region11: #{actor_critic_forward.1} parent=0 // pred_check_branch
    %14 = sbr.rel (0) target = $region13
  $region12: #{actor_critic_forward.1} parent=0 // pred_region
    _
  $region13: #{actor_critic_forward.1} parent=0 // pred_fallthru
    _
  // Predicated region
  $region14: #{actor_critic_forward.1} parent=0 // pred_check
    _
  $region15: #{actor_critic_forward.1} parent=0 // pred_check_branch
    %16 = sbr.rel (0) target = $region17
  $region16: #{actor_critic_forward.1} parent=0 // pred_region
    _
  $region17: #{actor_critic_forward.1} parent=0 // pred_fallthru
    _
  %v18 = vld [vmem:[%s0] sm:$0xf]
  %v19 = vld [vmem:[%s0 + $0x4] sm:$0xf]
  %v20 = vld [vmem:[%s0 + $0x8] sm:$0xf]
  %v21 = vld [vmem:[%s0 + $0xc] sm:$0xf]
  %v22 = vld [vmem:[%s0 + $0x10] sm:$0xf]
  %v23 = vld [vmem:[%s0 + $0x14] sm:$0xf]
  %v24 = vld [vmem:[%s0 + $0x18] sm:$0xf]
  %v25 = vld [vmem:[%s0 + $0x1c] sm:$0xf]
  %v26 = vld [vmem:[%s0 + $0x20] sm:$0xf]
  %v27 = vld [vmem:[%s0 + $0x24] sm:$0xf]
  %v28 = vld [vmem:[%s0 + $0x28] sm:$0xf]
  %v29 = vld [vmem:[%s0 + $0x2c] sm:$0xf]
  %v30 = vld [vmem:[%s0 + $0x30] sm:$0xf]
  %v31 = vld [vmem:[%s0 + $0x34] sm:$0xf]
  %v32 = vld [vmem:[%s0 + $0x38] sm:$0xf]
  %v33 = vld [vmem:[%s0 + $0x3c] sm:$0xf]
  %v34 = vld [vmem:[%s1] sm:$0xff]
  %v35 = vld [vmem:[%s1 + $0x8] sm:$0xff]
  %v36 = vld [vmem:[%s1 + $0x10] sm:$0xff]
  %v37 = vld [vmem:[%s1 + $0x18] sm:$0xff]
  %v38 = vld [vmem:[%s2] ss:$4 sm:$0xf]
  %v40 = vlaneseq
  %v41 = vshrl.u32 %v40, 7
  %v42 = vsub.s32 0, %v41
  %v43 = vrot.slane %v38, %v42
  %v44 = vlaneseq
  %v45 = vshrl.u32 %v44, 7
  %v46 = vsub.s32 1, %v45
  %v47 = vrot.slane %v38, %v46
  %v48 = vlaneseq
  %v49 = vshrl.u32 %v48, 7
  %v50 = vsub.s32 2, %v49
  %v51 = vrot.slane %v38, %v50
  %v52 = vlaneseq
  %v53 = vshrl.u32 %v52, 7
  %v54 = vsub.s32 3, %v53
  %v55 = vrot.slane %v38, %v54
  %v76 = vunpack.c.l.b16 %v18
  %v77 = vunpack.c.l.b16 %v19
  %v78 = vunpack.c.l.b16 %v20
  %v79 = vunpack.c.l.b16 %v21
  %v80 = vunpack.c.l.b16 %v22
  %v81 = vunpack.c.l.b16 %v23
  %v82 = vunpack.c.l.b16 %v24
  %v83 = vunpack.c.l.b16 %v25
  %v84 = vunpack.c.l.b16 %v26
  %v85 = vunpack.c.l.b16 %v27
  %v86 = vunpack.c.l.b16 %v28
  %v87 = vunpack.c.l.b16 %v29
  %v88 = vunpack.c.l.b16 %v30
  %v89 = vunpack.c.l.b16 %v31
  %v90 = vunpack.c.l.b16 %v32
  %v91 = vunpack.c.l.b16 %v33
  %v92 = vpack.c.b16 %v77, %v76
  %v93 = vpack.c.b16 %v79, %v78
  %v94 = vpack.c.b16 %v81, %v80
  %v95 = vpack.c.b16 %v83, %v82
  %v96 = vpack.c.b16 %v85, %v84
  %v97 = vpack.c.b16 %v87, %v86
  %v98 = vpack.c.b16 %v89, %v88
  %v99 = vpack.c.b16 %v91, %v90
  %v104 = vunpack.c.l.b16 %v34
  %v105 = vunpack.c.h.b16 %v34
  %v106 = vunpack.c.l.b16 %v35
  %v107 = vunpack.c.h.b16 %v35
  %v108 = vunpack.c.l.b16 %v36
  %v109 = vunpack.c.h.b16 %v36
  %v110 = vunpack.c.l.b16 %v37
  %v111 = vunpack.c.h.b16 %v37
  %v112 = vpack.c.b16 %v108, %v104
  %v113 = vpack.c.b16 %v109, %v105
  %v114 = vpack.c.b16 %v110, %v106
  %v115 = vpack.c.b16 %v111, %v107
  %vm120 = vcmask 130048
  %v122 = vsel %vm120, %v92, 0
  %v125 = vsel %vm120, %v93, 0
  %v128 = vsel %vm120, %v94, 0
  %v131 = vsel %vm120, %v95, 0
  %v134 = vsel %vm120, %v96, 0
  %v137 = vsel %vm120, %v97, 0
  %v140 = vsel %vm120, %v98, 0
  %v143 = vsel %vm120, %v99, 0
  %145 = vmatprep.subr.bf16.mxu0 %v113
  %146 = vmatpush1.bf16.msra.mxu0 %v112
  %147 = vmatprep.subr.bf16.mxu0 0
  %148 = vmatpush1.bf16.msra.mxu0 0
  %149 = vmatprep.subr.bf16.mxu0 0
  %150 = vmatpush1.bf16.msra.mxu0 0
  %151 = vmatprep.subr.bf16.mxu0 0
  %152 = vmatpush1.bf16.msra.mxu0 0
  %153 = vmatprep.subr.bf16.mxu0 0
  %154 = vmatpush1.bf16.msra.mxu0 0
  %155 = vmatprep.subr.bf16.mxu0 0
  %156 = vmatpush1.bf16.msra.mxu0 0
  %157 = vmatprep.subr.bf16.mxu0 0
  %158 = vmatpush1.bf16.msra.mxu0 0
  %159 = vmatprep.subr.bf16.mxu0 0
  %160 = vmatpush1.bf16.msra.mxu0 0
  %161 = vmatprep.subr.bf16.mxu0 0
  %162 = vmatpush1.bf16.msra.mxu0 0
  %163 = vmatprep.subr.bf16.mxu0 0
  %164 = vmatpush1.bf16.msra.mxu0 0
  %165 = vmatprep.subr.bf16.mxu0 0
  %166 = vmatpush1.bf16.msra.mxu0 0
  %167 = vmatprep.subr.bf16.mxu0 0
  %168 = vmatpush1.bf16.msra.mxu0 0
  %169 = vmatprep.subr.bf16.mxu0 0
  %170 = vmatpush1.bf16.msra.mxu0 0
  %171 = vmatprep.subr.bf16.mxu0 0
  %172 = vmatpush1.bf16.msra.mxu0 0
  %173 = vmatprep.subr.bf16.mxu0 0
  %174 = vmatpush1.bf16.msra.mxu0 0
  %175 = vmatprep.subr.bf16.mxu0 0
  %176 = vmatpush1.bf16.msra.mxu0 0
  %177 = vmatprep.mubr.bf16.mxu0 0
  %178 = vmatmul.mubr.bf16.gmra.mrb[0].mxu0 %v122
  %v179 = vpop.f32.mrb[0].mxu0
  %v180 = vadd.f32 %v43, %v179
  %v181 = vpop.f32.mrb[0].mxu0
  %v182 = vadd.f32 %v47, %v181
  %v183 = vpop.f32.mrb[0].mxu0
  %v184 = vadd.f32 %v43, %v183
  %v185 = vpop.f32.mrb[0].mxu0
  %v186 = vadd.f32 %v47, %v185
  %187 = vmatprep.mubr.bf16.mxu0 0
  %188 = vmatmul.mubr.bf16.gmra.mrb[0].mxu0 %v125
  %v189 = vpop.f32.mrb[0].mxu0
  %v190 = vadd.f32 %v43, %v189
  %v191 = vpop.f32.mrb[0].mxu0
  %v192 = vadd.f32 %v47, %v191
  %v193 = vpop.f32.mrb[0].mxu0
  %v194 = vadd.f32 %v43, %v193
  %v195 = vpop.f32.mrb[0].mxu0
  %v196 = vadd.f32 %v47, %v195
  %197 = vmatprep.mubr.bf16.mxu0 0
  %198 = vmatmul.mubr.bf16.gmra.mrb[0].mxu0 %v128
  %v199 = vpop.f32.mrb[0].mxu0
  %v200 = vadd.f32 %v43, %v199
  %v201 = vpop.f32.mrb[0].mxu0
  %v202 = vadd.f32 %v47, %v201
  %v203 = vpop.f32.mrb[0].mxu0
  %v204 = vadd.f32 %v43, %v203
  %v205 = vpop.f32.mrb[0].mxu0
  %v206 = vadd.f32 %v47, %v205
  %207 = vmatprep.mubr.bf16.mxu0 0
  %208 = vmatmul.mubr.bf16.gmra.mrb[0].mxu0 %v131
  %v209 = vpop.f32.mrb[0].mxu0
  %v210 = vadd.f32 %v43, %v209
  %v211 = vpop.f32.mrb[0].mxu0
  %v212 = vadd.f32 %v47, %v211
  %v213 = vpop.f32.mrb[0].mxu0
  %v214 = vadd.f32 %v43, %v213
  %v215 = vpop.f32.mrb[0].mxu0
  %v216 = vadd.f32 %v47, %v215
  %217 = vmatprep.mubr.bf16.mxu0 0
  %218 = vmatmul.mubr.bf16.gmra.mrb[0].mxu0 %v134
  %v219 = vpop.f32.mrb[0].mxu0
  %v220 = vadd.f32 %v43, %v219
  %v221 = vpop.f32.mrb[0].mxu0
  %v222 = vadd.f32 %v47, %v221
  %v223 = vpop.f32.mrb[0].mxu0
  %v224 = vadd.f32 %v43, %v223
  %v225 = vpop.f32.mrb[0].mxu0
  %v226 = vadd.f32 %v47, %v225
  %227 = vmatprep.mubr.bf16.mxu0 0
  %228 = vmatmul.mubr.bf16.gmra.mrb[0].mxu0 %v137
  %v229 = vpop.f32.mrb[0].mxu0
  %v230 = vadd.f32 %v43, %v229
  %v231 = vpop.f32.mrb[0].mxu0
  %v232 = vadd.f32 %v47, %v231
  %v233 = vpop.f32.mrb[0].mxu0
  %v234 = vadd.f32 %v43, %v233
  %v235 = vpop.f32.mrb[0].mxu0
  %v236 = vadd.f32 %v47, %v235
  %237 = vmatprep.mubr.bf16.mxu0 0
  %238 = vmatmul.mubr.bf16.gmra.mrb[0].mxu0 %v140
  %v239 = vpop.f32.mrb[0].mxu0
  %v240 = vadd.f32 %v43, %v239
  %v241 = vpop.f32.mrb[0].mxu0
  %v242 = vadd.f32 %v47, %v241
  %v243 = vpop.f32.mrb[0].mxu0
  %v244 = vadd.f32 %v43, %v243
  %v245 = vpop.f32.mrb[0].mxu0
  %v246 = vadd.f32 %v47, %v245
  %247 = vmatprep.mubr.bf16.mxu0 0
  %248 = vmatmul.mubr.bf16.gmra.mrb[0].mxu0 %v143
  %v249 = vpop.f32.mrb[0].mxu0
  %v250 = vadd.f32 %v43, %v249
  %v251 = vpop.f32.mrb[0].mxu0
  %v252 = vadd.f32 %v47, %v251
  %v253 = vpop.f32.mrb[0].mxu0
  %v254 = vadd.f32 %v43, %v253
  %v255 = vpop.f32.mrb[0].mxu0
  %v256 = vadd.f32 %v47, %v255
  %257 = vdwg.mxu0
  %258 = vmatprep.subr.bf16.mxu0 %v115
  %259 = vmatpush1.bf16.msra.mxu0 %v114
  %260 = vmatprep.subr.bf16.mxu0 0
  %261 = vmatpush1.bf16.msra.mxu0 0
  %262 = vmatprep.subr.bf16.mxu0 0
  %263 = vmatpush1.bf16.msra.mxu0 0
  %264 = vmatprep.subr.bf16.mxu0 0
  %265 = vmatpush1.bf16.msra.mxu0 0
  %266 = vmatprep.subr.bf16.mxu0 0
  %267 = vmatpush1.bf16.msra.mxu0 0
  %268 = vmatprep.subr.bf16.mxu0 0
  %269 = vmatpush1.bf16.msra.mxu0 0
  %270 = vmatprep.subr.bf16.mxu0 0
  %271 = vmatpush1.bf16.msra.mxu0 0
  %272 = vmatprep.subr.bf16.mxu0 0
  %273 = vmatpush1.bf16.msra.mxu0 0
  %274 = vmatprep.subr.bf16.mxu0 0
  %275 = vmatpush1.bf16.msra.mxu0 0
  %276 = vmatprep.subr.bf16.mxu0 0
  %277 = vmatpush1.bf16.msra.mxu0 0
  %278 = vmatprep.subr.bf16.mxu0 0
  %279 = vmatpush1.bf16.msra.mxu0 0
  %280 = vmatprep.subr.bf16.mxu0 0
  %281 = vmatpush1.bf16.msra.mxu0 0
  %282 = vmatprep.subr.bf16.mxu0 0
  %283 = vmatpush1.bf16.msra.mxu0 0
  %284 = vmatprep.subr.bf16.mxu0 0
  %285 = vmatpush1.bf16.msra.mxu0 0
  %286 = vmatprep.subr.bf16.mxu0 0
  %287 = vmatpush1.bf16.msra.mxu0 0
  %288 = vmatprep.subr.bf16.mxu0 0
  %289 = vmatpush1.bf16.msra.mxu0 0
  %290 = vmatprep.mubr.bf16.mxu0 0
  %291 = vmatmul.mubr.bf16.gmra.mrb[0].mxu0 %v122
  %v292 = vpop.f32.mrb[0].mxu0
  %v293 = vadd.f32 %v51, %v292
  %v294 = vpop.f32.mrb[0].mxu0
  %v295 = vadd.f32 %v55, %v294
  %v296 = vpop.f32.mrb[0].mxu0
  %v297 = vadd.f32 %v51, %v296
  %v298 = vpop.f32.mrb[0].mxu0
  %v299 = vadd.f32 %v55, %v298
  %300 = vmatprep.mubr.bf16.mxu0 0
  %301 = vmatmul.mubr.bf16.gmra.mrb[0].mxu0 %v125
  %v302 = vpop.f32.mrb[0].mxu0
  %v303 = vadd.f32 %v51, %v302
  %v304 = vpop.f32.mrb[0].mxu0
  %v305 = vadd.f32 %v55, %v304
  %v306 = vpop.f32.mrb[0].mxu0
  %v307 = vadd.f32 %v51, %v306
  %v308 = vpop.f32.mrb[0].mxu0
  %v309 = vadd.f32 %v55, %v308
  %310 = vmatprep.mubr.bf16.mxu0 0
  %311 = vmatmul.mubr.bf16.gmra.mrb[0].mxu0 %v128
  %v312 = vpop.f32.mrb[0].mxu0
  %v313 = vadd.f32 %v51, %v312
  %v314 = vpop.f32.mrb[0].mxu0
  %v315 = vadd.f32 %v55, %v314
  %v316 = vpop.f32.mrb[0].mxu0
  %v317 = vadd.f32 %v51, %v316
  %v318 = vpop.f32.mrb[0].mxu0
  %v319 = vadd.f32 %v55, %v318
  %320 = vmatprep.mubr.bf16.mxu0 0
  %321 = vmatmul.mubr.bf16.gmra.mrb[0].mxu0 %v131
  %v322 = vpop.f32.mrb[0].mxu0
  %v323 = vadd.f32 %v51, %v322
  %v324 = vpop.f32.mrb[0].mxu0
  %v325 = vadd.f32 %v55, %v324
  %v326 = vpop.f32.mrb[0].mxu0
  %v327 = vadd.f32 %v51, %v326
  %v328 = vpop.f32.mrb[0].mxu0
  %v329 = vadd.f32 %v55, %v328
  %330 = vmatprep.mubr.bf16.mxu0 0
  %331 = vmatmul.mubr.bf16.gmra.mrb[0].mxu0 %v134
  %v332 = vpop.f32.mrb[0].mxu0
  %v333 = vadd.f32 %v51, %v332
  %v334 = vpop.f32.mrb[0].mxu0
  %v335 = vadd.f32 %v55, %v334
  %v336 = vpop.f32.mrb[0].mxu0
  %v337 = vadd.f32 %v51, %v336
  %v338 = vpop.f32.mrb[0].mxu0
  %v339 = vadd.f32 %v55, %v338
  %340 = vmatprep.mubr.bf16.mxu0 0
  %341 = vmatmul.mubr.bf16.gmra.mrb[0].mxu0 %v137
  %v342 = vpop.f32.mrb[0].mxu0
  %v343 = vadd.f32 %v51, %v342
  %v344 = vpop.f32.mrb[0].mxu0
  %v345 = vadd.f32 %v55, %v344
  %v346 = vpop.f32.mrb[0].mxu0
  %v347 = vadd.f32 %v51, %v346
  %v348 = vpop.f32.mrb[0].mxu0
  %v349 = vadd.f32 %v55, %v348
  %350 = vmatprep.mubr.bf16.mxu0 0
  %351 = vmatmul.mubr.bf16.gmra.mrb[0].mxu0 %v140
  %v352 = vpop.f32.mrb[0].mxu0
  %v353 = vadd.f32 %v51, %v352
  %v354 = vpop.f32.mrb[0].mxu0
  %v355 = vadd.f32 %v55, %v354
  %v356 = vpop.f32.mrb[0].mxu0
  %v357 = vadd.f32 %v51, %v356
  %v358 = vpop.f32.mrb[0].mxu0
  %v359 = vadd.f32 %v55, %v358
  %360 = vmatprep.mubr.bf16.mxu0 0
  %361 = vmatmul.mubr.bf16.gmra.mrb[0].mxu0 %v143
  %v362 = vpop.f32.mrb[0].mxu0
  %v363 = vadd.f32 %v51, %v362
  %v364 = vpop.f32.mrb[0].mxu0
  %v365 = vadd.f32 %v55, %v364
  %v366 = vpop.f32.mrb[0].mxu0
  %v367 = vadd.f32 %v51, %v366
  %v368 = vpop.f32.mrb[0].mxu0
  %v369 = vadd.f32 %v55, %v368
  %370 = vdwg.mxu0
  %371 = vst [vmem:[#allocation2] sm:$0xff] %v180
  %372 = vst [vmem:[#allocation2 + $0x8] sm:$0xff] %v182
  %373 = vst [vmem:[#allocation2 + $0x10] sm:$0xff] %v293
  %374 = vst [vmem:[#allocation2 + $0x18] sm:$0xff] %v295
  %375 = vst [vmem:[#allocation2 + $0x20] sm:$0xff] %v184
  %376 = vst [vmem:[#allocation2 + $0x28] sm:$0xff] %v186
  %377 = vst [vmem:[#allocation2 + $0x30] sm:$0xff] %v297
  %378 = vst [vmem:[#allocation2 + $0x38] sm:$0xff] %v299
  %379 = vst [vmem:[#allocation2 + $0x40] sm:$0xff] %v190
  %380 = vst [vmem:[#allocation2 + $0x48] sm:$0xff] %v192
  %381 = vst [vmem:[#allocation2 + $0x50] sm:$0xff] %v303
  %382 = vst [vmem:[#allocation2 + $0x58] sm:$0xff] %v305
  %383 = vst [vmem:[#allocation2 + $0x60] sm:$0xff] %v194
  %384 = vst [vmem:[#allocation2 + $0x68] sm:$0xff] %v196
  %385 = vst [vmem:[#allocation2 + $0x70] sm:$0xff] %v307
  %386 = vst [vmem:[#allocation2 + $0x78] sm:$0xff] %v309
  %387 = vst [vmem:[#allocation2 + $0x80] sm:$0xff] %v200
  %388 = vst [vmem:[#allocation2 + $0x88] sm:$0xff] %v202
  %389 = vst [vmem:[#allocation2 + $0x90] sm:$0xff] %v313
  %390 = vst [vmem:[#allocation2 + $0x98] sm:$0xff] %v315
  %391 = vst [vmem:[#allocation2 + $0xa0] sm:$0xff] %v204
  %392 = vst [vmem:[#allocation2 + $0xa8] sm:$0xff] %v206
  %393 = vst [vmem:[#allocation2 + $0xb0] sm:$0xff] %v317
  %394 = vst [vmem:[#allocation2 + $0xb8] sm:$0xff] %v319
  %395 = vst [vmem:[#allocation2 + $0xc0] sm:$0xff] %v210
  %396 = vst [vmem:[#allocation2 + $0xc8] sm:$0xff] %v212
  %397 = vst [vmem:[#allocation2 + $0xd0] sm:$0xff] %v323
  %398 = vst [vmem:[#allocation2 + $0xd8] sm:$0xff] %v325
  %399 = vst [vmem:[#allocation2 + $0xe0] sm:$0xff] %v214
  %400 = vst [vmem:[#allocation2 + $0xe8] sm:$0xff] %v216
  %401 = vst [vmem:[#allocation2 + $0xf0] sm:$0xff] %v327
  %402 = vst [vmem:[#allocation2 + $0xf8] sm:$0xff] %v329
  %403 = vst [vmem:[#allocation2 + $0x100] sm:$0xff] %v220
  %404 = vst [vmem:[#allocation2 + $0x108] sm:$0xff] %v222
  %405 = vst [vmem:[#allocation2 + $0x110] sm:$0xff] %v333
  %406 = vst [vmem:[#allocation2 + $0x118] sm:$0xff] %v335
  %407 = vst [vmem:[#allocation2 + $0x120] sm:$0xff] %v224
  %408 = vst [vmem:[#allocation2 + $0x128] sm:$0xff] %v226
  %409 = vst [vmem:[#allocation2 + $0x130] sm:$0xff] %v337
  %410 = vst [vmem:[#allocation2 + $0x138] sm:$0xff] %v339
  %411 = vst [vmem:[#allocation2 + $0x140] sm:$0xff] %v230
  %412 = vst [vmem:[#allocation2 + $0x148] sm:$0xff] %v232
  %413 = vst [vmem:[#allocation2 + $0x150] sm:$0xff] %v343
  %414 = vst [vmem:[#allocation2 + $0x158] sm:$0xff] %v345
  %415 = vst [vmem:[#allocation2 + $0x160] sm:$0xff] %v234
  %416 = vst [vmem:[#allocation2 + $0x168] sm:$0xff] %v236
  %417 = vst [vmem:[#allocation2 + $0x170] sm:$0xff] %v347
  %418 = vst [vmem:[#allocation2 + $0x178] sm:$0xff] %v349
  %419 = vst [vmem:[#allocation2 + $0x180] sm:$0xff] %v240
  %420 = vst [vmem:[#allocation2 + $0x188] sm:$0xff] %v242
  %421 = vst [vmem:[#allocation2 + $0x190] sm:$0xff] %v353
  %422 = vst [vmem:[#allocation2 + $0x198] sm:$0xff] %v355
  %423 = vst [vmem:[#allocation2 + $0x1a0] sm:$0xff] %v244
  %424 = vst [vmem:[#allocation2 + $0x1a8] sm:$0xff] %v246
  %425 = vst [vmem:[#allocation2 + $0x1b0] sm:$0xff] %v357
  %426 = vst [vmem:[#allocation2 + $0x1b8] sm:$0xff] %v359
  %427 = vst [vmem:[#allocation2 + $0x1c0] sm:$0xff] %v250
  %428 = vst [vmem:[#allocation2 + $0x1c8] sm:$0xff] %v252
  %429 = vst [vmem:[#allocation2 + $0x1d0] sm:$0xff] %v363
  %430 = vst [vmem:[#allocation2 + $0x1d8] sm:$0xff] %v365
  %431 = vst [vmem:[#allocation2 + $0x1e0] sm:$0xff] %v254
  %432 = vst [vmem:[#allocation2 + $0x1e8] sm:$0xff] %v256
  %433 = vst [vmem:[#allocation2 + $0x1f0] sm:$0xff] %v367
  %434 = vst [vmem:[#allocation2 + $0x1f8] sm:$0xff] %v369
  %v435 = vld [vmem:[%s1 + $0x20] sm:$0xff]
  %v436 = vld [vmem:[%s1 + $0x28] sm:$0xff]
  %v437 = vld [vmem:[%s1 + $0x30] sm:$0xff]
  %v438 = vld [vmem:[%s1 + $0x38] sm:$0xff]
  %v439 = vld [vmem:[%s1 + $0x40] sm:$0xff]
  %v440 = vld [vmem:[%s1 + $0x48] sm:$0xff]
  %v441 = vld [vmem:[%s1 + $0x50] sm:$0xff]
  %v442 = vld [vmem:[%s1 + $0x58] sm:$0xff]
  %v443 = vld [vmem:[%s1 + $0x60] sm:$0xff]
  %v444 = vld [vmem:[%s1 + $0x68] sm:$0xff]
  %v445 = vld [vmem:[%s1 + $0x70] sm:$0xff]
  %v446 = vld [vmem:[%s1 + $0x78] sm:$0xff]
  %v447 = vld [vmem:[%s1 + $0x80] sm:$0xff]
  %v448 = vld [vmem:[%s1 + $0x88] sm:$0xff]
  %v449 = vld [vmem:[%s1 + $0x90] sm:$0xff]
  %v450 = vld [vmem:[%s1 + $0x98] sm:$0xff]
  %v451 = vld [vmem:[%s1 + $0xa0] sm:$0xff]
  %v452 = vld [vmem:[%s1 + $0xa8] sm:$0xff]
  %v453 = vld [vmem:[%s1 + $0xb0] sm:$0xff]
  %v454 = vld [vmem:[%s1 + $0xb8] sm:$0xff]
  %v455 = vld [vmem:[%s1 + $0xc0] sm:$0xff]
  %v456 = vld [vmem:[%s1 + $0xc8] sm:$0xff]
  %v457 = vld [vmem:[%s1 + $0xd0] sm:$0xff]
  %v458 = vld [vmem:[%s1 + $0xd8] sm:$0xff]
  %v459 = vld [vmem:[%s1 + $0xe0] sm:$0xff]
  %v460 = vld [vmem:[%s1 + $0xe8] sm:$0xff]
  %v461 = vld [vmem:[%s1 + $0xf0] sm:$0xff]
  %v462 = vld [vmem:[%s1 + $0xf8] sm:$0xff]
  %v463 = vld [vmem:[%s1 + $0x100] sm:$0xff]
  %v464 = vld [vmem:[%s1 + $0x108] sm:$0xff]
  %v465 = vld [vmem:[%s1 + $0x110] sm:$0xff]
  %v466 = vld [vmem:[%s1 + $0x118] sm:$0xff]
  %v467 = vld [vmem:[%s1 + $0x120] sm:$0xff]
  %v468 = vld [vmem:[%s1 + $0x128] sm:$0xff]
  %v469 = vld [vmem:[%s1 + $0x130] sm:$0xff]
  %v470 = vld [vmem:[%s1 + $0x138] sm:$0xff]
  %v471 = vld [vmem:[%s1 + $0x140] sm:$0xff]
  %v472 = vld [vmem:[%s1 + $0x148] sm:$0xff]
  %v473 = vld [vmem:[%s1 + $0x150] sm:$0xff]
  %v474 = vld [vmem:[%s1 + $0x158] sm:$0xff]
  %v475 = vld [vmem:[%s1 + $0x160] sm:$0xff]
  %v476 = vld [vmem:[%s1 + $0x168] sm:$0xff]
  %v477 = vld [vmem:[%s1 + $0x170] sm:$0xff]
  %v478 = vld [vmem:[%s1 + $0x178] sm:$0xff]
  %v479 = vld [vmem:[%s1 + $0x180] sm:$0xff]
  %v480 = vld [vmem:[%s1 + $0x188] sm:$0xff]
  %v481 = vld [vmem:[%s1 + $0x190] sm:$0xff]
  %v482 = vld [vmem:[%s1 + $0x198] sm:$0xff]
  %v483 = vld [vmem:[%s1 + $0x1a0] sm:$0xff]
  %v484 = vld [vmem:[%s1 + $0x1a8] sm:$0xff]
  %v485 = vld [vmem:[%s1 + $0x1b0] sm:$0xff]
  %v486 = vld [vmem:[%s1 + $0x1b8] sm:$0xff]
  %v487 = vld [vmem:[%s1 + $0x1c0] sm:$0xff]
  %v488 = vld [vmem:[%s1 + $0x1c8] sm:$0xff]
  %v489 = vld [vmem:[%s1 + $0x1d0] sm:$0xff]
  %v490 = vld [vmem:[%s1 + $0x1d8] sm:$0xff]
  %v491 = vld [vmem:[%s1 + $0x1e0] sm:$0xff]
  %v492 = vld [vmem:[%s1 + $0x1e8] sm:$0xff]
  %v493 = vld [vmem:[%s1 + $0x1f0] sm:$0xff]
  %v494 = vld [vmem:[%s1 + $0x1f8] sm:$0xff]
  %v495 = vld [vmem:[%s1 + $0x200] sm:$0xff]
  %v496 = vld [vmem:[%s1 + $0x208] sm:$0xff]
  %v497 = vld [vmem:[%s1 + $0x210] sm:$0xff]
  %v498 = vld [vmem:[%s1 + $0x218] sm:$0xff]
  %v499 = vld [vmem:[%s1 + $0x220] sm:$0xff]
  %v500 = vld [vmem:[%s1 + $0x228] sm:$0xff]
  %v501 = vld [vmem:[%s1 + $0x230] sm:$0xff]
  %v502 = vld [vmem:[%s1 + $0x238] sm:$0xff]
  %v503 = vld [vmem:[%s1 + $0x240] sm:$0xff]
  %v504 = vld [vmem:[%s1 + $0x248] sm:$0xff]
  %v505 = vld [vmem:[%s1 + $0x250] sm:$0xff]
  %v506 = vld [vmem:[%s1 + $0x258] sm:$0xff]
  %v507 = vld [vmem:[%s1 + $0x260] sm:$0xff]
  %v508 = vld [vmem:[%s1 + $0x268] sm:$0xff]
  %v509 = vld [vmem:[%s1 + $0x270] sm:$0xff]
  %v510 = vld [vmem:[%s1 + $0x278] sm:$0xff]
  %v511 = vld [vmem:[%s1 + $0x280] sm:$0xff]
  %v512 = vld [vmem:[%s1 + $0x288] sm:$0xff]
  %v513 = vld [vmem:[%s1 + $0x290] sm:$0xff]
  %v514 = vld [vmem:[%s1 + $0x298] sm:$0xff]
  %v515 = vld [vmem:[%s1 + $0x2a0] sm:$0xff]
  %v516 = vld [vmem:[%s1 + $0x2a8] sm:$0xff]
  %v517 = vld [vmem:[%s1 + $0x2b0] sm:$0xff]
  %v518 = vld [vmem:[%s1 + $0x2b8] sm:$0xff]
  %v519 = vld [vmem:[%s1 + $0x2c0] sm:$0xff]
  %v520 = vld [vmem:[%s1 + $0x2c8] sm:$0xff]
  %v521 = vld [vmem:[%s1 + $0x2d0] sm:$0xff]
  %v522 = vld [vmem:[%s1 + $0x2d8] sm:$0xff]
  %v523 = vld [vmem:[%s1 + $0x2e0] sm:$0xff]
  %v524 = vld [vmem:[%s1 + $0x2e8] sm:$0xff]
  %v525 = vld [vmem:[%s1 + $0x2f0] sm:$0xff]
  %v526 = vld [vmem:[%s1 + $0x2f8] sm:$0xff]
  %v527 = vld [vmem:[%s1 + $0x300] sm:$0xff]
  %v528 = vld [vmem:[%s1 + $0x308] sm:$0xff]
  %v529 = vld [vmem:[%s1 + $0x310] sm:$0xff]
  %v530 = vld [vmem:[%s1 + $0x318] sm:$0xff]
  %s531 = scalar_lea.vmem %s2, 1
  %v532 = vld [vmem:[%s531] ss:$4 sm:$0xf]
  %v534 = vlaneseq
  %v535 = vshrl.u32 %v534, 7
  %v536 = vsub.s32 0, %v535
  %v537 = vrot.slane %v532, %v536
  %v538 = vlaneseq
  %v539 = vshrl.u32 %v538, 7
  %v540 = vsub.s32 1, %v539
  %v541 = vrot.slane %v532, %v540
  %v542 = vlaneseq
  %v543 = vshrl.u32 %v542, 7
  %v544 = vsub.s32 2, %v543
  %v545 = vrot.slane %v532, %v544
  %v546 = vlaneseq
  %v547 = vshrl.u32 %v546, 7
  %v548 = vsub.s32 3, %v547
  %v549 = vrot.slane %v532, %v548
  %s554 = smul.u32 0, 4
  %s555 = smul.addr %s554, 8
  %s556 = scalar_lea.vmem [#allocation2], %s555
  %v557 = vld [vmem:[%s556] sm:$0xff]
  %v558 = vld [vmem:[%s556 + $0x8] sm:$0xff]
  %v559 = vld [vmem:[%s556 + $0x10] sm:$0xff]
  %v560 = vld [vmem:[%s556 + $0x18] sm:$0xff]
  %v561 = vld [vmem:[%s556 + $0x20] sm:$0xff]
  %v562 = vld [vmem:[%s556 + $0x28] sm:$0xff]
  %v563 = vld [vmem:[%s556 + $0x30] sm:$0xff]
  %v564 = vld [vmem:[%s556 + $0x38] sm:$0xff]
  %v597 = vunpack.c.l.b16 %v435
  %v598 = vunpack.c.h.b16 %v435
  %v599 = vunpack.c.l.b16 %v436
  %v600 = vunpack.c.h.b16 %v436
  %v601 = vunpack.c.l.b16 %v437
  %v602 = vunpack.c.h.b16 %v437
  %v603 = vunpack.c.l.b16 %v438
  %v604 = vunpack.c.h.b16 %v438
  %v605 = vunpack.c.l.b16 %v439
  %v606 = vunpack.c.h.b16 %v439
  %v607 = vunpack.c.l.b16 %v440
  %v608 = vunpack.c.h.b16 %v440
  %v609 = vunpack.c.l.b16 %v441
  %v610 = vunpack.c.h.b16 %v441
  %v611 = vunpack.c.l.b16 %v442
  %v612 = vunpack.c.h.b16 %v442
  %v613 = vunpack.c.l.b16 %v443
  %v614 = vunpack.c.h.b16 %v443
  %v615 = vunpack.c.l.b16 %v444
  %v616 = vunpack.c.h.b16 %v444
  %v617 = vunpack.c.l.b16 %v445
  %v618 = vunpack.c.h.b16 %v445
  %v619 = vunpack.c.l.b16 %v446
  %v620 = vunpack.c.h.b16 %v446
  %v621 = vunpack.c.l.b16 %v447
  %v622 = vunpack.c.h.b16 %v447
  %v623 = vunpack.c.l.b16 %v448
  %v624 = vunpack.c.h.b16 %v448
  %v625 = vunpack.c.l.b16 %v449
  %v626 = vunpack.c.h.b16 %v449
  %v627 = vunpack.c.l.b16 %v450
  %v628 = vunpack.c.h.b16 %v450
  %v629 = vunpack.c.l.b16 %v451
  %v630 = vunpack.c.h.b16 %v451
  %v631 = vunpack.c.l.b16 %v452
  %v632 = vunpack.c.h.b16 %v452
  %v633 = vunpack.c.l.b16 %v453
  %v634 = vunpack.c.h.b16 %v453
  %v635 = vunpack.c.l.b16 %v454
  %v636 = vunpack.c.h.b16 %v454
  %v637 = vunpack.c.l.b16 %v455
  %v638 = vunpack.c.h.b16 %v455
  %v639 = vunpack.c.l.b16 %v456
  %v640 = vunpack.c.h.b16 %v456
  %v641 = vunpack.c.l.b16 %v457
  %v642 = vunpack.c.h.b16 %v457
  %v643 = vunpack.c.l.b16 %v458
  %v644 = vunpack.c.h.b16 %v458
  %v645 = vunpack.c.l.b16 %v459
  %v646 = vunpack.c.h.b16 %v459
  %v647 = vunpack.c.l.b16 %v460
  %v648 = vunpack.c.h.b16 %v460
  %v649 = vunpack.c.l.b16 %v461
  %v650 = vunpack.c.h.b16 %v461
  %v651 = vunpack.c.l.b16 %v462
  %v652 = vunpack.c.h.b16 %v462
  %v653 = vunpack.c.l.b16 %v463
  %v654 = vunpack.c.h.b16 %v463
  %v655 = vunpack.c.l.b16 %v464
  %v656 = vunpack.c.h.b16 %v464
  %v657 = vunpack.c.l.b16 %v465
  %v658 = vunpack.c.h.b16 %v465
  %v659 = vunpack.c.l.b16 %v466
  %v660 = vunpack.c.h.b16 %v466
  %v661 = vpack.c.b16 %v601, %v597
  %v662 = vpack.c.b16 %v602, %v598
  %v663 = vpack.c.b16 %v603, %v599
  %v664 = vpack.c.b16 %v604, %v600
  %v665 = vpack.c.b16 %v609, %v605
  %v666 = vpack.c.b16 %v610, %v606
  %v667 = vpack.c.b16 %v611, %v607
  %v668 = vpack.c.b16 %v612, %v608
  %v669 = vpack.c.b16 %v617, %v613
  %v670 = vpack.c.b16 %v618, %v614
  %v671 = vpack.c.b16 %v619, %v615
  %v672 = vpack.c.b16 %v620, %v616
  %v673 = vpack.c.b16 %v625, %v621
  %v674 = vpack.c.b16 %v626, %v622
  %v675 = vpack.c.b16 %v627, %v623
  %v676 = vpack.c.b16 %v628, %v624
  %v677 = vpack.c.b16 %v633, %v629
  %v678 = vpack.c.b16 %v634, %v630
  %v679 = vpack.c.b16 %v635, %v631
  %v680 = vpack.c.b16 %v636, %v632
  %v681 = vpack.c.b16 %v641, %v637
  %v682 = vpack.c.b16 %v642, %v638
  %v683 = vpack.c.b16 %v643, %v639
  %v684 = vpack.c.b16 %v644, %v640
  %v685 = vpack.c.b16 %v649, %v645
  %v686 = vpack.c.b16 %v650, %v646
  %v687 = vpack.c.b16 %v651, %v647
  %v688 = vpack.c.b16 %v652, %v648
  %v689 = vpack.c.b16 %v657, %v653
  %v690 = vpack.c.b16 %v658, %v654
  %v691 = vpack.c.b16 %v659, %v655
  %v692 = vpack.c.b16 %v660, %v656
  %725 = vmatprep.subr.bf16.mxu0 %v662
  %726 = vmatpush1.bf16.msra.mxu0 %v661
  %727 = vmatprep.subr.bf16.mxu0 %v666
  %728 = vmatpush1.bf16.msra.mxu0 %v665
  %729 = vmatprep.subr.bf16.mxu0 %v670
  %730 = vmatpush1.bf16.msra.mxu0 %v669
  %731 = vmatprep.subr.bf16.mxu0 %v674
  %732 = vmatpush1.bf16.msra.mxu0 %v673
  %733 = vmatprep.subr.bf16.mxu0 %v678
  %734 = vmatpush1.bf16.msra.mxu0 %v677
  %735 = vmatprep.subr.bf16.mxu0 %v682
  %736 = vmatpush1.bf16.msra.mxu0 %v681
  %737 = vmatprep.subr.bf16.mxu0 %v686
  %738 = vmatpush1.bf16.msra.mxu0 %v685
  %739 = vmatprep.subr.bf16.mxu0 %v690
  %740 = vmatpush1.bf16.msra.mxu0 %v689
  %741 = vmatprep.subr.bf16.mxu0 0
  %742 = vmatpush1.bf16.msra.mxu0 0
  %743 = vmatprep.subr.bf16.mxu0 0
  %744 = vmatpush1.bf16.msra.mxu0 0
  %745 = vmatprep.subr.bf16.mxu0 0
  %746 = vmatpush1.bf16.msra.mxu0 0
  %747 = vmatprep.subr.bf16.mxu0 0
  %748 = vmatpush1.bf16.msra.mxu0 0
  %749 = vmatprep.subr.bf16.mxu0 0
  %750 = vmatpush1.bf16.msra.mxu0 0
  %751 = vmatprep.subr.bf16.mxu0 0
  %752 = vmatpush1.bf16.msra.mxu0 0
  %753 = vmatprep.subr.bf16.mxu0 0
  %754 = vmatpush1.bf16.msra.mxu0 0
  %755 = vmatprep.subr.bf16.mxu0 0
  %756 = vmatpush1.bf16.msra.mxu0 0
  %757 = vmatprep.mubr.bf16.mxu0 0
  %758 = vmatmul.mubr.bf16.gmra.mrb[0].mxu0 0
  %v759 = vpop.f32.mrb[0].mxu0
  %v760 = vadd.f32 0.0, %v759
  %v761 = vpop.f32.mrb[0].mxu0
  %v762 = vadd.f32 0.0, %v761
  %v763 = vpop.f32.mrb[0].mxu0
  %v764 = vadd.f32 0.0, %v763
  %v765 = vpop.f32.mrb[0].mxu0
  %v766 = vadd.f32 0.0, %v765
  %767 = vdwg.mxu0
  %768 = vmatprep.subr.bf16.mxu0 %v664
  %769 = vmatpush1.bf16.msra.mxu0 %v663
  %770 = vmatprep.subr.bf16.mxu0 %v668
  %771 = vmatpush1.bf16.msra.mxu0 %v667
  %772 = vmatprep.subr.bf16.mxu0 %v672
  %773 = vmatpush1.bf16.msra.mxu0 %v671
  %774 = vmatprep.subr.bf16.mxu0 %v676
  %775 = vmatpush1.bf16.msra.mxu0 %v675
  %776 = vmatprep.subr.bf16.mxu0 %v680
  %777 = vmatpush1.bf16.msra.mxu0 %v679
  %778 = vmatprep.subr.bf16.mxu0 %v684
  %779 = vmatpush1.bf16.msra.mxu0 %v683
  %780 = vmatprep.subr.bf16.mxu0 %v688
  %781 = vmatpush1.bf16.msra.mxu0 %v687
  %782 = vmatprep.subr.bf16.mxu0 %v692
  %783 = vmatpush1.bf16.msra.mxu0 %v691
  %784 = vmatprep.subr.bf16.mxu0 0
  %785 = vmatpush1.bf16.msra.mxu0 0
  %786 = vmatprep.subr.bf16.mxu0 0
  %787 = vmatpush1.bf16.msra.mxu0 0
  %788 = vmatprep.subr.bf16.mxu0 0
  %789 = vmatpush1.bf16.msra.mxu0 0
  %790 = vmatprep.subr.bf16.mxu0 0
  %791 = vmatpush1.bf16.msra.mxu0 0
  %792 = vmatprep.subr.bf16.mxu0 0
  %793 = vmatpush1.bf16.msra.mxu0 0
  %794 = vmatprep.subr.bf16.mxu0 0
  %795 = vmatpush1.bf16.msra.mxu0 0
  %796 = vmatprep.subr.bf16.mxu0 0
  %797 = vmatpush1.bf16.msra.mxu0 0
  %798 = vmatprep.subr.bf16.mxu0 0
  %799 = vmatpush1.bf16.msra.mxu0 0
  %800 = vmatprep.mubr.bf16.mxu0 0
  %801 = vmatmul.mubr.bf16.gmra.mrb[0].mxu0 0
  %v802 = vpop.f32.mrb[0].mxu0
  %v803 = vadd.f32 0.0, %v802
  %v804 = vpop.f32.mrb[0].mxu0
  %v805 = vadd.f32 0.0, %v804
  %v806 = vpop.f32.mrb[0].mxu0
  %v807 = vadd.f32 0.0, %v806
  %v808 = vpop.f32.mrb[0].mxu0
  %v809 = vadd.f32 0.0, %v808
  %810 = vdwg.mxu0
  %v811 = vadd.f32 %v557, %v760
  %v812 = vadd.f32 %v558, %v762
  %v813 = vadd.f32 %v559, %v803
  %v814 = vadd.f32 %v560, %v805
  %v815 = vadd.f32 %v561, %v764
  %v816 = vadd.f32 %v562, %v766
  %v817 = vadd.f32 %v563, %v807
  %v818 = vadd.f32 %v564, %v809
  %v819 = vmul.f32 %v811, 0.5
  %v820 = vmul.f32 %v815, 0.5
  %v821 = vtanh.pop %v819
  %v822 = vtanh.pop %v820
  %v823 = vmul.f32 %v821, 0.5
  %v824 = vmul.f32 %v822, 0.5
  %v825 = vadd.f32 %v823, 0.5
  %v826 = vadd.f32 %v824, 0.5
  %v827 = vmul.f32 %v812, 0.5
  %v828 = vmul.f32 %v816, 0.5
  %v829 = vtanh.pop %v827
  %v830 = vtanh.pop %v828
  %v831 = vmul.f32 %v829, 0.5
  %v832 = vmul.f32 %v830, 0.5
  %v833 = vadd.f32 %v831, 0.5
  %v834 = vadd.f32 %v832, 0.5
  %v835 = vtanh.pop %v813
  %v836 = vtanh.pop %v817
  %v837 = vmul.f32 %v814, 0.5
  %v838 = vmul.f32 %v818, 0.5
  %v839 = vtanh.pop %v837
  %v840 = vtanh.pop %v838
  %v841 = vmul.f32 %v839, 0.5
  %v842 = vmul.f32 %v840, 0.5
  %v843 = vadd.f32 %v841, 0.5
  %v844 = vadd.f32 %v842, 0.5
  %v845 = vmul.f32 %v833, 0.0
  %v846 = vmul.f32 %v834, 0.0
  %v847 = vmul.f32 %v825, %v835
  %v848 = vmul.f32 %v826, %v836
  %v849 = vadd.f32 %v845, %v847
  %v850 = vadd.f32 %v846, %v848
  %v851 = vtanh.pop %v849
  %v852 = vtanh.pop %v850
  %v853 = vmul.f32 %v843, %v851
  %v854 = vmul.f32 %v844, %v852
  %v855 = vpack.c.bf16 %v854, %v853
  %v888 = vunpack.c.l.b16 %v499
  %v889 = vunpack.c.h.b16 %v499
  %v890 = vunpack.c.l.b16 %v500
  %v891 = vunpack.c.h.b16 %v500
  %v892 = vunpack.c.l.b16 %v501
  %v893 = vunpack.c.h.b16 %v501
  %v894 = vunpack.c.l.b16 %v502
  %v895 = vunpack.c.h.b16 %v502
  %v896 = vunpack.c.l.b16 %v503
  %v897 = vunpack.c.h.b16 %v503
  %v898 = vunpack.c.l.b16 %v504
  %v899 = vunpack.c.h.b16 %v504
  %v900 = vunpack.c.l.b16 %v505
  %v901 = vunpack.c.h.b16 %v505
  %v902 = vunpack.c.l.b16 %v506
  %v903 = vunpack.c.h.b16 %v506
  %v904 = vunpack.c.l.b16 %v507
  %v905 = vunpack.c.h.b16 %v507
  %v906 = vunpack.c.l.b16 %v508
  %v907 = vunpack.c.h.b16 %v508
  %v908 = vunpack.c.l.b16 %v509
  %v909 = vunpack.c.h.b16 %v509
  %v910 = vunpack.c.l.b16 %v510
  %v911 = vunpack.c.h.b16 %v510
  %v912 = vunpack.c.l.b16 %v511
  %v913 = vunpack.c.h.b16 %v511
  %v914 = vunpack.c.l.b16 %v512
  %v915 = vunpack.c.h.b16 %v512
  %v916 = vunpack.c.l.b16 %v513
  %v917 = vunpack.c.h.b16 %v513
  %v918 = vunpack.c.l.b16 %v514
  %v919 = vunpack.c.h.b16 %v514
  %v920 = vunpack.c.l.b16 %v515
  %v921 = vunpack.c.h.b16 %v515
  %v922 = vunpack.c.l.b16 %v516
  %v923 = vunpack.c.h.b16 %v516
  %v924 = vunpack.c.l.b16 %v517
  %v925 = vunpack.c.h.b16 %v517
  %v926 = vunpack.c.l.b16 %v518
  %v927 = vunpack.c.h.b16 %v518
  %v928 = vunpack.c.l.b16 %v519
  %v929 = vunpack.c.h.b16 %v519
  %v930 = vunpack.c.l.b16 %v520
  %v931 = vunpack.c.h.b16 %v520
  %v932 = vunpack.c.l.b16 %v521
  %v933 = vunpack.c.h.b16 %v521
  %v934 = vunpack.c.l.b16 %v522
  %v935 = vunpack.c.h.b16 %v522
  %v936 = vunpack.c.l.b16 %v523
  %v937 = vunpack.c.h.b16 %v523
  %v938 = vunpack.c.l.b16 %v524
  %v939 = vunpack.c.h.b16 %v524
  %v940 = vunpack.c.l.b16 %v525
  %v941 = vunpack.c.h.b16 %v525
  %v942 = vunpack.c.l.b16 %v526
  %v943 = vunpack.c.h.b16 %v526
  %v944 = vunpack.c.l.b16 %v527
  %v945 = vunpack.c.h.b16 %v527
  %v946 = vunpack.c.l.b16 %v528
  %v947 = vunpack.c.h.b16 %v528
  %v948 = vunpack.c.l.b16 %v529
  %v949 = vunpack.c.h.b16 %v529
  %v950 = vunpack.c.l.b16 %v530
  %v951 = vunpack.c.h.b16 %v530
  %v952 = vpack.c.b16 %v892, %v888
  %v953 = vpack.c.b16 %v893, %v889
  %v954 = vpack.c.b16 %v894, %v890
  %v955 = vpack.c.b16 %v895, %v891
  %v956 = vpack.c.b16 %v900, %v896
  %v957 = vpack.c.b16 %v901, %v897
  %v958 = vpack.c.b16 %v902, %v898
  %v959 = vpack.c.b16 %v903, %v899
  %v960 = vpack.c.b16 %v908, %v904
  %v961 = vpack.c.b16 %v909, %v905
  %v962 = vpack.c.b16 %v910, %v906
  %v963 = vpack.c.b16 %v911, %v907
  %v964 = vpack.c.b16 %v916, %v912
  %v965 = vpack.c.b16 %v917, %v913
  %v966 = vpack.c.b16 %v918, %v914
  %v967 = vpack.c.b16 %v919, %v915
  %v968 = vpack.c.b16 %v924, %v920
  %v969 = vpack.c.b16 %v925, %v921
  %v970 = vpack.c.b16 %v926, %v922
  %v971 = vpack.c.b16 %v927, %v923
  %v972 = vpack.c.b16 %v932, %v928
  %v973 = vpack.c.b16 %v933, %v929
  %v974 = vpack.c.b16 %v934, %v930
  %v975 = vpack.c.b16 %v935, %v931
  %v976 = vpack.c.b16 %v940, %v936
  %v977 = vpack.c.b16 %v941, %v937
  %v978 = vpack.c.b16 %v942, %v938
  %v979 = vpack.c.b16 %v943, %v939
  %v980 = vpack.c.b16 %v948, %v944
  %v981 = vpack.c.b16 %v949, %v945
  %v982 = vpack.c.b16 %v950, %v946
  %v983 = vpack.c.b16 %v951, %v947
  %1016 = vmatprep.subr.bf16.mxu0 %v953
  %1017 = vmatpush1.bf16.msra.mxu0 %v952
  %1018 = vmatprep.subr.bf16.mxu0 %v957
  %1019 = vmatpush1.bf16.msra.mxu0 %v956
  %1020 = vmatprep.subr.bf16.mxu0 %v961
  %1021 = vmatpush1.bf16.msra.mxu0 %v960
  %1022 = vmatprep.subr.bf16.mxu0 %v965
  %1023 = vmatpush1.bf16.msra.mxu0 %v964
  %1024 = vmatprep.subr.bf16.mxu0 %v969
  %1025 = vmatpush1.bf16.msra.mxu0 %v968
  %1026 = vmatprep.subr.bf16.mxu0 %v973
  %1027 = vmatpush1.bf16.msra.mxu0 %v972
  %1028 = vmatprep.subr.bf16.mxu0 %v977
  %1029 = vmatpush1.bf16.msra.mxu0 %v976
  %1030 = vmatprep.subr.bf16.mxu0 %v981
  %1031 = vmatpush1.bf16.msra.mxu0 %v980
  %1032 = vmatprep.subr.bf16.mxu0 0
  %1033 = vmatpush1.bf16.msra.mxu0 0
  %1034 = vmatprep.subr.bf16.mxu0 0
  %1035 = vmatpush1.bf16.msra.mxu0 0
  %1036 = vmatprep.subr.bf16.mxu0 0
  %1037 = vmatpush1.bf16.msra.mxu0 0
  %1038 = vmatprep.subr.bf16.mxu0 0
  %1039 = vmatpush1.bf16.msra.mxu0 0
  %1040 = vmatprep.subr.bf16.mxu0 0
  %1041 = vmatpush1.bf16.msra.mxu0 0
  %1042 = vmatprep.subr.bf16.mxu0 0
  %1043 = vmatpush1.bf16.msra.mxu0 0
  %1044 = vmatprep.subr.bf16.mxu0 0
  %1045 = vmatpush1.bf16.msra.mxu0 0
  %1046 = vmatprep.subr.bf16.mxu0 0
  %1047 = vmatpush1.bf16.msra.mxu0 0
  %1048 = vmatprep.mubr.bf16.mxu0 0
  %1049 = vmatmul.mubr.bf16.gmra.mrb[0].mxu0 0
  %v1050 = vpop.f32.mrb[0].mxu0
  %v1051 = vadd.f32 0.0, %v1050
  %v1052 = vpop.f32.mrb[0].mxu0
  %v1053 = vadd.f32 0.0, %v1052
  %v1054 = vpop.f32.mrb[0].mxu0
  %v1055 = vadd.f32 0.0, %v1054
  %v1056 = vpop.f32.mrb[0].mxu0
  %v1057 = vadd.f32 0.0, %v1056
  %1058 = vdwg.mxu0
  %1059 = vmatprep.subr.bf16.mxu0 %v955
  %1060 = vmatpush1.bf16.msra.mxu0 %v954
  %1061 = vmatprep.subr.bf16.mxu0 %v959
  %1062 = vmatpush1.bf16.msra.mxu0 %v958
  %1063 = vmatprep.subr.bf16.mxu0 %v963
  %1064 = vmatpush1.bf16.msra.mxu0 %v962
  %1065 = vmatprep.subr.bf16.mxu0 %v967
  %1066 = vmatpush1.bf16.msra.mxu0 %v966
  %1067 = vmatprep.subr.bf16.mxu0 %v971
  %1068 = vmatpush1.bf16.msra.mxu0 %v970
  %1069 = vmatprep.subr.bf16.mxu0 %v975
  %1070 = vmatpush1.bf16.msra.mxu0 %v974
  %1071 = vmatprep.subr.bf16.mxu0 %v979
  %1072 = vmatpush1.bf16.msra.mxu0 %v978
  %1073 = vmatprep.subr.bf16.mxu0 %v983
  %1074 = vmatpush1.bf16.msra.mxu0 %v982
  %1075 = vmatprep.subr.bf16.mxu0 0
  %1076 = vmatpush1.bf16.msra.mxu0 0
  %1077 = vmatprep.subr.bf16.mxu0 0
  %1078 = vmatpush1.bf16.msra.mxu0 0
  %1079 = vmatprep.subr.bf16.mxu0 0
  %1080 = vmatpush1.bf16.msra.mxu0 0
  %1081 = vmatprep.subr.bf16.mxu0 0
  %1082 = vmatpush1.bf16.msra.mxu0 0
  %1083 = vmatprep.subr.bf16.mxu0 0
  %1084 = vmatpush1.bf16.msra.mxu0 0
  %1085 = vmatprep.subr.bf16.mxu0 0
  %1086 = vmatpush1.bf16.msra.mxu0 0
  %1087 = vmatprep.subr.bf16.mxu0 0
  %1088 = vmatpush1.bf16.msra.mxu0 0
  %1089 = vmatprep.subr.bf16.mxu0 0
  %1090 = vmatpush1.bf16.msra.mxu0 0
  %1091 = vmatprep.mubr.bf16.mxu0 0
  %1092 = vmatmul.mubr.bf16.gmra.mrb[0].mxu0 0
  %v1093 = vpop.f32.mrb[0].mxu0
  %v1094 = vadd.f32 0.0, %v1093
  %v1095 = vpop.f32.mrb[0].mxu0
  %v1096 = vadd.f32 0.0, %v1095
  %v1097 = vpop.f32.mrb[0].mxu0
  %v1098 = vadd.f32 0.0, %v1097
  %v1099 = vpop.f32.mrb[0].mxu0
  %v1100 = vadd.f32 0.0, %v1099
  %1101 = vdwg.mxu0
  %v1134 = vunpack.c.l.b16 %v467
  %v1135 = vunpack.c.h.b16 %v467
  %v1136 = vunpack.c.l.b16 %v468
  %v1137 = vunpack.c.h.b16 %v468
  %v1138 = vunpack.c.l.b16 %v469
  %v1139 = vunpack.c.h.b16 %v469
  %v1140 = vunpack.c.l.b16 %v470
  %v1141 = vunpack.c.h.b16 %v470
  %v1142 = vunpack.c.l.b16 %v471
  %v1143 = vunpack.c.h.b16 %v471
  %v1144 = vunpack.c.l.b16 %v472
  %v1145 = vunpack.c.h.b16 %v472
  %v1146 = vunpack.c.l.b16 %v473
  %v1147 = vunpack.c.h.b16 %v473
  %v1148 = vunpack.c.l.b16 %v474
  %v1149 = vunpack.c.h.b16 %v474
  %v1150 = vunpack.c.l.b16 %v475
  %v1151 = vunpack.c.h.b16 %v475
  %v1152 = vunpack.c.l.b16 %v476
  %v1153 = vunpack.c.h.b16 %v476
  %v1154 = vunpack.c.l.b16 %v477
  %v1155 = vunpack.c.h.b16 %v477
  %v1156 = vunpack.c.l.b16 %v478
  %v1157 = vunpack.c.h.b16 %v478
  %v1158 = vunpack.c.l.b16 %v479
  %v1159 = vunpack.c.h.b16 %v479
  %v1160 = vunpack.c.l.b16 %v480
  %v1161 = vunpack.c.h.b16 %v480
  %v1162 = vunpack.c.l.b16 %v481
  %v1163 = vunpack.c.h.b16 %v481
  %v1164 = vunpack.c.l.b16 %v482
  %v1165 = vunpack.c.h.b16 %v482
  %v1166 = vunpack.c.l.b16 %v483
  %v1167 = vunpack.c.h.b16 %v483
  %v1168 = vunpack.c.l.b16 %v484
  %v1169 = vunpack.c.h.b16 %v484
  %v1170 = vunpack.c.l.b16 %v485
  %v1171 = vunpack.c.h.b16 %v485
  %v1172 = vunpack.c.l.b16 %v486
  %v1173 = vunpack.c.h.b16 %v486
  %v1174 = vunpack.c.l.b16 %v487
  %v1175 = vunpack.c.h.b16 %v487
  %v1176 = vunpack.c.l.b16 %v488
  %v1177 = vunpack.c.h.b16 %v488
  %v1178 = vunpack.c.l.b16 %v489
  %v1179 = vunpack.c.h.b16 %v489
  %v1180 = vunpack.c.l.b16 %v490
  %v1181 = vunpack.c.h.b16 %v490
  %v1182 = vunpack.c.l.b16 %v491
  %v1183 = vunpack.c.h.b16 %v491
  %v1184 = vunpack.c.l.b16 %v492
  %v1185 = vunpack.c.h.b16 %v492
  %v1186 = vunpack.c.l.b16 %v493
  %v1187 = vunpack.c.h.b16 %v493
  %v1188 = vunpack.c.l.b16 %v494
  %v1189 = vunpack.c.h.b16 %v494
  %v1190 = vunpack.c.l.b16 %v495
  %v1191 = vunpack.c.h.b16 %v495
  %v1192 = vunpack.c.l.b16 %v496
  %v1193 = vunpack.c.h.b16 %v496
  %v1194 = vunpack.c.l.b16 %v497
  %v1195 = vunpack.c.h.b16 %v497
  %v1196 = vunpack.c.l.b16 %v498
  %v1197 = vunpack.c.h.b16 %v498
  %v1198 = vpack.c.b16 %v1138, %v1134
  %v1199 = vpack.c.b16 %v1139, %v1135
  %v1200 = vpack.c.b16 %v1140, %v1136
  %v1201 = vpack.c.b16 %v1141, %v1137
  %v1202 = vpack.c.b16 %v1146, %v1142
  %v1203 = vpack.c.b16 %v1147, %v1143
  %v1204 = vpack.c.b16 %v1148, %v1144
  %v1205 = vpack.c.b16 %v1149, %v1145
  %v1206 = vpack.c.b16 %v1154, %v1150
  %v1207 = vpack.c.b16 %v1155, %v1151
  %v1208 = vpack.c.b16 %v1156, %v1152
  %v1209 = vpack.c.b16 %v1157, %v1153
  %v1210 = vpack.c.b16 %v1162, %v1158
  %v1211 = vpack.c.b16 %v1163, %v1159
  %v1212 = vpack.c.b16 %v1164, %v1160
  %v1213 = vpack.c.b16 %v1165, %v1161
  %v1214 = vpack.c.b16 %v1170, %v1166
  %v1215 = vpack.c.b16 %v1171, %v1167
  %v1216 = vpack.c.b16 %v1172, %v1168
  %v1217 = vpack.c.b16 %v1173, %v1169
  %v1218 = vpack.c.b16 %v1178, %v1174
  %v1219 = vpack.c.b16 %v1179, %v1175
  %v1220 = vpack.c.b16 %v1180, %v1176
  %v1221 = vpack.c.b16 %v1181, %v1177
  %v1222 = vpack.c.b16 %v1186, %v1182
  %v1223 = vpack.c.b16 %v1187, %v1183
  %v1224 = vpack.c.b16 %v1188, %v1184
  %v1225 = vpack.c.b16 %v1189, %v1185
  %v1226 = vpack.c.b16 %v1194, %v1190
  %v1227 = vpack.c.b16 %v1195, %v1191
  %v1228 = vpack.c.b16 %v1196, %v1192
  %v1229 = vpack.c.b16 %v1197, %v1193
  %1262 = vmatprep.subr.bf16.mxu0 %v1199
  %1263 = vmatpush1.bf16.msra.mxu0 %v1198
  %1264 = vmatprep.subr.bf16.mxu0 %v1203
  %1265 = vmatpush1.bf16.msra.mxu0 %v1202
  %1266 = vmatprep.subr.bf16.mxu0 %v1207
  %1267 = vmatpush1.bf16.msra.mxu0 %v1206
  %1268 = vmatprep.subr.bf16.mxu0 %v1211
  %1269 = vmatpush1.bf16.msra.mxu0 %v1210
  %1270 = vmatprep.subr.bf16.mxu0 %v1215
  %1271 = vmatpush1.bf16.msra.mxu0 %v1214
  %1272 = vmatprep.subr.bf16.mxu0 %v1219
  %1273 = vmatpush1.bf16.msra.mxu0 %v1218
  %1274 = vmatprep.subr.bf16.mxu0 %v1223
  %1275 = vmatpush1.bf16.msra.mxu0 %v1222
  %1276 = vmatprep.subr.bf16.mxu0 %v1227
  %1277 = vmatpush1.bf16.msra.mxu0 %v1226
  %1278 = vmatprep.subr.bf16.mxu0 0
  %1279 = vmatpush1.bf16.msra.mxu0 0
  %1280 = vmatprep.subr.bf16.mxu0 0
  %1281 = vmatpush1.bf16.msra.mxu0 0
  %1282 = vmatprep.subr.bf16.mxu0 0
  %1283 = vmatpush1.bf16.msra.mxu0 0
  %1284 = vmatprep.subr.bf16.mxu0 0
  %1285 = vmatpush1.bf16.msra.mxu0 0
  %1286 = vmatprep.subr.bf16.mxu0 0
  %1287 = vmatpush1.bf16.msra.mxu0 0
  %1288 = vmatprep.subr.bf16.mxu0 0
  %1289 = vmatpush1.bf16.msra.mxu0 0
  %1290 = vmatprep.subr.bf16.mxu0 0
  %1291 = vmatpush1.bf16.msra.mxu0 0
  %1292 = vmatprep.subr.bf16.mxu0 0
  %1293 = vmatpush1.bf16.msra.mxu0 0
  %1294 = vmatprep.mubr.bf16.mxu0 0
  %1295 = vmatmul.mubr.bf16.gmra.mrb[0].mxu0 %v855
  %v1296 = vpop.f32.mrb[0].mxu0
  %v1297 = vadd.f32 %v1051, %v1296
  %v1298 = vpop.f32.mrb[0].mxu0
  %v1299 = vadd.f32 %v1053, %v1298
  %v1300 = vpop.f32.mrb[0].mxu0
  %v1301 = vadd.f32 %v1055, %v1300
  %v1302 = vpop.f32.mrb[0].mxu0
  %v1303 = vadd.f32 %v1057, %v1302
  %1304 = vdwg.mxu0
  %1305 = vmatprep.subr.bf16.mxu0 %v1201
  %1306 = vmatpush1.bf16.msra.mxu0 %v1200
  %1307 = vmatprep.subr.bf16.mxu0 %v1205
  %1308 = vmatpush1.bf16.msra.mxu0 %v1204
  %1309 = vmatprep.subr.bf16.mxu0 %v1209
  %1310 = vmatpush1.bf16.msra.mxu0 %v1208
  %1311 = vmatprep.subr.bf16.mxu0 %v1213
  %1312 = vmatpush1.bf16.msra.mxu0 %v1212
  %1313 = vmatprep.subr.bf16.mxu0 %v1217
  %1314 = vmatpush1.bf16.msra.mxu0 %v1216
  %1315 = vmatprep.subr.bf16.mxu0 %v1221
  %1316 = vmatpush1.bf16.msra.mxu0 %v1220
  %1317 = vmatprep.subr.bf16.mxu0 %v1225
  %1318 = vmatpush1.bf16.msra.mxu0 %v1224
  %1319 = vmatprep.subr.bf16.mxu0 %v1229
  %1320 = vmatpush1.bf16.msra.mxu0 %v1228
  %1321 = vmatprep.subr.bf16.mxu0 0
  %1322 = vmatpush1.bf16.msra.mxu0 0
  %1323 = vmatprep.subr.bf16.mxu0 0
  %1324 = vmatpush1.bf16.msra.mxu0 0
  %1325 = vmatprep.subr.bf16.mxu0 0
  %1326 = vmatpush1.bf16.msra.mxu0 0
  %1327 = vmatprep.subr.bf16.mxu0 0
  %1328 = vmatpush1.bf16.msra.mxu0 0
  %1329 = vmatprep.subr.bf16.mxu0 0
  %1330 = vmatpush1.bf16.msra.mxu0 0
  %1331 = vmatprep.subr.bf16.mxu0 0
  %1332 = vmatpush1.bf16.msra.mxu0 0
  %1333 = vmatprep.subr.bf16.mxu0 0
  %1334 = vmatpush1.bf16.msra.mxu0 0
  %1335 = vmatprep.subr.bf16.mxu0 0
  %1336 = vmatpush1.bf16.msra.mxu0 0
  %1337 = vmatprep.mubr.bf16.mxu0 0
  %1338 = vmatmul.mubr.bf16.gmra.mrb[0].mxu0 %v855
  %v1339 = vpop.f32.mrb[0].mxu0
  %v1340 = vadd.f32 %v1094, %v1339
  %v1341 = vpop.f32.mrb[0].mxu0
  %v1342 = vadd.f32 %v1096, %v1341
  %v1343 = vpop.f32.mrb[0].mxu0
  %v1344 = vadd.f32 %v1098, %v1343
  %v1345 = vpop.f32.mrb[0].mxu0
  %v1346 = vadd.f32 %v1100, %v1345
  %1347 = vdwg.mxu0
  %v1348 = vadd.f32 %v1297, %v537
  %v1349 = vadd.f32 %v1299, %v541
  %v1350 = vadd.f32 %v1340, %v545
  %v1351 = vadd.f32 %v1342, %v549
  %v1352 = vadd.f32 %v1301, %v537
  %v1353 = vadd.f32 %v1303, %v541
  %v1354 = vadd.f32 %v1344, %v545
  %v1355 = vadd.f32 %v1346, %v549
  %v1356 = vmul.f32 %v1348, 0.5
  %v1357 = vmul.f32 %v1352, 0.5
  %v1358 = vtanh.pop %v1356
  %v1359 = vtanh.pop %v1357
  %v1360 = vmul.f32 %v1358, 0.5
  %v1361 = vmul.f32 %v1359, 0.5
  %v1362 = vadd.f32 %v1360, 0.5
  %v1363 = vadd.f32 %v1361, 0.5
  %v1364 = vmul.f32 %v1349, 0.5
  %v1365 = vmul.f32 %v1353, 0.5
  %v1366 = vtanh.pop %v1364
  %v1367 = vtanh.pop %v1365
  %v1368 = vmul.f32 %v1366, 0.5
  %v1369 = vmul.f32 %v1367, 0.5
  %v1370 = vadd.f32 %v1368, 0.5
  %v1371 = vadd.f32 %v1369, 0.5
  %v1372 = vtanh.pop %v1350
  %v1373 = vtanh.pop %v1354
  %v1374 = vmul.f32 %v1351, 0.5
  %v1375 = vmul.f32 %v1355, 0.5
  %v1376 = vtanh.pop %v1374
  %v1377 = vtanh.pop %v1375
  %v1378 = vmul.f32 %v1376, 0.5
  %v1379 = vmul.f32 %v1377, 0.5
  %v1380 = vadd.f32 %v1378, 0.5
  %v1381 = vadd.f32 %v1379, 0.5
  %v1382 = vmul.f32 %v1370, 0.0
  %v1383 = vmul.f32 %v1371, 0.0
  %v1384 = vmul.f32 %v1362, %v1372
  %v1385 = vmul.f32 %v1363, %v1373
  %v1386 = vadd.f32 %v1382, %v1384
  %v1387 = vadd.f32 %v1383, %v1385
  %v1388 = vtanh.pop %v1386
  %v1389 = vtanh.pop %v1387
  %v1390 = vmul.f32 %v1380, %v1388
  %v1391 = vmul.f32 %v1381, %v1389
  %v1392 = vpack.c.bf16 %v1391, %v1390
  %s1393 = smul.u32 2, 4
  %s1394 = smul.addr %s1393, 8
  %s1395 = scalar_lea.vmem [#allocation2], %s1394
  %v1396 = vld [vmem:[%s1395] sm:$0xff]
  %v1397 = vld [vmem:[%s1395 + $0x8] sm:$0xff]
  %v1398 = vld [vmem:[%s1395 + $0x10] sm:$0xff]
  %v1399 = vld [vmem:[%s1395 + $0x18] sm:$0xff]
  %v1400 = vld [vmem:[%s1395 + $0x20] sm:$0xff]
  %v1401 = vld [vmem:[%s1395 + $0x28] sm:$0xff]
  %v1402 = vld [vmem:[%s1395 + $0x30] sm:$0xff]
  %v1403 = vld [vmem:[%s1395 + $0x38] sm:$0xff]
  %1404 = vmatprep.subr.bf16.mxu0 %v662
  %1405 = vmatpush1.bf16.msra.mxu0 %v661
  %1406 = vmatprep.subr.bf16.mxu0 %v666
  %1407 = vmatpush1.bf16.msra.mxu0 %v665
  %1408 = vmatprep.subr.bf16.mxu0 %v670
  %1409 = vmatpush1.bf16.msra.mxu0 %v669
  %1410 = vmatprep.subr.bf16.mxu0 %v674
  %1411 = vmatpush1.bf16.msra.mxu0 %v673
  %1412 = vmatprep.subr.bf16.mxu0 %v678
  %1413 = vmatpush1.bf16.msra.mxu0 %v677
  %1414 = vmatprep.subr.bf16.mxu0 %v682
  %1415 = vmatpush1.bf16.msra.mxu0 %v681
  %1416 = vmatprep.subr.bf16.mxu0 %v686
  %1417 = vmatpush1.bf16.msra.mxu0 %v685
  %1418 = vmatprep.subr.bf16.mxu0 %v690
  %1419 = vmatpush1.bf16.msra.mxu0 %v689
  %1420 = vmatprep.subr.bf16.mxu0 0
  %1421 = vmatpush1.bf16.msra.mxu0 0
  %1422 = vmatprep.subr.bf16.mxu0 0
  %1423 = vmatpush1.bf16.msra.mxu0 0
  %1424 = vmatprep.subr.bf16.mxu0 0
  %1425 = vmatpush1.bf16.msra.mxu0 0
  %1426 = vmatprep.subr.bf16.mxu0 0
  %1427 = vmatpush1.bf16.msra.mxu0 0
  %1428 = vmatprep.subr.bf16.mxu0 0
  %1429 = vmatpush1.bf16.msra.mxu0 0
  %1430 = vmatprep.subr.bf16.mxu0 0
  %1431 = vmatpush1.bf16.msra.mxu0 0
  %1432 = vmatprep.subr.bf16.mxu0 0
  %1433 = vmatpush1.bf16.msra.mxu0 0
  %1434 = vmatprep.subr.bf16.mxu0 0
  %1435 = vmatpush1.bf16.msra.mxu0 0
  %1436 = vmatprep.mubr.bf16.mxu0 0
  %1437 = vmatmul.mubr.bf16.gmra.mrb[0].mxu0 %v855
  %v1438 = vpop.f32.mrb[0].mxu0
  %v1439 = vadd.f32 0.0, %v1438
  %v1440 = vpop.f32.mrb[0].mxu0
  %v1441 = vadd.f32 0.0, %v1440
  %v1442 = vpop.f32.mrb[0].mxu0
  %v1443 = vadd.f32 0.0, %v1442
  %v1444 = vpop.f32.mrb[0].mxu0
  %v1445 = vadd.f32 0.0, %v1444
  %1446 = vdwg.mxu0
  %1447 = vmatprep.subr.bf16.mxu0 %v664
  %1448 = vmatpush1.bf16.msra.mxu0 %v663
  %1449 = vmatprep.subr.bf16.mxu0 %v668
  %1450 = vmatpush1.bf16.msra.mxu0 %v667
  %1451 = vmatprep.subr.bf16.mxu0 %v672
  %1452 = vmatpush1.bf16.msra.mxu0 %v671
  %1453 = vmatprep.subr.bf16.mxu0 %v676
  %1454 = vmatpush1.bf16.msra.mxu0 %v675
  %1455 = vmatprep.subr.bf16.mxu0 %v680
  %1456 = vmatpush1.bf16.msra.mxu0 %v679
  %1457 = vmatprep.subr.bf16.mxu0 %v684
  %1458 = vmatpush1.bf16.msra.mxu0 %v683
  %1459 = vmatprep.subr.bf16.mxu0 %v688
  %1460 = vmatpush1.bf16.msra.mxu0 %v687
  %1461 = vmatprep.subr.bf16.mxu0 %v692
  %1462 = vmatpush1.bf16.msra.mxu0 %v691
  %1463 = vmatprep.subr.bf16.mxu0 0
  %1464 = vmatpush1.bf16.msra.mxu0 0
  %1465 = vmatprep.subr.bf16.mxu0 0
  %1466 = vmatpush1.bf16.msra.mxu0 0
  %1467 = vmatprep.subr.bf16.mxu0 0
  %1468 = vmatpush1.bf16.msra.mxu0 0
  %1469 = vmatprep.subr.bf16.mxu0 0
  %1470 = vmatpush1.bf16.msra.mxu0 0
  %1471 = vmatprep.subr.bf16.mxu0 0
  %1472 = vmatpush1.bf16.msra.mxu0 0
  %1473 = vmatprep.subr.bf16.mxu0 0
  %1474 = vmatpush1.bf16.msra.mxu0 0
  %1475 = vmatprep.subr.bf16.mxu0 0
  %1476 = vmatpush1.bf16.msra.mxu0 0
  %1477 = vmatprep.subr.bf16.mxu0 0
  %1478 = vmatpush1.bf16.msra.mxu0 0
  %1479 = vmatprep.mubr.bf16.mxu0 0
  %1480 = vmatmul.mubr.bf16.gmra.mrb[0].mxu0 %v855
  %v1481 = vpop.f32.mrb[0].mxu0
  %v1482 = vadd.f32 0.0, %v1481
  %v1483 = vpop.f32.mrb[0].mxu0
  %v1484 = vadd.f32 0.0, %v1483
  %v1485 = vpop.f32.mrb[0].mxu0
  %v1486 = vadd.f32 0.0, %v1485
  %v1487 = vpop.f32.mrb[0].mxu0
  %v1488 = vadd.f32 0.0, %v1487
  %1489 = vdwg.mxu0
  %v1490 = vadd.f32 %v1396, %v1439
  %v1491 = vadd.f32 %v1397, %v1441
  %v1492 = vadd.f32 %v1398, %v1482
  %v1493 = vadd.f32 %v1399, %v1484
  %v1494 = vadd.f32 %v1400, %v1443
  %v1495 = vadd.f32 %v1401, %v1445
  %v1496 = vadd.f32 %v1402, %v1486
  %v1497 = vadd.f32 %v1403, %v1488
  %v1498 = vmul.f32 %v1490, 0.5
  %v1499 = vmul.f32 %v1494, 0.5
  %v1500 = vtanh.pop %v1498
  %v1501 = vtanh.pop %v1499
  %v1502 = vmul.f32 %v1500, 0.5
  %v1503 = vmul.f32 %v1501, 0.5
  %v1504 = vadd.f32 %v1502, 0.5
  %v1505 = vadd.f32 %v1503, 0.5
  %v1506 = vmul.f32 %v1491, 0.5
  %v1507 = vmul.f32 %v1495, 0.5
  %v1508 = vtanh.pop %v1506
  %v1509 = vtanh.pop %v1507
  %v1510 = vmul.f32 %v1508, 0.5
  %v1511 = vmul.f32 %v1509, 0.5
  %v1512 = vadd.f32 %v1510, 0.5
  %v1513 = vadd.f32 %v1511, 0.5
  %v1514 = vtanh.pop %v1492
  %v1515 = vtanh.pop %v1496
  %v1516 = vmul.f32 %v1493, 0.5
  %v1517 = vmul.f32 %v1497, 0.5
  %v1518 = vtanh.pop %v1516
  %v1519 = vtanh.pop %v1517
  %v1520 = vmul.f32 %v1518, 0.5
  %v1521 = vmul.f32 %v1519, 0.5
  %v1522 = vadd.f32 %v1520, 0.5
  %v1523 = vadd.f32 %v1521, 0.5
  %v1524 = vmul.f32 %v1512, %v849
  %v1525 = vmul.f32 %v1513, %v850
  %v1526 = vmul.f32 %v1504, %v1514
  %v1527 = vmul.f32 %v1505, %v1515
  %v1528 = vadd.f32 %v1524, %v1526
  %v1529 = vadd.f32 %v1525, %v1527
  %v1530 = vtanh.pop %v1528
  %v1531 = vtanh.pop %v1529
  %v1532 = vmul.f32 %v1522, %v1530
  %v1533 = vmul.f32 %v1523, %v1531
  %v1534 = vpack.c.bf16 %v1533, %v1532
  %1535 = vmatprep.subr.bf16.mxu0 %v953
  %1536 = vmatpush1.bf16.msra.mxu0 %v952
  %1537 = vmatprep.subr.bf16.mxu0 %v957
  %1538 = vmatpush1.bf16.msra.mxu0 %v956
  %1539 = vmatprep.subr.bf16.mxu0 %v961
  %1540 = vmatpush1.bf16.msra.mxu0 %v960
  %1541 = vmatprep.subr.bf16.mxu0 %v965
  %1542 = vmatpush1.bf16.msra.mxu0 %v964
  %1543 = vmatprep.subr.bf16.mxu0 %v969
  %1544 = vmatpush1.bf16.msra.mxu0 %v968
  %1545 = vmatprep.subr.bf16.mxu0 %v973
  %1546 = vmatpush1.bf16.msra.mxu0 %v972
  %1547 = vmatprep.subr.bf16.mxu0 %v977
  %1548 = vmatpush1.bf16.msra.mxu0 %v976
  %1549 = vmatprep.subr.bf16.mxu0 %v981
  %1550 = vmatpush1.bf16.msra.mxu0 %v980
  %1551 = vmatprep.subr.bf16.mxu0 0
  %1552 = vmatpush1.bf16.msra.mxu0 0
  %1553 = vmatprep.subr.bf16.mxu0 0
  %1554 = vmatpush1.bf16.msra.mxu0 0
  %1555 = vmatprep.subr.bf16.mxu0 0
  %1556 = vmatpush1.bf16.msra.mxu0 0
  %1557 = vmatprep.subr.bf16.mxu0 0
  %1558 = vmatpush1.bf16.msra.mxu0 0
  %1559 = vmatprep.subr.bf16.mxu0 0
  %1560 = vmatpush1.bf16.msra.mxu0 0
  %1561 = vmatprep.subr.bf16.mxu0 0
  %1562 = vmatpush1.bf16.msra.mxu0 0
  %1563 = vmatprep.subr.bf16.mxu0 0
  %1564 = vmatpush1.bf16.msra.mxu0 0
  %1565 = vmatprep.subr.bf16.mxu0 0
  %1566 = vmatpush1.bf16.msra.mxu0 0
  %1567 = vmatprep.mubr.bf16.mxu0 0
  %1568 = vmatmul.mubr.bf16.gmra.mrb[0].mxu0 %v1392
  %v1569 = vpop.f32.mrb[0].mxu0
  %v1570 = vadd.f32 0.0, %v1569
  %v1571 = vpop.f32.mrb[0].mxu0
  %v1572 = vadd.f32 0.0, %v1571
  %v1573 = vpop.f32.mrb[0].mxu0
  %v1574 = vadd.f32 0.0, %v1573
  %v1575 = vpop.f32.mrb[0].mxu0
  %v1576 = vadd.f32 0.0, %v1575
  %1577 = vdwg.mxu0
  %1578 = vmatprep.subr.bf16.mxu0 %v955
  %1579 = vmatpush1.bf16.msra.mxu0 %v954
  %1580 = vmatprep.subr.bf16.mxu0 %v959
  %1581 = vmatpush1.bf16.msra.mxu0 %v958
  %1582 = vmatprep.subr.bf16.mxu0 %v963
  %1583 = vmatpush1.bf16.msra.mxu0 %v962
  %1584 = vmatprep.subr.bf16.mxu0 %v967
  %1585 = vmatpush1.bf16.msra.mxu0 %v966
  %1586 = vmatprep.subr.bf16.mxu0 %v971
  %1587 = vmatpush1.bf16.msra.mxu0 %v970
  %1588 = vmatprep.subr.bf16.mxu0 %v975
  %1589 = vmatpush1.bf16.msra.mxu0 %v974
  %1590 = vmatprep.subr.bf16.mxu0 %v979
  %1591 = vmatpush1.bf16.msra.mxu0 %v978
  %1592 = vmatprep.subr.bf16.mxu0 %v983
  %1593 = vmatpush1.bf16.msra.mxu0 %v982
  %1594 = vmatprep.subr.bf16.mxu0 0
  %1595 = vmatpush1.bf16.msra.mxu0 0
  %1596 = vmatprep.subr.bf16.mxu0 0
  %1597 = vmatpush1.bf16.msra.mxu0 0
  %1598 = vmatprep.subr.bf16.mxu0 0
  %1599 = vmatpush1.bf16.msra.mxu0 0
  %1600 = vmatprep.subr.bf16.mxu0 0
  %1601 = vmatpush1.bf16.msra.mxu0 0
  %1602 = vmatprep.subr.bf16.mxu0 0
  %1603 = vmatpush1.bf16.msra.mxu0 0
  %1604 = vmatprep.subr.bf16.mxu0 0
  %1605 = vmatpush1.bf16.msra.mxu0 0
  %1606 = vmatprep.subr.bf16.mxu0 0
  %1607 = vmatpush1.bf16.msra.mxu0 0
  %1608 = vmatprep.subr.bf16.mxu0 0
  %1609 = vmatpush1.bf16.msra.mxu0 0
  %1610 = vmatprep.mubr.bf16.mxu0 0
  %1611 = vmatmul.mubr.bf16.gmra.mrb[0].mxu0 %v1392
  %v1612 = vpop.f32.mrb[0].mxu0
  %v1613 = vadd.f32 0.0, %v1612
  %v1614 = vpop.f32.mrb[0].mxu0
  %v1615 = vadd.f32 0.0, %v1614
  %v1616 = vpop.f32.mrb[0].mxu0
  %v1617 = vadd.f32 0.0, %v1616
  %v1618 = vpop.f32.mrb[0].mxu0
  %v1619 = vadd.f32 0.0, %v1618
  %1620 = vdwg.mxu0
  %1621 = vmatprep.subr.bf16.mxu0 %v1199
  %1622 = vmatpush1.bf16.msra.mxu0 %v1198
  %1623 = vmatprep.subr.bf16.mxu0 %v1203
  %1624 = vmatpush1.bf16.msra.mxu0 %v1202
  %1625 = vmatprep.subr.bf16.mxu0 %v1207
  %1626 = vmatpush1.bf16.msra.mxu0 %v1206
  %1627 = vmatprep.subr.bf16.mxu0 %v1211
  %1628 = vmatpush1.bf16.msra.mxu0 %v1210
  %1629 = vmatprep.subr.bf16.mxu0 %v1215
  %1630 = vmatpush1.bf16.msra.mxu0 %v1214
  %1631 = vmatprep.subr.bf16.mxu0 %v1219
  %1632 = vmatpush1.bf16.msra.mxu0 %v1218
  %1633 = vmatprep.subr.bf16.mxu0 %v1223
  %1634 = vmatpush1.bf16.msra.mxu0 %v1222
  %1635 = vmatprep.subr.bf16.mxu0 %v1227
  %1636 = vmatpush1.bf16.msra.mxu0 %v1226
  %1637 = vmatprep.subr.bf16.mxu0 0
  %1638 = vmatpush1.bf16.msra.mxu0 0
  %1639 = vmatprep.subr.bf16.mxu0 0
  %1640 = vmatpush1.bf16.msra.mxu0 0
  %1641 = vmatprep.subr.bf16.mxu0 0
  %1642 = vmatpush1.bf16.msra.mxu0 0
  %1643 = vmatprep.subr.bf16.mxu0 0
  %1644 = vmatpush1.bf16.msra.mxu0 0
  %1645 = vmatprep.subr.bf16.mxu0 0
  %1646 = vmatpush1.bf16.msra.mxu0 0
  %1647 = vmatprep.subr.bf16.mxu0 0
  %1648 = vmatpush1.bf16.msra.mxu0 0
  %1649 = vmatprep.subr.bf16.mxu0 0
  %1650 = vmatpush1.bf16.msra.mxu0 0
  %1651 = vmatprep.subr.bf16.mxu0 0
  %1652 = vmatpush1.bf16.msra.mxu0 0
  %1653 = vmatprep.mubr.bf16.mxu0 0
  %1654 = vmatmul.mubr.bf16.gmra.mrb[0].mxu0 %v1534
  %v1655 = vpop.f32.mrb[0].mxu0
  %v1656 = vadd.f32 %v1570, %v1655
  %v1657 = vpop.f32.mrb[0].mxu0
  %v1658 = vadd.f32 %v1572, %v1657
  %v1659 = vpop.f32.mrb[0].mxu0
  %v1660 = vadd.f32 %v1574, %v1659
  %v1661 = vpop.f32.mrb[0].mxu0
  %v1662 = vadd.f32 %v1576, %v1661
  %1663 = vdwg.mxu0
  %1664 = vmatprep.subr.bf16.mxu0 %v1201
  %1665 = vmatpush1.bf16.msra.mxu0 %v1200
  %1666 = vmatprep.subr.bf16.mxu0 %v1205
  %1667 = vmatpush1.bf16.msra.mxu0 %v1204
  %1668 = vmatprep.subr.bf16.mxu0 %v1209
  %1669 = vmatpush1.bf16.msra.mxu0 %v1208
  %1670 = vmatprep.subr.bf16.mxu0 %v1213
  %1671 = vmatpush1.bf16.msra.mxu0 %v1212
  %1672 = vmatprep.subr.bf16.mxu0 %v1217
  %1673 = vmatpush1.bf16.msra.mxu0 %v1216
  %1674 = vmatprep.subr.bf16.mxu0 %v1221
  %1675 = vmatpush1.bf16.msra.mxu0 %v1220
  %1676 = vmatprep.subr.bf16.mxu0 %v1225
  %1677 = vmatpush1.bf16.msra.mxu0 %v1224
  %1678 = vmatprep.subr.bf16.mxu0 %v1229
  %1679 = vmatpush1.bf16.msra.mxu0 %v1228
  %1680 = vmatprep.subr.bf16.mxu0 0
  %1681 = vmatpush1.bf16.msra.mxu0 0
  %1682 = vmatprep.subr.bf16.mxu0 0
  %1683 = vmatpush1.bf16.msra.mxu0 0
  %1684 = vmatprep.subr.bf16.mxu0 0
  %1685 = vmatpush1.bf16.msra.mxu0 0
  %1686 = vmatprep.subr.bf16.mxu0 0
  %1687 = vmatpush1.bf16.msra.mxu0 0
  %1688 = vmatprep.subr.bf16.mxu0 0
  %1689 = vmatpush1.bf16.msra.mxu0 0
  %1690 = vmatprep.subr.bf16.mxu0 0
  %1691 = vmatpush1.bf16.msra.mxu0 0
  %1692 = vmatprep.subr.bf16.mxu0 0
  %1693 = vmatpush1.bf16.msra.mxu0 0
  %1694 = vmatprep.subr.bf16.mxu0 0
  %1695 = vmatpush1.bf16.msra.mxu0 0
  %1696 = vmatprep.mubr.bf16.mxu0 0
  %1697 = vmatmul.mubr.bf16.gmra.mrb[0].mxu0 %v1534
  %v1698 = vpop.f32.mrb[0].mxu0
  %v1699 = vadd.f32 %v1613, %v1698
  %v1700 = vpop.f32.mrb[0].mxu0
  %v1701 = vadd.f32 %v1615, %v1700
  %v1702 = vpop.f32.mrb[0].mxu0
  %v1703 = vadd.f32 %v1617, %v1702
  %v1704 = vpop.f32.mrb[0].mxu0
  %v1705 = vadd.f32 %v1619, %v1704
  %1706 = vdwg.mxu0
  %v1707 = vadd.f32 %v1656, %v537
  %v1708 = vadd.f32 %v1658, %v541
  %v1709 = vadd.f32 %v1699, %v545
  %v1710 = vadd.f32 %v1701, %v549
  %v1711 = vadd.f32 %v1660, %v537
  %v1712 = vadd.f32 %v1662, %v541
  %v1713 = vadd.f32 %v1703, %v545
  %v1714 = vadd.f32 %v1705, %v549
  %v1715 = vmul.f32 %v1707, 0.5
  %v1716 = vmul.f32 %v1711, 0.5
  %v1717 = vtanh.pop %v1715
  %v1718 = vtanh.pop %v1716
  %v1719 = vmul.f32 %v1717, 0.5
  %v1720 = vmul.f32 %v1718, 0.5
  %v1721 = vadd.f32 %v1719, 0.5
  %v1722 = vadd.f32 %v1720, 0.5
  %v1723 = vmul.f32 %v1708, 0.5
  %v1724 = vmul.f32 %v1712, 0.5
  %v1725 = vtanh.pop %v1723
  %v1726 = vtanh.pop %v1724
  %v1727 = vmul.f32 %v1725, 0.5
  %v1728 = vmul.f32 %v1726, 0.5
  %v1729 = vadd.f32 %v1727, 0.5
  %v1730 = vadd.f32 %v1728, 0.5
  %v1731 = vtanh.pop %v1709
  %v1732 = vtanh.pop %v1713
  %v1733 = vmul.f32 %v1710, 0.5
  %v1734 = vmul.f32 %v1714, 0.5
  %v1735 = vtanh.pop %v1733
  %v1736 = vtanh.pop %v1734
  %v1737 = vmul.f32 %v1735, 0.5
  %v1738 = vmul.f32 %v1736, 0.5
  %v1739 = vadd.f32 %v1737, 0.5
  %v1740 = vadd.f32 %v1738, 0.5
  %v1741 = vmul.f32 %v1729, %v1386
  %v1742 = vmul.f32 %v1730, %v1387
  %v1743 = vmul.f32 %v1721, %v1731
  %v1744 = vmul.f32 %v1722, %v1732
  %v1745 = vadd.f32 %v1741, %v1743
  %v1746 = vadd.f32 %v1742, %v1744
  %v1747 = vtanh.pop %v1745
  %v1748 = vtanh.pop %v1746
  %v1749 = vmul.f32 %v1739, %v1747
  %v1750 = vmul.f32 %v1740, %v1748
  %v1751 = vpack.c.bf16 %v1750, %v1749
  %s1752 = smul.u32 4, 4
  %s1753 = smul.addr %s1752, 8
  %s1754 = scalar_lea.vmem [#allocation2], %s1753
  %v1755 = vld [vmem:[%s1754] sm:$0xff]
  %v1756 = vld [vmem:[%s1754 + $0x8] sm:$0xff]
  %v1757 = vld [vmem:[%s1754 + $0x10] sm:$0xff]
  %v1758 = vld [vmem:[%s1754 + $0x18] sm:$0xff]
  %v1759 = vld [vmem:[%s1754 + $0x20] sm:$0xff]
  %v1760 = vld [vmem:[%s1754 + $0x28] sm:$0xff]
  %v1761 = vld [vmem:[%s1754 + $0x30] sm:$0xff]
  %v1762 = vld [vmem:[%s1754 + $0x38] sm:$0xff]
  %1763 = vmatprep.subr.bf16.mxu0 %v662
  %1764 = vmatpush1.bf16.msra.mxu0 %v661
  %1765 = vmatprep.subr.bf16.mxu0 %v666
  %1766 = vmatpush1.bf16.msra.mxu0 %v665
  %1767 = vmatprep.subr.bf16.mxu0 %v670
  %1768 = vmatpush1.bf16.msra.mxu0 %v669
  %1769 = vmatprep.subr.bf16.mxu0 %v674
  %1770 = vmatpush1.bf16.msra.mxu0 %v673
  %1771 = vmatprep.subr.bf16.mxu0 %v678
  %1772 = vmatpush1.bf16.msra.mxu0 %v677
  %1773 = vmatprep.subr.bf16.mxu0 %v682
  %1774 = vmatpush1.bf16.msra.mxu0 %v681
  %1775 = vmatprep.subr.bf16.mxu0 %v686
  %1776 = vmatpush1.bf16.msra.mxu0 %v685
  %1777 = vmatprep.subr.bf16.mxu0 %v690
  %1778 = vmatpush1.bf16.msra.mxu0 %v689
  %1779 = vmatprep.subr.bf16.mxu0 0
  %1780 = vmatpush1.bf16.msra.mxu0 0
  %1781 = vmatprep.subr.bf16.mxu0 0
  %1782 = vmatpush1.bf16.msra.mxu0 0
  %1783 = vmatprep.subr.bf16.mxu0 0
  %1784 = vmatpush1.bf16.msra.mxu0 0
  %1785 = vmatprep.subr.bf16.mxu0 0
  %1786 = vmatpush1.bf16.msra.mxu0 0
  %1787 = vmatprep.subr.bf16.mxu0 0
  %1788 = vmatpush1.bf16.msra.mxu0 0
  %1789 = vmatprep.subr.bf16.mxu0 0
  %1790 = vmatpush1.bf16.msra.mxu0 0
  %1791 = vmatprep.subr.bf16.mxu0 0
  %1792 = vmatpush1.bf16.msra.mxu0 0
  %1793 = vmatprep.subr.bf16.mxu0 0
  %1794 = vmatpush1.bf16.msra.mxu0 0
  %1795 = vmatprep.mubr.bf16.mxu0 0
  %1796 = vmatmul.mubr.bf16.gmra.mrb[0].mxu0 %v1534
  %v1797 = vpop.f32.mrb[0].mxu0
  %v1798 = vadd.f32 0.0, %v1797
  %v1799 = vpop.f32.mrb[0].mxu0
  %v1800 = vadd.f32 0.0, %v1799
  %v1801 = vpop.f32.mrb[0].mxu0
  %v1802 = vadd.f32 0.0, %v1801
  %v1803 = vpop.f32.mrb[0].mxu0
  %v1804 = vadd.f32 0.0, %v1803
  %1805 = vdwg.mxu0
  %1806 = vmatprep.subr.bf16.mxu0 %v664
  %1807 = vmatpush1.bf16.msra.mxu0 %v663
  %1808 = vmatprep.subr.bf16.mxu0 %v668
  %1809 = vmatpush1.bf16.msra.mxu0 %v667
  %1810 = vmatprep.subr.bf16.mxu0 %v672
  %1811 = vmatpush1.bf16.msra.mxu0 %v671
  %1812 = vmatprep.subr.bf16.mxu0 %v676
  %1813 = vmatpush1.bf16.msra.mxu0 %v675
  %1814 = vmatprep.subr.bf16.mxu0 %v680
  %1815 = vmatpush1.bf16.msra.mxu0 %v679
  %1816 = vmatprep.subr.bf16.mxu0 %v684
  %1817 = vmatpush1.bf16.msra.mxu0 %v683
  %1818 = vmatprep.subr.bf16.mxu0 %v688
  %1819 = vmatpush1.bf16.msra.mxu0 %v687
  %1820 = vmatprep.subr.bf16.mxu0 %v692
  %1821 = vmatpush1.bf16.msra.mxu0 %v691
  %1822 = vmatprep.subr.bf16.mxu0 0
  %1823 = vmatpush1.bf16.msra.mxu0 0
  %1824 = vmatprep.subr.bf16.mxu0 0
  %1825 = vmatpush1.bf16.msra.mxu0 0
  %1826 = vmatprep.subr.bf16.mxu0 0
  %1827 = vmatpush1.bf16.msra.mxu0 0
  %1828 = vmatprep.subr.bf16.mxu0 0
  %1829 = vmatpush1.bf16.msra.mxu0 0
  %1830 = vmatprep.subr.bf16.mxu0 0
  %1831 = vmatpush1.bf16.msra.mxu0 0
  %1832 = vmatprep.subr.bf16.mxu0 0
  %1833 = vmatpush1.bf16.msra.mxu0 0
  %1834 = vmatprep.subr.bf16.mxu0 0
  %1835 = vmatpush1.bf16.msra.mxu0 0
  %1836 = vmatprep.subr.bf16.mxu0 0
  %1837 = vmatpush1.bf16.msra.mxu0 0
  %1838 = vmatprep.mubr.bf16.mxu0 0
  %1839 = vmatmul.mubr.bf16.gmra.mrb[0].mxu0 %v1534
  %v1840 = vpop.f32.mrb[0].mxu0
  %v1841 = vadd.f32 0.0, %v1840
  %v1842 = vpop.f32.mrb[0].mxu0
  %v1843 = vadd.f32 0.0, %v1842
  %v1844 = vpop.f32.mrb[0].mxu0
  %v1845 = vadd.f32 0.0, %v1844
  %v1846 = vpop.f32.mrb[0].mxu0
  %v1847 = vadd.f32 0.0, %v1846
  %1848 = vdwg.mxu0
  %v1849 = vadd.f32 %v1755, %v1798
  %v1850 = vadd.f32 %v1756, %v1800
  %v1851 = vadd.f32 %v1757, %v1841
  %v1852 = vadd.f32 %v1758, %v1843
  %v1853 = vadd.f32 %v1759, %v1802
  %v1854 = vadd.f32 %v1760, %v1804
  %v1855 = vadd.f32 %v1761, %v1845
  %v1856 = vadd.f32 %v1762, %v1847
  %v1857 = vmul.f32 %v1849, 0.5
  %v1858 = vmul.f32 %v1853, 0.5
  %v1859 = vtanh.pop %v1857
  %v1860 = vtanh.pop %v1858
  %v1861 = vmul.f32 %v1859, 0.5
  %v1862 = vmul.f32 %v1860, 0.5
  %v1863 = vadd.f32 %v1861, 0.5
  %v1864 = vadd.f32 %v1862, 0.5
  %v1865 = vmul.f32 %v1850, 0.5
  %v1866 = vmul.f32 %v1854, 0.5
  %v1867 = vtanh.pop %v1865
  %v1868 = vtanh.pop %v1866
  %v1869 = vmul.f32 %v1867, 0.5
  %v1870 = vmul.f32 %v1868, 0.5
  %v1871 = vadd.f32 %v1869, 0.5
  %v1872 = vadd.f32 %v1870, 0.5
  %v1873 = vtanh.pop %v1851
  %v1874 = vtanh.pop %v1855
  %v1875 = vmul.f32 %v1852, 0.5
  %v1876 = vmul.f32 %v1856, 0.5
  %v1877 = vtanh.pop %v1875
  %v1878 = vtanh.pop %v1876
  %v1879 = vmul.f32 %v1877, 0.5
  %v1880 = vmul.f32 %v1878, 0.5
  %v1881 = vadd.f32 %v1879, 0.5
  %v1882 = vadd.f32 %v1880, 0.5
  %v1883 = vmul.f32 %v1871, %v1528
  %v1884 = vmul.f32 %v1872, %v1529
  %v1885 = vmul.f32 %v1863, %v1873
  %v1886 = vmul.f32 %v1864, %v1874
  %v1887 = vadd.f32 %v1883, %v1885
  %v1888 = vadd.f32 %v1884, %v1886
  %v1889 = vtanh.pop %v1887
  %v1890 = vtanh.pop %v1888
  %v1891 = vmul.f32 %v1881, %v1889
  %v1892 = vmul.f32 %v1882, %v1890
  %v1893 = vpack.c.bf16 %v1892, %v1891
  %1894 = vmatprep.subr.bf16.mxu0 %v953
  %1895 = vmatpush1.bf16.msra.mxu0 %v952
  %1896 = vmatprep.subr.bf16.mxu0 %v957
  %1897 = vmatpush1.bf16.msra.mxu0 %v956
  %1898 = vmatprep.subr.bf16.mxu0 %v961
  %1899 = vmatpush1.bf16.msra.mxu0 %v960
  %1900 = vmatprep.subr.bf16.mxu0 %v965
  %1901 = vmatpush1.bf16.msra.mxu0 %v964
  %1902 = vmatprep.subr.bf16.mxu0 %v969
  %1903 = vmatpush1.bf16.msra.mxu0 %v968
  %1904 = vmatprep.subr.bf16.mxu0 %v973
  %1905 = vmatpush1.bf16.msra.mxu0 %v972
  %1906 = vmatprep.subr.bf16.mxu0 %v977
  %1907 = vmatpush1.bf16.msra.mxu0 %v976
  %1908 = vmatprep.subr.bf16.mxu0 %v981
  %1909 = vmatpush1.bf16.msra.mxu0 %v980
  %1910 = vmatprep.subr.bf16.mxu0 0
  %1911 = vmatpush1.bf16.msra.mxu0 0
  %1912 = vmatprep.subr.bf16.mxu0 0
  %1913 = vmatpush1.bf16.msra.mxu0 0
  %1914 = vmatprep.subr.bf16.mxu0 0
  %1915 = vmatpush1.bf16.msra.mxu0 0
  %1916 = vmatprep.subr.bf16.mxu0 0
  %1917 = vmatpush1.bf16.msra.mxu0 0
  %1918 = vmatprep.subr.bf16.mxu0 0
  %1919 = vmatpush1.bf16.msra.mxu0 0
  %1920 = vmatprep.subr.bf16.mxu0 0
  %1921 = vmatpush1.bf16.msra.mxu0 0
  %1922 = vmatprep.subr.bf16.mxu0 0
  %1923 = vmatpush1.bf16.msra.mxu0 0
  %1924 = vmatprep.subr.bf16.mxu0 0
  %1925 = vmatpush1.bf16.msra.mxu0 0
  %1926 = vmatprep.mubr.bf16.mxu0 0
  %1927 = vmatmul.mubr.bf16.gmra.mrb[0].mxu0 %v1751
  %v1928 = vpop.f32.mrb[0].mxu0
  %v1929 = vadd.f32 0.0, %v1928
  %v1930 = vpop.f32.mrb[0].mxu0
  %v1931 = vadd.f32 0.0, %v1930
  %v1932 = vpop.f32.mrb[0].mxu0
  %v1933 = vadd.f32 0.0, %v1932
  %v1934 = vpop.f32.mrb[0].mxu0
  %v1935 = vadd.f32 0.0, %v1934
  %1936 = vdwg.mxu0
  %1937 = vmatprep.subr.bf16.mxu0 %v955
  %1938 = vmatpush1.bf16.msra.mxu0 %v954
  %1939 = vmatprep.subr.bf16.mxu0 %v959
  %1940 = vmatpush1.bf16.msra.mxu0 %v958
  %1941 = vmatprep.subr.bf16.mxu0 %v963
  %1942 = vmatpush1.bf16.msra.mxu0 %v962
  %1943 = vmatprep.subr.bf16.mxu0 %v967
  %1944 = vmatpush1.bf16.msra.mxu0 %v966
  %1945 = vmatprep.subr.bf16.mxu0 %v971
  %1946 = vmatpush1.bf16.msra.mxu0 %v970
  %1947 = vmatprep.subr.bf16.mxu0 %v975
  %1948 = vmatpush1.bf16.msra.mxu0 %v974
  %1949 = vmatprep.subr.bf16.mxu0 %v979
  %1950 = vmatpush1.bf16.msra.mxu0 %v978
  %1951 = vmatprep.subr.bf16.mxu0 %v983
  %1952 = vmatpush1.bf16.msra.mxu0 %v982
  %1953 = vmatprep.subr.bf16.mxu0 0
  %1954 = vmatpush1.bf16.msra.mxu0 0
  %1955 = vmatprep.subr.bf16.mxu0 0
  %1956 = vmatpush1.bf16.msra.mxu0 0
  %1957 = vmatprep.subr.bf16.mxu0 0
  %1958 = vmatpush1.bf16.msra.mxu0 0
  %1959 = vmatprep.subr.bf16.mxu0 0
  %1960 = vmatpush1.bf16.msra.mxu0 0
  %1961 = vmatprep.subr.bf16.mxu0 0
  %1962 = vmatpush1.bf16.msra.mxu0 0
  %1963 = vmatprep.subr.bf16.mxu0 0
  %1964 = vmatpush1.bf16.msra.mxu0 0
  %1965 = vmatprep.subr.bf16.mxu0 0
  %1966 = vmatpush1.bf16.msra.mxu0 0
  %1967 = vmatprep.subr.bf16.mxu0 0
  %1968 = vmatpush1.bf16.msra.mxu0 0
  %1969 = vmatprep.mubr.bf16.mxu0 0
  %1970 = vmatmul.mubr.bf16.gmra.mrb[0].mxu0 %v1751
  %v1971 = vpop.f32.mrb[0].mxu0
  %v1972 = vadd.f32 0.0, %v1971
  %v1973 = vpop.f32.mrb[0].mxu0
  %v1974 = vadd.f32 0.0, %v1973
  %v1975 = vpop.f32.mrb[0].mxu0
  %v1976 = vadd.f32 0.0, %v1975
  %v1977 = vpop.f32.mrb[0].mxu0
  %v1978 = vadd.f32 0.0, %v1977
  %1979 = vdwg.mxu0
  %1980 = vmatprep.subr.bf16.mxu0 %v1199
  %1981 = vmatpush1.bf16.msra.mxu0 %v1198
  %1982 = vmatprep.subr.bf16.mxu0 %v1203
  %1983 = vmatpush1.bf16.msra.mxu0 %v1202
  %1984 = vmatprep.subr.bf16.mxu0 %v1207
  %1985 = vmatpush1.bf16.msra.mxu0 %v1206
  %1986 = vmatprep.subr.bf16.mxu0 %v1211
  %1987 = vmatpush1.bf16.msra.mxu0 %v1210
  %1988 = vmatprep.subr.bf16.mxu0 %v1215
  %1989 = vmatpush1.bf16.msra.mxu0 %v1214
  %1990 = vmatprep.subr.bf16.mxu0 %v1219
  %1991 = vmatpush1.bf16.msra.mxu0 %v1218
  %1992 = vmatprep.subr.bf16.mxu0 %v1223
  %1993 = vmatpush1.bf16.msra.mxu0 %v1222
  %1994 = vmatprep.subr.bf16.mxu0 %v1227
  %1995 = vmatpush1.bf16.msra.mxu0 %v1226
  %1996 = vmatprep.subr.bf16.mxu0 0
  %1997 = vmatpush1.bf16.msra.mxu0 0
  %1998 = vmatprep.subr.bf16.mxu0 0
  %1999 = vmatpush1.bf16.msra.mxu0 0
  %2000 = vmatprep.subr.bf16.mxu0 0
  %2001 = vmatpush1.bf16.msra.mxu0 0
  %2002 = vmatprep.subr.bf16.mxu0 0
  %2003 = vmatpush1.bf16.msra.mxu0 0
  %2004 = vmatprep.subr.bf16.mxu0 0
  %2005 = vmatpush1.bf16.msra.mxu0 0
  %2006 = vmatprep.subr.bf16.mxu0 0
  %2007 = vmatpush1.bf16.msra.mxu0 0
  %2008 = vmatprep.subr.bf16.mxu0 0
  %2009 = vmatpush1.bf16.msra.mxu0 0
  %2010 = vmatprep.subr.bf16.mxu0 0
  %2011 = vmatpush1.bf16.msra.mxu0 0
  %2012 = vmatprep.mubr.bf16.mxu0 0
  %2013 = vmatmul.mubr.bf16.gmra.mrb[0].mxu0 %v1893
  %v2014 = vpop.f32.mrb[0].mxu0
  %v2015 = vadd.f32 %v1929, %v2014
  %v2016 = vpop.f32.mrb[0].mxu0
  %v2017 = vadd.f32 %v1931, %v2016
  %v2018 = vpop.f32.mrb[0].mxu0
  %v2019 = vadd.f32 %v1933, %v2018
  %v2020 = vpop.f32.mrb[0].mxu0
  %v2021 = vadd.f32 %v1935, %v2020
  %2022 = vdwg.mxu0
  %2023 = vmatprep.subr.bf16.mxu0 %v1201
  %2024 = vmatpush1.bf16.msra.mxu0 %v1200
  %2025 = vmatprep.subr.bf16.mxu0 %v1205
  %2026 = vmatpush1.bf16.msra.mxu0 %v1204
  %2027 = vmatprep.subr.bf16.mxu0 %v1209
  %2028 = vmatpush1.bf16.msra.mxu0 %v1208
  %2029 = vmatprep.subr.bf16.mxu0 %v1213
  %2030 = vmatpush1.bf16.msra.mxu0 %v1212
  %2031 = vmatprep.subr.bf16.mxu0 %v1217
  %2032 = vmatpush1.bf16.msra.mxu0 %v1216
  %2033 = vmatprep.subr.bf16.mxu0 %v1221
  %2034 = vmatpush1.bf16.msra.mxu0 %v1220
  %2035 = vmatprep.subr.bf16.mxu0 %v1225
  %2036 = vmatpush1.bf16.msra.mxu0 %v1224
  %2037 = vmatprep.subr.bf16.mxu0 %v1229
  %2038 = vmatpush1.bf16.msra.mxu0 %v1228
  %2039 = vmatprep.subr.bf16.mxu0 0
  %2040 = vmatpush1.bf16.msra.mxu0 0
  %2041 = vmatprep.subr.bf16.mxu0 0
  %2042 = vmatpush1.bf16.msra.mxu0 0
  %2043 = vmatprep.subr.bf16.mxu0 0
  %2044 = vmatpush1.bf16.msra.mxu0 0
  %2045 = vmatprep.subr.bf16.mxu0 0
  %2046 = vmatpush1.bf16.msra.mxu0 0
  %2047 = vmatprep.subr.bf16.mxu0 0
  %2048 = vmatpush1.bf16.msra.mxu0 0
  %2049 = vmatprep.subr.bf16.mxu0 0
  %2050 = vmatpush1.bf16.msra.mxu0 0
  %2051 = vmatprep.subr.bf16.mxu0 0
  %2052 = vmatpush1.bf16.msra.mxu0 0
  %2053 = vmatprep.subr.bf16.mxu0 0
  %2054 = vmatpush1.bf16.msra.mxu0 0
  %2055 = vmatprep.mubr.bf16.mxu0 0
  %2056 = vmatmul.mubr.bf16.gmra.mrb[0].mxu0 %v1893
  %v2057 = vpop.f32.mrb[0].mxu0
  %v2058 = vadd.f32 %v1972, %v2057
  %v2059 = vpop.f32.mrb[0].mxu0
  %v2060 = vadd.f32 %v1974, %v2059
  %v2061 = vpop.f32.mrb[0].mxu0
  %v2062 = vadd.f32 %v1976, %v2061
  %v2063 = vpop.f32.mrb[0].mxu0
  %v2064 = vadd.f32 %v1978, %v2063
  %2065 = vdwg.mxu0
  %v2066 = vadd.f32 %v2015, %v537
  %v2067 = vadd.f32 %v2017, %v541
  %v2068 = vadd.f32 %v2058, %v545
  %v2069 = vadd.f32 %v2060, %v549
  %v2070 = vadd.f32 %v2019, %v537
  %v2071 = vadd.f32 %v2021, %v541
  %v2072 = vadd.f32 %v2062, %v545
  %v2073 = vadd.f32 %v2064, %v549
  %v2074 = vmul.f32 %v2066, 0.5
  %v2075 = vmul.f32 %v2070, 0.5
  %v2076 = vtanh.pop %v2074
  %v2077 = vtanh.pop %v2075
  %v2078 = vmul.f32 %v2076, 0.5
  %v2079 = vmul.f32 %v2077, 0.5
  %v2080 = vadd.f32 %v2078, 0.5
  %v2081 = vadd.f32 %v2079, 0.5
  %v2082 = vmul.f32 %v2067, 0.5
  %v2083 = vmul.f32 %v2071, 0.5
  %v2084 = vtanh.pop %v2082
  %v2085 = vtanh.pop %v2083
  %v2086 = vmul.f32 %v2084, 0.5
  %v2087 = vmul.f32 %v2085, 0.5
  %v2088 = vadd.f32 %v2086, 0.5
  %v2089 = vadd.f32 %v2087, 0.5
  %v2090 = vtanh.pop %v2068
  %v2091 = vtanh.pop %v2072
  %v2092 = vmul.f32 %v2069, 0.5
  %v2093 = vmul.f32 %v2073, 0.5
  %v2094 = vtanh.pop %v2092
  %v2095 = vtanh.pop %v2093
  %v2096 = vmul.f32 %v2094, 0.5
  %v2097 = vmul.f32 %v2095, 0.5
  %v2098 = vadd.f32 %v2096, 0.5
  %v2099 = vadd.f32 %v2097, 0.5
  %v2100 = vmul.f32 %v2088, %v1745
  %v2101 = vmul.f32 %v2089, %v1746
  %v2102 = vmul.f32 %v2080, %v2090
  %v2103 = vmul.f32 %v2081, %v2091
  %v2104 = vadd.f32 %v2100, %v2102
  %v2105 = vadd.f32 %v2101, %v2103
  %v2106 = vtanh.pop %v2104
  %v2107 = vtanh.pop %v2105
  %v2108 = vmul.f32 %v2098, %v2106
  %v2109 = vmul.f32 %v2099, %v2107
  %v2110 = vpack.c.bf16 %v2109, %v2108
  %s2111 = smul.u32 6, 4
  %s2112 = smul.addr %s2111, 8
  %s2113 = scalar_lea.vmem [#allocation2], %s2112
  %v2114 = vld [vmem:[%s2113] sm:$0xff]
  %v2115 = vld [vmem:[%s2113 + $0x8] sm:$0xff]
  %v2116 = vld [vmem:[%s2113 + $0x10] sm:$0xff]
  %v2117 = vld [vmem:[%s2113 + $0x18] sm:$0xff]
  %v2118 = vld [vmem:[%s2113 + $0x20] sm:$0xff]
  %v2119 = vld [vmem:[%s2113 + $0x28] sm:$0xff]
  %v2120 = vld [vmem:[%s2113 + $0x30] sm:$0xff]
  %v2121 = vld [vmem:[%s2113 + $0x38] sm:$0xff]
  %2122 = vmatprep.subr.bf16.mxu0 %v662
  %2123 = vmatpush1.bf16.msra.mxu0 %v661
  %2124 = vmatprep.subr.bf16.mxu0 %v666
  %2125 = vmatpush1.bf16.msra.mxu0 %v665
  %2126 = vmatprep.subr.bf16.mxu0 %v670
  %2127 = vmatpush1.bf16.msra.mxu0 %v669
  %2128 = vmatprep.subr.bf16.mxu0 %v674
  %2129 = vmatpush1.bf16.msra.mxu0 %v673
  %2130 = vmatprep.subr.bf16.mxu0 %v678
  %2131 = vmatpush1.bf16.msra.mxu0 %v677
  %2132 = vmatprep.subr.bf16.mxu0 %v682
  %2133 = vmatpush1.bf16.msra.mxu0 %v681
  %2134 = vmatprep.subr.bf16.mxu0 %v686
  %2135 = vmatpush1.bf16.msra.mxu0 %v685
  %2136 = vmatprep.subr.bf16.mxu0 %v690
  %2137 = vmatpush1.bf16.msra.mxu0 %v689
  %2138 = vmatprep.subr.bf16.mxu0 0
  %2139 = vmatpush1.bf16.msra.mxu0 0
  %2140 = vmatprep.subr.bf16.mxu0 0
  %2141 = vmatpush1.bf16.msra.mxu0 0
  %2142 = vmatprep.subr.bf16.mxu0 0
  %2143 = vmatpush1.bf16.msra.mxu0 0
  %2144 = vmatprep.subr.bf16.mxu0 0
  %2145 = vmatpush1.bf16.msra.mxu0 0
  %2146 = vmatprep.subr.bf16.mxu0 0
  %2147 = vmatpush1.bf16.msra.mxu0 0
  %2148 = vmatprep.subr.bf16.mxu0 0
  %2149 = vmatpush1.bf16.msra.mxu0 0
  %2150 = vmatprep.subr.bf16.mxu0 0
  %2151 = vmatpush1.bf16.msra.mxu0 0
  %2152 = vmatprep.subr.bf16.mxu0 0
  %2153 = vmatpush1.bf16.msra.mxu0 0
  %2154 = vmatprep.mubr.bf16.mxu0 0
  %2155 = vmatmul.mubr.bf16.gmra.mrb[0].mxu0 %v1893
  %v2156 = vpop.f32.mrb[0].mxu0
  %v2157 = vadd.f32 0.0, %v2156
  %v2158 = vpop.f32.mrb[0].mxu0
  %v2159 = vadd.f32 0.0, %v2158
  %v2160 = vpop.f32.mrb[0].mxu0
  %v2161 = vadd.f32 0.0, %v2160
  %v2162 = vpop.f32.mrb[0].mxu0
  %v2163 = vadd.f32 0.0, %v2162
  %2164 = vdwg.mxu0
  %2165 = vmatprep.subr.bf16.mxu0 %v664
  %2166 = vmatpush1.bf16.msra.mxu0 %v663
  %2167 = vmatprep.subr.bf16.mxu0 %v668
  %2168 = vmatpush1.bf16.msra.mxu0 %v667
  %2169 = vmatprep.subr.bf16.mxu0 %v672
  %2170 = vmatpush1.bf16.msra.mxu0 %v671
  %2171 = vmatprep.subr.bf16.mxu0 %v676
  %2172 = vmatpush1.bf16.msra.mxu0 %v675
  %2173 = vmatprep.subr.bf16.mxu0 %v680
  %2174 = vmatpush1.bf16.msra.mxu0 %v679
  %2175 = vmatprep.subr.bf16.mxu0 %v684
  %2176 = vmatpush1.bf16.msra.mxu0 %v683
  %2177 = vmatprep.subr.bf16.mxu0 %v688
  %2178 = vmatpush1.bf16.msra.mxu0 %v687
  %2179 = vmatprep.subr.bf16.mxu0 %v692
  %2180 = vmatpush1.bf16.msra.mxu0 %v691
  %2181 = vmatprep.subr.bf16.mxu0 0
  %2182 = vmatpush1.bf16.msra.mxu0 0
  %2183 = vmatprep.subr.bf16.mxu0 0
  %2184 = vmatpush1.bf16.msra.mxu0 0
  %2185 = vmatprep.subr.bf16.mxu0 0
  %2186 = vmatpush1.bf16.msra.mxu0 0
  %2187 = vmatprep.subr.bf16.mxu0 0
  %2188 = vmatpush1.bf16.msra.mxu0 0
  %2189 = vmatprep.subr.bf16.mxu0 0
  %2190 = vmatpush1.bf16.msra.mxu0 0
  %2191 = vmatprep.subr.bf16.mxu0 0
  %2192 = vmatpush1.bf16.msra.mxu0 0
  %2193 = vmatprep.subr.bf16.mxu0 0
  %2194 = vmatpush1.bf16.msra.mxu0 0
  %2195 = vmatprep.subr.bf16.mxu0 0
  %2196 = vmatpush1.bf16.msra.mxu0 0
  %2197 = vmatprep.mubr.bf16.mxu0 0
  %2198 = vmatmul.mubr.bf16.gmra.mrb[0].mxu0 %v1893
  %v2199 = vpop.f32.mrb[0].mxu0
  %v2200 = vadd.f32 0.0, %v2199
  %v2201 = vpop.f32.mrb[0].mxu0
  %v2202 = vadd.f32 0.0, %v2201
  %v2203 = vpop.f32.mrb[0].mxu0
  %v2204 = vadd.f32 0.0, %v2203
  %v2205 = vpop.f32.mrb[0].mxu0
  %v2206 = vadd.f32 0.0, %v2205
  %2207 = vdwg.mxu0
  %v2208 = vadd.f32 %v2114, %v2157
  %v2209 = vadd.f32 %v2115, %v2159
  %v2210 = vadd.f32 %v2116, %v2200
  %v2211 = vadd.f32 %v2117, %v2202
  %v2212 = vadd.f32 %v2118, %v2161
  %v2213 = vadd.f32 %v2119, %v2163
  %v2214 = vadd.f32 %v2120, %v2204
  %v2215 = vadd.f32 %v2121, %v2206
  %v2216 = vmul.f32 %v2208, 0.5
  %v2217 = vmul.f32 %v2212, 0.5
  %v2218 = vtanh.pop %v2216
  %v2219 = vtanh.pop %v2217
  %v2220 = vmul.f32 %v2218, 0.5
  %v2221 = vmul.f32 %v2219, 0.5
  %v2222 = vadd.f32 %v2220, 0.5
  %v2223 = vadd.f32 %v2221, 0.5
  %v2224 = vmul.f32 %v2209, 0.5
  %v2225 = vmul.f32 %v2213, 0.5
  %v2226 = vtanh.pop %v2224
  %v2227 = vtanh.pop %v2225
  %v2228 = vmul.f32 %v2226, 0.5
  %v2229 = vmul.f32 %v2227, 0.5
  %v2230 = vadd.f32 %v2228, 0.5
  %v2231 = vadd.f32 %v2229, 0.5
  %v2232 = vtanh.pop %v2210
  %v2233 = vtanh.pop %v2214
  %v2234 = vmul.f32 %v2211, 0.5
  %v2235 = vmul.f32 %v2215, 0.5
  %v2236 = vtanh.pop %v2234
  %v2237 = vtanh.pop %v2235
  %v2238 = vmul.f32 %v2236, 0.5
  %v2239 = vmul.f32 %v2237, 0.5
  %v2240 = vadd.f32 %v2238, 0.5
  %v2241 = vadd.f32 %v2239, 0.5
  %v2242 = vmul.f32 %v2230, %v1887
  %v2243 = vmul.f32 %v2231, %v1888
  %v2244 = vmul.f32 %v2222, %v2232
  %v2245 = vmul.f32 %v2223, %v2233
  %v2246 = vadd.f32 %v2242, %v2244
  %v2247 = vadd.f32 %v2243, %v2245
  %v2248 = vtanh.pop %v2246
  %v2249 = vtanh.pop %v2247
  %v2250 = vmul.f32 %v2240, %v2248
  %v2251 = vmul.f32 %v2241, %v2249
  %v2252 = vpack.c.bf16 %v2251, %v2250
  %2253 = vmatprep.subr.bf16.mxu0 %v953
  %2254 = vmatpush1.bf16.msra.mxu0 %v952
  %2255 = vmatprep.subr.bf16.mxu0 %v957
  %2256 = vmatpush1.bf16.msra.mxu0 %v956
  %2257 = vmatprep.subr.bf16.mxu0 %v961
  %2258 = vmatpush1.bf16.msra.mxu0 %v960
  %2259 = vmatprep.subr.bf16.mxu0 %v965
  %2260 = vmatpush1.bf16.msra.mxu0 %v964
  %2261 = vmatprep.subr.bf16.mxu0 %v969
  %2262 = vmatpush1.bf16.msra.mxu0 %v968
  %2263 = vmatprep.subr.bf16.mxu0 %v973
  %2264 = vmatpush1.bf16.msra.mxu0 %v972
  %2265 = vmatprep.subr.bf16.mxu0 %v977
  %2266 = vmatpush1.bf16.msra.mxu0 %v976
  %2267 = vmatprep.subr.bf16.mxu0 %v981
  %2268 = vmatpush1.bf16.msra.mxu0 %v980
  %2269 = vmatprep.subr.bf16.mxu0 0
  %2270 = vmatpush1.bf16.msra.mxu0 0
  %2271 = vmatprep.subr.bf16.mxu0 0
  %2272 = vmatpush1.bf16.msra.mxu0 0
  %2273 = vmatprep.subr.bf16.mxu0 0
  %2274 = vmatpush1.bf16.msra.mxu0 0
  %2275 = vmatprep.subr.bf16.mxu0 0
  %2276 = vmatpush1.bf16.msra.mxu0 0
  %2277 = vmatprep.subr.bf16.mxu0 0
  %2278 = vmatpush1.bf16.msra.mxu0 0
  %2279 = vmatprep.subr.bf16.mxu0 0
  %2280 = vmatpush1.bf16.msra.mxu0 0
  %2281 = vmatprep.subr.bf16.mxu0 0
  %2282 = vmatpush1.bf16.msra.mxu0 0
  %2283 = vmatprep.subr.bf16.mxu0 0
  %2284 = vmatpush1.bf16.msra.mxu0 0
  %2285 = vmatprep.mubr.bf16.mxu0 0
  %2286 = vmatmul.mubr.bf16.gmra.mrb[0].mxu0 %v2110
  %v2287 = vpop.f32.mrb[0].mxu0
  %v2288 = vadd.f32 0.0, %v2287
  %v2289 = vpop.f32.mrb[0].mxu0
  %v2290 = vadd.f32 0.0, %v2289
  %v2291 = vpop.f32.mrb[0].mxu0
  %v2292 = vadd.f32 0.0, %v2291
  %v2293 = vpop.f32.mrb[0].mxu0
  %v2294 = vadd.f32 0.0, %v2293
  %2295 = vdwg.mxu0
  %2296 = vmatprep.subr.bf16.mxu0 %v955
  %2297 = vmatpush1.bf16.msra.mxu0 %v954
  %2298 = vmatprep.subr.bf16.mxu0 %v959
  %2299 = vmatpush1.bf16.msra.mxu0 %v958
  %2300 = vmatprep.subr.bf16.mxu0 %v963
  %2301 = vmatpush1.bf16.msra.mxu0 %v962
  %2302 = vmatprep.subr.bf16.mxu0 %v967
  %2303 = vmatpush1.bf16.msra.mxu0 %v966
  %2304 = vmatprep.subr.bf16.mxu0 %v971
  %2305 = vmatpush1.bf16.msra.mxu0 %v970
  %2306 = vmatprep.subr.bf16.mxu0 %v975
  %2307 = vmatpush1.bf16.msra.mxu0 %v974
  %2308 = vmatprep.subr.bf16.mxu0 %v979
  %2309 = vmatpush1.bf16.msra.mxu0 %v978
  %2310 = vmatprep.subr.bf16.mxu0 %v983
  %2311 = vmatpush1.bf16.msra.mxu0 %v982
  %2312 = vmatprep.subr.bf16.mxu0 0
  %2313 = vmatpush1.bf16.msra.mxu0 0
  %2314 = vmatprep.subr.bf16.mxu0 0
  %2315 = vmatpush1.bf16.msra.mxu0 0
  %2316 = vmatprep.subr.bf16.mxu0 0
  %2317 = vmatpush1.bf16.msra.mxu0 0
  %2318 = vmatprep.subr.bf16.mxu0 0
  %2319 = vmatpush1.bf16.msra.mxu0 0
  %2320 = vmatprep.subr.bf16.mxu0 0
  %2321 = vmatpush1.bf16.msra.mxu0 0
  %2322 = vmatprep.subr.bf16.mxu0 0
  %2323 = vmatpush1.bf16.msra.mxu0 0
  %2324 = vmatprep.subr.bf16.mxu0 0
  %2325 = vmatpush1.bf16.msra.mxu0 0
  %2326 = vmatprep.subr.bf16.mxu0 0
  %2327 = vmatpush1.bf16.msra.mxu0 0
  %2328 = vmatprep.mubr.bf16.mxu0 0
  %2329 = vmatmul.mubr.bf16.gmra.mrb[0].mxu0 %v2110
  %v2330 = vpop.f32.mrb[0].mxu0
  %v2331 = vadd.f32 0.0, %v2330
  %v2332 = vpop.f32.mrb[0].mxu0
  %v2333 = vadd.f32 0.0, %v2332
  %v2334 = vpop.f32.mrb[0].mxu0
  %v2335 = vadd.f32 0.0, %v2334
  %v2336 = vpop.f32.mrb[0].mxu0
  %v2337 = vadd.f32 0.0, %v2336
  %2338 = vdwg.mxu0
  %2339 = vmatprep.subr.bf16.mxu0 %v1199
  %2340 = vmatpush1.bf16.msra.mxu0 %v1198
  %2341 = vmatprep.subr.bf16.mxu0 %v1203
  %2342 = vmatpush1.bf16.msra.mxu0 %v1202
  %2343 = vmatprep.subr.bf16.mxu0 %v1207
  %2344 = vmatpush1.bf16.msra.mxu0 %v1206
  %2345 = vmatprep.subr.bf16.mxu0 %v1211
  %2346 = vmatpush1.bf16.msra.mxu0 %v1210
  %2347 = vmatprep.subr.bf16.mxu0 %v1215
  %2348 = vmatpush1.bf16.msra.mxu0 %v1214
  %2349 = vmatprep.subr.bf16.mxu0 %v1219
  %2350 = vmatpush1.bf16.msra.mxu0 %v1218
  %2351 = vmatprep.subr.bf16.mxu0 %v1223
  %2352 = vmatpush1.bf16.msra.mxu0 %v1222
  %2353 = vmatprep.subr.bf16.mxu0 %v1227
  %2354 = vmatpush1.bf16.msra.mxu0 %v1226
  %2355 = vmatprep.subr.bf16.mxu0 0
  %2356 = vmatpush1.bf16.msra.mxu0 0
  %2357 = vmatprep.subr.bf16.mxu0 0
  %2358 = vmatpush1.bf16.msra.mxu0 0
  %2359 = vmatprep.subr.bf16.mxu0 0
  %2360 = vmatpush1.bf16.msra.mxu0 0
  %2361 = vmatprep.subr.bf16.mxu0 0
  %2362 = vmatpush1.bf16.msra.mxu0 0
  %2363 = vmatprep.subr.bf16.mxu0 0
  %2364 = vmatpush1.bf16.msra.mxu0 0
  %2365 = vmatprep.subr.bf16.mxu0 0
  %2366 = vmatpush1.bf16.msra.mxu0 0
  %2367 = vmatprep.subr.bf16.mxu0 0
  %2368 = vmatpush1.bf16.msra.mxu0 0
  %2369 = vmatprep.subr.bf16.mxu0 0
  %2370 = vmatpush1.bf16.msra.mxu0 0
  %2371 = vmatprep.mubr.bf16.mxu0 0
  %2372 = vmatmul.mubr.bf16.gmra.mrb[0].mxu0 %v2252
  %v2373 = vpop.f32.mrb[0].mxu0
  %v2374 = vadd.f32 %v2288, %v2373
  %v2375 = vpop.f32.mrb[0].mxu0
  %v2376 = vadd.f32 %v2290, %v2375
  %v2377 = vpop.f32.mrb[0].mxu0
  %v2378 = vadd.f32 %v2292, %v2377
  %v2379 = vpop.f32.mrb[0].mxu0
  %v2380 = vadd.f32 %v2294, %v2379
  %2381 = vdwg.mxu0
  %2382 = vmatprep.subr.bf16.mxu0 %v1201
  %2383 = vmatpush1.bf16.msra.mxu0 %v1200
  %2384 = vmatprep.subr.bf16.mxu0 %v1205
  %2385 = vmatpush1.bf16.msra.mxu0 %v1204
  %2386 = vmatprep.subr.bf16.mxu0 %v1209
  %2387 = vmatpush1.bf16.msra.mxu0 %v1208
  %2388 = vmatprep.subr.bf16.mxu0 %v1213
  %2389 = vmatpush1.bf16.msra.mxu0 %v1212
  %2390 = vmatprep.subr.bf16.mxu0 %v1217
  %2391 = vmatpush1.bf16.msra.mxu0 %v1216
  %2392 = vmatprep.subr.bf16.mxu0 %v1221
  %2393 = vmatpush1.bf16.msra.mxu0 %v1220
  %2394 = vmatprep.subr.bf16.mxu0 %v1225
  %2395 = vmatpush1.bf16.msra.mxu0 %v1224
  %2396 = vmatprep.subr.bf16.mxu0 %v1229
  %2397 = vmatpush1.bf16.msra.mxu0 %v1228
  %2398 = vmatprep.subr.bf16.mxu0 0
  %2399 = vmatpush1.bf16.msra.mxu0 0
  %2400 = vmatprep.subr.bf16.mxu0 0
  %2401 = vmatpush1.bf16.msra.mxu0 0
  %2402 = vmatprep.subr.bf16.mxu0 0
  %2403 = vmatpush1.bf16.msra.mxu0 0
  %2404 = vmatprep.subr.bf16.mxu0 0
  %2405 = vmatpush1.bf16.msra.mxu0 0
  %2406 = vmatprep.subr.bf16.mxu0 0
  %2407 = vmatpush1.bf16.msra.mxu0 0
  %2408 = vmatprep.subr.bf16.mxu0 0
  %2409 = vmatpush1.bf16.msra.mxu0 0
  %2410 = vmatprep.subr.bf16.mxu0 0
  %2411 = vmatpush1.bf16.msra.mxu0 0
  %2412 = vmatprep.subr.bf16.mxu0 0
  %2413 = vmatpush1.bf16.msra.mxu0 0
  %2414 = vmatprep.mubr.bf16.mxu0 0
  %2415 = vmatmul.mubr.bf16.gmra.mrb[0].mxu0 %v2252
  %v2416 = vpop.f32.mrb[0].mxu0
  %v2417 = vadd.f32 %v2331, %v2416
  %v2418 = vpop.f32.mrb[0].mxu0
  %v2419 = vadd.f32 %v2333, %v2418
  %v2420 = vpop.f32.mrb[0].mxu0
  %v2421 = vadd.f32 %v2335, %v2420
  %v2422 = vpop.f32.mrb[0].mxu0
  %v2423 = vadd.f32 %v2337, %v2422
  %2424 = vdwg.mxu0
  %v2425 = vadd.f32 %v2374, %v537
  %v2426 = vadd.f32 %v2376, %v541
  %v2427 = vadd.f32 %v2417, %v545
  %v2428 = vadd.f32 %v2419, %v549
  %v2429 = vadd.f32 %v2378, %v537
  %v2430 = vadd.f32 %v2380, %v541
  %v2431 = vadd.f32 %v2421, %v545
  %v2432 = vadd.f32 %v2423, %v549
  %v2433 = vmul.f32 %v2425, 0.5
  %v2434 = vmul.f32 %v2429, 0.5
  %v2435 = vtanh.pop %v2433
  %v2436 = vtanh.pop %v2434
  %v2437 = vmul.f32 %v2435, 0.5
  %v2438 = vmul.f32 %v2436, 0.5
  %v2439 = vadd.f32 %v2437, 0.5
  %v2440 = vadd.f32 %v2438, 0.5
  %v2441 = vmul.f32 %v2426, 0.5
  %v2442 = vmul.f32 %v2430, 0.5
  %v2443 = vtanh.pop %v2441
  %v2444 = vtanh.pop %v2442
  %v2445 = vmul.f32 %v2443, 0.5
  %v2446 = vmul.f32 %v2444, 0.5
  %v2447 = vadd.f32 %v2445, 0.5
  %v2448 = vadd.f32 %v2446, 0.5
  %v2449 = vtanh.pop %v2427
  %v2450 = vtanh.pop %v2431
  %v2451 = vmul.f32 %v2428, 0.5
  %v2452 = vmul.f32 %v2432, 0.5
  %v2453 = vtanh.pop %v2451
  %v2454 = vtanh.pop %v2452
  %v2455 = vmul.f32 %v2453, 0.5
  %v2456 = vmul.f32 %v2454, 0.5
  %v2457 = vadd.f32 %v2455, 0.5
  %v2458 = vadd.f32 %v2456, 0.5
  %v2459 = vmul.f32 %v2447, %v2104
  %v2460 = vmul.f32 %v2448, %v2105
  %v2461 = vmul.f32 %v2439, %v2449
  %v2462 = vmul.f32 %v2440, %v2450
  %v2463 = vadd.f32 %v2459, %v2461
  %v2464 = vadd.f32 %v2460, %v2462
  %v2465 = vtanh.pop %v2463
  %v2466 = vtanh.pop %v2464
  %v2467 = vmul.f32 %v2457, %v2465
  %v2468 = vmul.f32 %v2458, %v2466
  %v2469 = vpack.c.bf16 %v2468, %v2467
  %s2470 = smul.u32 8, 4
  %s2471 = smul.addr %s2470, 8
  %s2472 = scalar_lea.vmem [#allocation2], %s2471
  %v2473 = vld [vmem:[%s2472] sm:$0xff]
  %v2474 = vld [vmem:[%s2472 + $0x8] sm:$0xff]
  %v2475 = vld [vmem:[%s2472 + $0x10] sm:$0xff]
  %v2476 = vld [vmem:[%s2472 + $0x18] sm:$0xff]
  %v2477 = vld [vmem:[%s2472 + $0x20] sm:$0xff]
  %v2478 = vld [vmem:[%s2472 + $0x28] sm:$0xff]
  %v2479 = vld [vmem:[%s2472 + $0x30] sm:$0xff]
  %v2480 = vld [vmem:[%s2472 + $0x38] sm:$0xff]
  %2481 = vmatprep.subr.bf16.mxu0 %v662
  %2482 = vmatpush1.bf16.msra.mxu0 %v661
  %2483 = vmatprep.subr.bf16.mxu0 %v666
  %2484 = vmatpush1.bf16.msra.mxu0 %v665
  %2485 = vmatprep.subr.bf16.mxu0 %v670
  %2486 = vmatpush1.bf16.msra.mxu0 %v669
  %2487 = vmatprep.subr.bf16.mxu0 %v674
  %2488 = vmatpush1.bf16.msra.mxu0 %v673
  %2489 = vmatprep.subr.bf16.mxu0 %v678
  %2490 = vmatpush1.bf16.msra.mxu0 %v677
  %2491 = vmatprep.subr.bf16.mxu0 %v682
  %2492 = vmatpush1.bf16.msra.mxu0 %v681
  %2493 = vmatprep.subr.bf16.mxu0 %v686
  %2494 = vmatpush1.bf16.msra.mxu0 %v685
  %2495 = vmatprep.subr.bf16.mxu0 %v690
  %2496 = vmatpush1.bf16.msra.mxu0 %v689
  %2497 = vmatprep.subr.bf16.mxu0 0
  %2498 = vmatpush1.bf16.msra.mxu0 0
  %2499 = vmatprep.subr.bf16.mxu0 0
  %2500 = vmatpush1.bf16.msra.mxu0 0
  %2501 = vmatprep.subr.bf16.mxu0 0
  %2502 = vmatpush1.bf16.msra.mxu0 0
  %2503 = vmatprep.subr.bf16.mxu0 0
  %2504 = vmatpush1.bf16.msra.mxu0 0
  %2505 = vmatprep.subr.bf16.mxu0 0
  %2506 = vmatpush1.bf16.msra.mxu0 0
  %2507 = vmatprep.subr.bf16.mxu0 0
  %2508 = vmatpush1.bf16.msra.mxu0 0
  %2509 = vmatprep.subr.bf16.mxu0 0
  %2510 = vmatpush1.bf16.msra.mxu0 0
  %2511 = vmatprep.subr.bf16.mxu0 0
  %2512 = vmatpush1.bf16.msra.mxu0 0
  %2513 = vmatprep.mubr.bf16.mxu0 0
  %2514 = vmatmul.mubr.bf16.gmra.mrb[0].mxu0 %v2252
  %v2515 = vpop.f32.mrb[0].mxu0
  %v2516 = vadd.f32 0.0, %v2515
  %v2517 = vpop.f32.mrb[0].mxu0
  %v2518 = vadd.f32 0.0, %v2517
  %v2519 = vpop.f32.mrb[0].mxu0
  %v2520 = vadd.f32 0.0, %v2519
  %v2521 = vpop.f32.mrb[0].mxu0
  %v2522 = vadd.f32 0.0, %v2521
  %2523 = vdwg.mxu0
  %2524 = vmatprep.subr.bf16.mxu0 %v664
  %2525 = vmatpush1.bf16.msra.mxu0 %v663
  %2526 = vmatprep.subr.bf16.mxu0 %v668
  %2527 = vmatpush1.bf16.msra.mxu0 %v667
  %2528 = vmatprep.subr.bf16.mxu0 %v672
  %2529 = vmatpush1.bf16.msra.mxu0 %v671
  %2530 = vmatprep.subr.bf16.mxu0 %v676
  %2531 = vmatpush1.bf16.msra.mxu0 %v675
  %2532 = vmatprep.subr.bf16.mxu0 %v680
  %2533 = vmatpush1.bf16.msra.mxu0 %v679
  %2534 = vmatprep.subr.bf16.mxu0 %v684
  %2535 = vmatpush1.bf16.msra.mxu0 %v683
  %2536 = vmatprep.subr.bf16.mxu0 %v688
  %2537 = vmatpush1.bf16.msra.mxu0 %v687
  %2538 = vmatprep.subr.bf16.mxu0 %v692
  %2539 = vmatpush1.bf16.msra.mxu0 %v691
  %2540 = vmatprep.subr.bf16.mxu0 0
  %2541 = vmatpush1.bf16.msra.mxu0 0
  %2542 = vmatprep.subr.bf16.mxu0 0
  %2543 = vmatpush1.bf16.msra.mxu0 0
  %2544 = vmatprep.subr.bf16.mxu0 0
  %2545 = vmatpush1.bf16.msra.mxu0 0
  %2546 = vmatprep.subr.bf16.mxu0 0
  %2547 = vmatpush1.bf16.msra.mxu0 0
  %2548 = vmatprep.subr.bf16.mxu0 0
  %2549 = vmatpush1.bf16.msra.mxu0 0
  %2550 = vmatprep.subr.bf16.mxu0 0
  %2551 = vmatpush1.bf16.msra.mxu0 0
  %2552 = vmatprep.subr.bf16.mxu0 0
  %2553 = vmatpush1.bf16.msra.mxu0 0
  %2554 = vmatprep.subr.bf16.mxu0 0
  %2555 = vmatpush1.bf16.msra.mxu0 0
  %2556 = vmatprep.mubr.bf16.mxu0 0
  %2557 = vmatmul.mubr.bf16.gmra.mrb[0].mxu0 %v2252
  %v2558 = vpop.f32.mrb[0].mxu0
  %v2559 = vadd.f32 0.0, %v2558
  %v2560 = vpop.f32.mrb[0].mxu0
  %v2561 = vadd.f32 0.0, %v2560
  %v2562 = vpop.f32.mrb[0].mxu0
  %v2563 = vadd.f32 0.0, %v2562
  %v2564 = vpop.f32.mrb[0].mxu0
  %v2565 = vadd.f32 0.0, %v2564
  %2566 = vdwg.mxu0
  %v2567 = vadd.f32 %v2473, %v2516
  %v2568 = vadd.f32 %v2474, %v2518
  %v2569 = vadd.f32 %v2475, %v2559
  %v2570 = vadd.f32 %v2476, %v2561
  %v2571 = vadd.f32 %v2477, %v2520
  %v2572 = vadd.f32 %v2478, %v2522
  %v2573 = vadd.f32 %v2479, %v2563
  %v2574 = vadd.f32 %v2480, %v2565
  %v2575 = vmul.f32 %v2567, 0.5
  %v2576 = vmul.f32 %v2571, 0.5
  %v2577 = vtanh.pop %v2575
  %v2578 = vtanh.pop %v2576
  %v2579 = vmul.f32 %v2577, 0.5
  %v2580 = vmul.f32 %v2578, 0.5
  %v2581 = vadd.f32 %v2579, 0.5
  %v2582 = vadd.f32 %v2580, 0.5
  %v2583 = vmul.f32 %v2568, 0.5
  %v2584 = vmul.f32 %v2572, 0.5
  %v2585 = vtanh.pop %v2583
  %v2586 = vtanh.pop %v2584
  %v2587 = vmul.f32 %v2585, 0.5
  %v2588 = vmul.f32 %v2586, 0.5
  %v2589 = vadd.f32 %v2587, 0.5
  %v2590 = vadd.f32 %v2588, 0.5
  %v2591 = vtanh.pop %v2569
  %v2592 = vtanh.pop %v2573
  %v2593 = vmul.f32 %v2570, 0.5
  %v2594 = vmul.f32 %v2574, 0.5
  %v2595 = vtanh.pop %v2593
  %v2596 = vtanh.pop %v2594
  %v2597 = vmul.f32 %v2595, 0.5
  %v2598 = vmul.f32 %v2596, 0.5
  %v2599 = vadd.f32 %v2597, 0.5
  %v2600 = vadd.f32 %v2598, 0.5
  %v2601 = vmul.f32 %v2589, %v2246
  %v2602 = vmul.f32 %v2590, %v2247
  %v2603 = vmul.f32 %v2581, %v2591
  %v2604 = vmul.f32 %v2582, %v2592
  %v2605 = vadd.f32 %v2601, %v2603
  %v2606 = vadd.f32 %v2602, %v2604
  %v2607 = vtanh.pop %v2605
  %v2608 = vtanh.pop %v2606
  %v2609 = vmul.f32 %v2599, %v2607
  %v2610 = vmul.f32 %v2600, %v2608
  %v2611 = vpack.c.bf16 %v2610, %v2609
  %2612 = vmatprep.subr.bf16.mxu0 %v953
  %2613 = vmatpush1.bf16.msra.mxu0 %v952
  %2614 = vmatprep.subr.bf16.mxu0 %v957
  %2615 = vmatpush1.bf16.msra.mxu0 %v956
  %2616 = vmatprep.subr.bf16.mxu0 %v961
  %2617 = vmatpush1.bf16.msra.mxu0 %v960
  %2618 = vmatprep.subr.bf16.mxu0 %v965
  %2619 = vmatpush1.bf16.msra.mxu0 %v964
  %2620 = vmatprep.subr.bf16.mxu0 %v969
  %2621 = vmatpush1.bf16.msra.mxu0 %v968
  %2622 = vmatprep.subr.bf16.mxu0 %v973
  %2623 = vmatpush1.bf16.msra.mxu0 %v972
  %2624 = vmatprep.subr.bf16.mxu0 %v977
  %2625 = vmatpush1.bf16.msra.mxu0 %v976
  %2626 = vmatprep.subr.bf16.mxu0 %v981
  %2627 = vmatpush1.bf16.msra.mxu0 %v980
  %2628 = vmatprep.subr.bf16.mxu0 0
  %2629 = vmatpush1.bf16.msra.mxu0 0
  %2630 = vmatprep.subr.bf16.mxu0 0
  %2631 = vmatpush1.bf16.msra.mxu0 0
  %2632 = vmatprep.subr.bf16.mxu0 0
  %2633 = vmatpush1.bf16.msra.mxu0 0
  %2634 = vmatprep.subr.bf16.mxu0 0
  %2635 = vmatpush1.bf16.msra.mxu0 0
  %2636 = vmatprep.subr.bf16.mxu0 0
  %2637 = vmatpush1.bf16.msra.mxu0 0
  %2638 = vmatprep.subr.bf16.mxu0 0
  %2639 = vmatpush1.bf16.msra.mxu0 0
  %2640 = vmatprep.subr.bf16.mxu0 0
  %2641 = vmatpush1.bf16.msra.mxu0 0
  %2642 = vmatprep.subr.bf16.mxu0 0
  %2643 = vmatpush1.bf16.msra.mxu0 0
  %2644 = vmatprep.mubr.bf16.mxu0 0
  %2645 = vmatmul.mubr.bf16.gmra.mrb[0].mxu0 %v2469
  %v2646 = vpop.f32.mrb[0].mxu0
  %v2647 = vadd.f32 0.0, %v2646
  %v2648 = vpop.f32.mrb[0].mxu0
  %v2649 = vadd.f32 0.0, %v2648
  %v2650 = vpop.f32.mrb[0].mxu0
  %v2651 = vadd.f32 0.0, %v2650
  %v2652 = vpop.f32.mrb[0].mxu0
  %v2653 = vadd.f32 0.0, %v2652
  %2654 = vdwg.mxu0
  %2655 = vmatprep.subr.bf16.mxu0 %v955
  %2656 = vmatpush1.bf16.msra.mxu0 %v954
  %2657 = vmatprep.subr.bf16.mxu0 %v959
  %2658 = vmatpush1.bf16.msra.mxu0 %v958
  %2659 = vmatprep.subr.bf16.mxu0 %v963
  %2660 = vmatpush1.bf16.msra.mxu0 %v962
  %2661 = vmatprep.subr.bf16.mxu0 %v967
  %2662 = vmatpush1.bf16.msra.mxu0 %v966
  %2663 = vmatprep.subr.bf16.mxu0 %v971
  %2664 = vmatpush1.bf16.msra.mxu0 %v970
  %2665 = vmatprep.subr.bf16.mxu0 %v975
  %2666 = vmatpush1.bf16.msra.mxu0 %v974
  %2667 = vmatprep.subr.bf16.mxu0 %v979
  %2668 = vmatpush1.bf16.msra.mxu0 %v978
  %2669 = vmatprep.subr.bf16.mxu0 %v983
  %2670 = vmatpush1.bf16.msra.mxu0 %v982
  %2671 = vmatprep.subr.bf16.mxu0 0
  %2672 = vmatpush1.bf16.msra.mxu0 0
  %2673 = vmatprep.subr.bf16.mxu0 0
  %2674 = vmatpush1.bf16.msra.mxu0 0
  %2675 = vmatprep.subr.bf16.mxu0 0
  %2676 = vmatpush1.bf16.msra.mxu0 0
  %2677 = vmatprep.subr.bf16.mxu0 0
  %2678 = vmatpush1.bf16.msra.mxu0 0
  %2679 = vmatprep.subr.bf16.mxu0 0
  %2680 = vmatpush1.bf16.msra.mxu0 0
  %2681 = vmatprep.subr.bf16.mxu0 0
  %2682 = vmatpush1.bf16.msra.mxu0 0
  %2683 = vmatprep.subr.bf16.mxu0 0
  %2684 = vmatpush1.bf16.msra.mxu0 0
  %2685 = vmatprep.subr.bf16.mxu0 0
  %2686 = vmatpush1.bf16.msra.mxu0 0
  %2687 = vmatprep.mubr.bf16.mxu0 0
  %2688 = vmatmul.mubr.bf16.gmra.mrb[0].mxu0 %v2469
  %v2689 = vpop.f32.mrb[0].mxu0
  %v2690 = vadd.f32 0.0, %v2689
  %v2691 = vpop.f32.mrb[0].mxu0
  %v2692 = vadd.f32 0.0, %v2691
  %v2693 = vpop.f32.mrb[0].mxu0
  %v2694 = vadd.f32 0.0, %v2693
  %v2695 = vpop.f32.mrb[0].mxu0
  %v2696 = vadd.f32 0.0, %v2695
  %2697 = vdwg.mxu0
  %2698 = vmatprep.subr.bf16.mxu0 %v1199
  %2699 = vmatpush1.bf16.msra.mxu0 %v1198
  %2700 = vmatprep.subr.bf16.mxu0 %v1203
  %2701 = vmatpush1.bf16.msra.mxu0 %v1202
  %2702 = vmatprep.subr.bf16.mxu0 %v1207
  %2703 = vmatpush1.bf16.msra.mxu0 %v1206
  %2704 = vmatprep.subr.bf16.mxu0 %v1211
  %2705 = vmatpush1.bf16.msra.mxu0 %v1210
  %2706 = vmatprep.subr.bf16.mxu0 %v1215
  %2707 = vmatpush1.bf16.msra.mxu0 %v1214
  %2708 = vmatprep.subr.bf16.mxu0 %v1219
  %2709 = vmatpush1.bf16.msra.mxu0 %v1218
  %2710 = vmatprep.subr.bf16.mxu0 %v1223
  %2711 = vmatpush1.bf16.msra.mxu0 %v1222
  %2712 = vmatprep.subr.bf16.mxu0 %v1227
  %2713 = vmatpush1.bf16.msra.mxu0 %v1226
  %2714 = vmatprep.subr.bf16.mxu0 0
  %2715 = vmatpush1.bf16.msra.mxu0 0
  %2716 = vmatprep.subr.bf16.mxu0 0
  %2717 = vmatpush1.bf16.msra.mxu0 0
  %2718 = vmatprep.subr.bf16.mxu0 0
  %2719 = vmatpush1.bf16.msra.mxu0 0
  %2720 = vmatprep.subr.bf16.mxu0 0
  %2721 = vmatpush1.bf16.msra.mxu0 0
  %2722 = vmatprep.subr.bf16.mxu0 0
  %2723 = vmatpush1.bf16.msra.mxu0 0
  %2724 = vmatprep.subr.bf16.mxu0 0
  %2725 = vmatpush1.bf16.msra.mxu0 0
  %2726 = vmatprep.subr.bf16.mxu0 0
  %2727 = vmatpush1.bf16.msra.mxu0 0
  %2728 = vmatprep.subr.bf16.mxu0 0
  %2729 = vmatpush1.bf16.msra.mxu0 0
  %2730 = vmatprep.mubr.bf16.mxu0 0
  %2731 = vmatmul.mubr.bf16.gmra.mrb[0].mxu0 %v2611
  %v2732 = vpop.f32.mrb[0].mxu0
  %v2733 = vadd.f32 %v2647, %v2732
  %v2734 = vpop.f32.mrb[0].mxu0
  %v2735 = vadd.f32 %v2649, %v2734
  %v2736 = vpop.f32.mrb[0].mxu0
  %v2737 = vadd.f32 %v2651, %v2736
  %v2738 = vpop.f32.mrb[0].mxu0
  %v2739 = vadd.f32 %v2653, %v2738
  %2740 = vdwg.mxu0
  %2741 = vmatprep.subr.bf16.mxu0 %v1201
  %2742 = vmatpush1.bf16.msra.mxu0 %v1200
  %2743 = vmatprep.subr.bf16.mxu0 %v1205
  %2744 = vmatpush1.bf16.msra.mxu0 %v1204
  %2745 = vmatprep.subr.bf16.mxu0 %v1209
  %2746 = vmatpush1.bf16.msra.mxu0 %v1208
  %2747 = vmatprep.subr.bf16.mxu0 %v1213
  %2748 = vmatpush1.bf16.msra.mxu0 %v1212
  %2749 = vmatprep.subr.bf16.mxu0 %v1217
  %2750 = vmatpush1.bf16.msra.mxu0 %v1216
  %2751 = vmatprep.subr.bf16.mxu0 %v1221
  %2752 = vmatpush1.bf16.msra.mxu0 %v1220
  %2753 = vmatprep.subr.bf16.mxu0 %v1225
  %2754 = vmatpush1.bf16.msra.mxu0 %v1224
  %2755 = vmatprep.subr.bf16.mxu0 %v1229
  %2756 = vmatpush1.bf16.msra.mxu0 %v1228
  %2757 = vmatprep.subr.bf16.mxu0 0
  %2758 = vmatpush1.bf16.msra.mxu0 0
  %2759 = vmatprep.subr.bf16.mxu0 0
  %2760 = vmatpush1.bf16.msra.mxu0 0
  %2761 = vmatprep.subr.bf16.mxu0 0
  %2762 = vmatpush1.bf16.msra.mxu0 0
  %2763 = vmatprep.subr.bf16.mxu0 0
  %2764 = vmatpush1.bf16.msra.mxu0 0
  %2765 = vmatprep.subr.bf16.mxu0 0
  %2766 = vmatpush1.bf16.msra.mxu0 0
  %2767 = vmatprep.subr.bf16.mxu0 0
  %2768 = vmatpush1.bf16.msra.mxu0 0
  %2769 = vmatprep.subr.bf16.mxu0 0
  %2770 = vmatpush1.bf16.msra.mxu0 0
  %2771 = vmatprep.subr.bf16.mxu0 0
  %2772 = vmatpush1.bf16.msra.mxu0 0
  %2773 = vmatprep.mubr.bf16.mxu0 0
  %2774 = vmatmul.mubr.bf16.gmra.mrb[0].mxu0 %v2611
  %v2775 = vpop.f32.mrb[0].mxu0
  %v2776 = vadd.f32 %v2690, %v2775
  %v2777 = vpop.f32.mrb[0].mxu0
  %v2778 = vadd.f32 %v2692, %v2777
  %v2779 = vpop.f32.mrb[0].mxu0
  %v2780 = vadd.f32 %v2694, %v2779
  %v2781 = vpop.f32.mrb[0].mxu0
  %v2782 = vadd.f32 %v2696, %v2781
  %2783 = vdwg.mxu0
  %v2784 = vadd.f32 %v2733, %v537
  %v2785 = vadd.f32 %v2735, %v541
  %v2786 = vadd.f32 %v2776, %v545
  %v2787 = vadd.f32 %v2778, %v549
  %v2788 = vadd.f32 %v2737, %v537
  %v2789 = vadd.f32 %v2739, %v541
  %v2790 = vadd.f32 %v2780, %v545
  %v2791 = vadd.f32 %v2782, %v549
  %v2792 = vmul.f32 %v2784, 0.5
  %v2793 = vmul.f32 %v2788, 0.5
  %v2794 = vtanh.pop %v2792
  %v2795 = vtanh.pop %v2793
  %v2796 = vmul.f32 %v2794, 0.5
  %v2797 = vmul.f32 %v2795, 0.5
  %v2798 = vadd.f32 %v2796, 0.5
  %v2799 = vadd.f32 %v2797, 0.5
  %v2800 = vmul.f32 %v2785, 0.5
  %v2801 = vmul.f32 %v2789, 0.5
  %v2802 = vtanh.pop %v2800
  %v2803 = vtanh.pop %v2801
  %v2804 = vmul.f32 %v2802, 0.5
  %v2805 = vmul.f32 %v2803, 0.5
  %v2806 = vadd.f32 %v2804, 0.5
  %v2807 = vadd.f32 %v2805, 0.5
  %v2808 = vtanh.pop %v2786
  %v2809 = vtanh.pop %v2790
  %v2810 = vmul.f32 %v2787, 0.5
  %v2811 = vmul.f32 %v2791, 0.5
  %v2812 = vtanh.pop %v2810
  %v2813 = vtanh.pop %v2811
  %v2814 = vmul.f32 %v2812, 0.5
  %v2815 = vmul.f32 %v2813, 0.5
  %v2816 = vadd.f32 %v2814, 0.5
  %v2817 = vadd.f32 %v2815, 0.5
  %v2818 = vmul.f32 %v2806, %v2463
  %v2819 = vmul.f32 %v2807, %v2464
  %v2820 = vmul.f32 %v2798, %v2808
  %v2821 = vmul.f32 %v2799, %v2809
  %v2822 = vadd.f32 %v2818, %v2820
  %v2823 = vadd.f32 %v2819, %v2821
  %v2824 = vtanh.pop %v2822
  %v2825 = vtanh.pop %v2823
  %v2826 = vmul.f32 %v2816, %v2824
  %v2827 = vmul.f32 %v2817, %v2825
  %v2828 = vpack.c.bf16 %v2827, %v2826
  %s2829 = smul.u32 10, 4
  %s2830 = smul.addr %s2829, 8
  %s2831 = scalar_lea.vmem [#allocation2], %s2830
  %v2832 = vld [vmem:[%s2831] sm:$0xff]
  %v2833 = vld [vmem:[%s2831 + $0x8] sm:$0xff]
  %v2834 = vld [vmem:[%s2831 + $0x10] sm:$0xff]
  %v2835 = vld [vmem:[%s2831 + $0x18] sm:$0xff]
  %v2836 = vld [vmem:[%s2831 + $0x20] sm:$0xff]
  %v2837 = vld [vmem:[%s2831 + $0x28] sm:$0xff]
  %v2838 = vld [vmem:[%s2831 + $0x30] sm:$0xff]
  %v2839 = vld [vmem:[%s2831 + $0x38] sm:$0xff]
  %2840 = vmatprep.subr.bf16.mxu0 %v662
  %2841 = vmatpush1.bf16.msra.mxu0 %v661
  %2842 = vmatprep.subr.bf16.mxu0 %v666
  %2843 = vmatpush1.bf16.msra.mxu0 %v665
  %2844 = vmatprep.subr.bf16.mxu0 %v670
  %2845 = vmatpush1.bf16.msra.mxu0 %v669
  %2846 = vmatprep.subr.bf16.mxu0 %v674
  %2847 = vmatpush1.bf16.msra.mxu0 %v673
  %2848 = vmatprep.subr.bf16.mxu0 %v678
  %2849 = vmatpush1.bf16.msra.mxu0 %v677
  %2850 = vmatprep.subr.bf16.mxu0 %v682
  %2851 = vmatpush1.bf16.msra.mxu0 %v681
  %2852 = vmatprep.subr.bf16.mxu0 %v686
  %2853 = vmatpush1.bf16.msra.mxu0 %v685
  %2854 = vmatprep.subr.bf16.mxu0 %v690
  %2855 = vmatpush1.bf16.msra.mxu0 %v689
  %2856 = vmatprep.subr.bf16.mxu0 0
  %2857 = vmatpush1.bf16.msra.mxu0 0
  %2858 = vmatprep.subr.bf16.mxu0 0
  %2859 = vmatpush1.bf16.msra.mxu0 0
  %2860 = vmatprep.subr.bf16.mxu0 0
  %2861 = vmatpush1.bf16.msra.mxu0 0
  %2862 = vmatprep.subr.bf16.mxu0 0
  %2863 = vmatpush1.bf16.msra.mxu0 0
  %2864 = vmatprep.subr.bf16.mxu0 0
  %2865 = vmatpush1.bf16.msra.mxu0 0
  %2866 = vmatprep.subr.bf16.mxu0 0
  %2867 = vmatpush1.bf16.msra.mxu0 0
  %2868 = vmatprep.subr.bf16.mxu0 0
  %2869 = vmatpush1.bf16.msra.mxu0 0
  %2870 = vmatprep.subr.bf16.mxu0 0
  %2871 = vmatpush1.bf16.msra.mxu0 0
  %2872 = vmatprep.mubr.bf16.mxu0 0
  %2873 = vmatmul.mubr.bf16.gmra.mrb[0].mxu0 %v2611
  %v2874 = vpop.f32.mrb[0].mxu0
  %v2875 = vadd.f32 0.0, %v2874
  %v2876 = vpop.f32.mrb[0].mxu0
  %v2877 = vadd.f32 0.0, %v2876
  %v2878 = vpop.f32.mrb[0].mxu0
  %v2879 = vadd.f32 0.0, %v2878
  %v2880 = vpop.f32.mrb[0].mxu0
  %v2881 = vadd.f32 0.0, %v2880
  %2882 = vdwg.mxu0
  %2883 = vmatprep.subr.bf16.mxu0 %v664
  %2884 = vmatpush1.bf16.msra.mxu0 %v663
  %2885 = vmatprep.subr.bf16.mxu0 %v668
  %2886 = vmatpush1.bf16.msra.mxu0 %v667
  %2887 = vmatprep.subr.bf16.mxu0 %v672
  %2888 = vmatpush1.bf16.msra.mxu0 %v671
  %2889 = vmatprep.subr.bf16.mxu0 %v676
  %2890 = vmatpush1.bf16.msra.mxu0 %v675
  %2891 = vmatprep.subr.bf16.mxu0 %v680
  %2892 = vmatpush1.bf16.msra.mxu0 %v679
  %2893 = vmatprep.subr.bf16.mxu0 %v684
  %2894 = vmatpush1.bf16.msra.mxu0 %v683
  %2895 = vmatprep.subr.bf16.mxu0 %v688
  %2896 = vmatpush1.bf16.msra.mxu0 %v687
  %2897 = vmatprep.subr.bf16.mxu0 %v692
  %2898 = vmatpush1.bf16.msra.mxu0 %v691
  %2899 = vmatprep.subr.bf16.mxu0 0
  %2900 = vmatpush1.bf16.msra.mxu0 0
  %2901 = vmatprep.subr.bf16.mxu0 0
  %2902 = vmatpush1.bf16.msra.mxu0 0
  %2903 = vmatprep.subr.bf16.mxu0 0
  %2904 = vmatpush1.bf16.msra.mxu0 0
  %2905 = vmatprep.subr.bf16.mxu0 0
  %2906 = vmatpush1.bf16.msra.mxu0 0
  %2907 = vmatprep.subr.bf16.mxu0 0
  %2908 = vmatpush1.bf16.msra.mxu0 0
  %2909 = vmatprep.subr.bf16.mxu0 0
  %2910 = vmatpush1.bf16.msra.mxu0 0
  %2911 = vmatprep.subr.bf16.mxu0 0
  %2912 = vmatpush1.bf16.msra.mxu0 0
  %2913 = vmatprep.subr.bf16.mxu0 0
  %2914 = vmatpush1.bf16.msra.mxu0 0
  %2915 = vmatprep.mubr.bf16.mxu0 0
  %2916 = vmatmul.mubr.bf16.gmra.mrb[0].mxu0 %v2611
  %v2917 = vpop.f32.mrb[0].mxu0
  %v2918 = vadd.f32 0.0, %v2917
  %v2919 = vpop.f32.mrb[0].mxu0
  %v2920 = vadd.f32 0.0, %v2919
  %v2921 = vpop.f32.mrb[0].mxu0
  %v2922 = vadd.f32 0.0, %v2921
  %v2923 = vpop.f32.mrb[0].mxu0
  %v2924 = vadd.f32 0.0, %v2923
  %2925 = vdwg.mxu0
  %v2926 = vadd.f32 %v2832, %v2875
  %v2927 = vadd.f32 %v2833, %v2877
  %v2928 = vadd.f32 %v2834, %v2918
  %v2929 = vadd.f32 %v2835, %v2920
  %v2930 = vadd.f32 %v2836, %v2879
  %v2931 = vadd.f32 %v2837, %v2881
  %v2932 = vadd.f32 %v2838, %v2922
  %v2933 = vadd.f32 %v2839, %v2924
  %v2934 = vmul.f32 %v2926, 0.5
  %v2935 = vmul.f32 %v2930, 0.5
  %v2936 = vtanh.pop %v2934
  %v2937 = vtanh.pop %v2935
  %v2938 = vmul.f32 %v2936, 0.5
  %v2939 = vmul.f32 %v2937, 0.5
  %v2940 = vadd.f32 %v2938, 0.5
  %v2941 = vadd.f32 %v2939, 0.5
  %v2942 = vmul.f32 %v2927, 0.5
  %v2943 = vmul.f32 %v2931, 0.5
  %v2944 = vtanh.pop %v2942
  %v2945 = vtanh.pop %v2943
  %v2946 = vmul.f32 %v2944, 0.5
  %v2947 = vmul.f32 %v2945, 0.5
  %v2948 = vadd.f32 %v2946, 0.5
  %v2949 = vadd.f32 %v2947, 0.5
  %v2950 = vtanh.pop %v2928
  %v2951 = vtanh.pop %v2932
  %v2952 = vmul.f32 %v2929, 0.5
  %v2953 = vmul.f32 %v2933, 0.5
  %v2954 = vtanh.pop %v2952
  %v2955 = vtanh.pop %v2953
  %v2956 = vmul.f32 %v2954, 0.5
  %v2957 = vmul.f32 %v2955, 0.5
  %v2958 = vadd.f32 %v2956, 0.5
  %v2959 = vadd.f32 %v2957, 0.5
  %v2960 = vmul.f32 %v2948, %v2605
  %v2961 = vmul.f32 %v2949, %v2606
  %v2962 = vmul.f32 %v2940, %v2950
  %v2963 = vmul.f32 %v2941, %v2951
  %v2964 = vadd.f32 %v2960, %v2962
  %v2965 = vadd.f32 %v2961, %v2963
  %v2966 = vtanh.pop %v2964
  %v2967 = vtanh.pop %v2965
  %v2968 = vmul.f32 %v2958, %v2966
  %v2969 = vmul.f32 %v2959, %v2967
  %v2970 = vpack.c.bf16 %v2969, %v2968
  %2971 = vmatprep.subr.bf16.mxu0 %v953
  %2972 = vmatpush1.bf16.msra.mxu0 %v952
  %2973 = vmatprep.subr.bf16.mxu0 %v957
  %2974 = vmatpush1.bf16.msra.mxu0 %v956
  %2975 = vmatprep.subr.bf16.mxu0 %v961
  %2976 = vmatpush1.bf16.msra.mxu0 %v960
  %2977 = vmatprep.subr.bf16.mxu0 %v965
  %2978 = vmatpush1.bf16.msra.mxu0 %v964
  %2979 = vmatprep.subr.bf16.mxu0 %v969
  %2980 = vmatpush1.bf16.msra.mxu0 %v968
  %2981 = vmatprep.subr.bf16.mxu0 %v973
  %2982 = vmatpush1.bf16.msra.mxu0 %v972
  %2983 = vmatprep.subr.bf16.mxu0 %v977
  %2984 = vmatpush1.bf16.msra.mxu0 %v976
  %2985 = vmatprep.subr.bf16.mxu0 %v981
  %2986 = vmatpush1.bf16.msra.mxu0 %v980
  %2987 = vmatprep.subr.bf16.mxu0 0
  %2988 = vmatpush1.bf16.msra.mxu0 0
  %2989 = vmatprep.subr.bf16.mxu0 0
  %2990 = vmatpush1.bf16.msra.mxu0 0
  %2991 = vmatprep.subr.bf16.mxu0 0
  %2992 = vmatpush1.bf16.msra.mxu0 0
  %2993 = vmatprep.subr.bf16.mxu0 0
  %2994 = vmatpush1.bf16.msra.mxu0 0
  %2995 = vmatprep.subr.bf16.mxu0 0
  %2996 = vmatpush1.bf16.msra.mxu0 0
  %2997 = vmatprep.subr.bf16.mxu0 0
  %2998 = vmatpush1.bf16.msra.mxu0 0
  %2999 = vmatprep.subr.bf16.mxu0 0
  %3000 = vmatpush1.bf16.msra.mxu0 0
  %3001 = vmatprep.subr.bf16.mxu0 0
  %3002 = vmatpush1.bf16.msra.mxu0 0
  %3003 = vmatprep.mubr.bf16.mxu0 0
  %3004 = vmatmul.mubr.bf16.gmra.mrb[0].mxu0 %v2828
  %v3005 = vpop.f32.mrb[0].mxu0
  %v3006 = vadd.f32 0.0, %v3005
  %v3007 = vpop.f32.mrb[0].mxu0
  %v3008 = vadd.f32 0.0, %v3007
  %v3009 = vpop.f32.mrb[0].mxu0
  %v3010 = vadd.f32 0.0, %v3009
  %v3011 = vpop.f32.mrb[0].mxu0
  %v3012 = vadd.f32 0.0, %v3011
  %3013 = vdwg.mxu0
  %3014 = vmatprep.subr.bf16.mxu0 %v955
  %3015 = vmatpush1.bf16.msra.mxu0 %v954
  %3016 = vmatprep.subr.bf16.mxu0 %v959
  %3017 = vmatpush1.bf16.msra.mxu0 %v958
  %3018 = vmatprep.subr.bf16.mxu0 %v963
  %3019 = vmatpush1.bf16.msra.mxu0 %v962
  %3020 = vmatprep.subr.bf16.mxu0 %v967
  %3021 = vmatpush1.bf16.msra.mxu0 %v966
  %3022 = vmatprep.subr.bf16.mxu0 %v971
  %3023 = vmatpush1.bf16.msra.mxu0 %v970
  %3024 = vmatprep.subr.bf16.mxu0 %v975
  %3025 = vmatpush1.bf16.msra.mxu0 %v974
  %3026 = vmatprep.subr.bf16.mxu0 %v979
  %3027 = vmatpush1.bf16.msra.mxu0 %v978
  %3028 = vmatprep.subr.bf16.mxu0 %v983
  %3029 = vmatpush1.bf16.msra.mxu0 %v982
  %3030 = vmatprep.subr.bf16.mxu0 0
  %3031 = vmatpush1.bf16.msra.mxu0 0
  %3032 = vmatprep.subr.bf16.mxu0 0
  %3033 = vmatpush1.bf16.msra.mxu0 0
  %3034 = vmatprep.subr.bf16.mxu0 0
  %3035 = vmatpush1.bf16.msra.mxu0 0
  %3036 = vmatprep.subr.bf16.mxu0 0
  %3037 = vmatpush1.bf16.msra.mxu0 0
  %3038 = vmatprep.subr.bf16.mxu0 0
  %3039 = vmatpush1.bf16.msra.mxu0 0
  %3040 = vmatprep.subr.bf16.mxu0 0
  %3041 = vmatpush1.bf16.msra.mxu0 0
  %3042 = vmatprep.subr.bf16.mxu0 0
  %3043 = vmatpush1.bf16.msra.mxu0 0
  %3044 = vmatprep.subr.bf16.mxu0 0
  %3045 = vmatpush1.bf16.msra.mxu0 0
  %3046 = vmatprep.mubr.bf16.mxu0 0
  %3047 = vmatmul.mubr.bf16.gmra.mrb[0].mxu0 %v2828
  %v3048 = vpop.f32.mrb[0].mxu0
  %v3049 = vadd.f32 0.0, %v3048
  %v3050 = vpop.f32.mrb[0].mxu0
  %v3051 = vadd.f32 0.0, %v3050
  %v3052 = vpop.f32.mrb[0].mxu0
  %v3053 = vadd.f32 0.0, %v3052
  %v3054 = vpop.f32.mrb[0].mxu0
  %v3055 = vadd.f32 0.0, %v3054
  %3056 = vdwg.mxu0
  %3057 = vmatprep.subr.bf16.mxu0 %v1199
  %3058 = vmatpush1.bf16.msra.mxu0 %v1198
  %3059 = vmatprep.subr.bf16.mxu0 %v1203
  %3060 = vmatpush1.bf16.msra.mxu0 %v1202
  %3061 = vmatprep.subr.bf16.mxu0 %v1207
  %3062 = vmatpush1.bf16.msra.mxu0 %v1206
  %3063 = vmatprep.subr.bf16.mxu0 %v1211
  %3064 = vmatpush1.bf16.msra.mxu0 %v1210
  %3065 = vmatprep.subr.bf16.mxu0 %v1215
  %3066 = vmatpush1.bf16.msra.mxu0 %v1214
  %3067 = vmatprep.subr.bf16.mxu0 %v1219
  %3068 = vmatpush1.bf16.msra.mxu0 %v1218
  %3069 = vmatprep.subr.bf16.mxu0 %v1223
  %3070 = vmatpush1.bf16.msra.mxu0 %v1222
  %3071 = vmatprep.subr.bf16.mxu0 %v1227
  %3072 = vmatpush1.bf16.msra.mxu0 %v1226
  %3073 = vmatprep.subr.bf16.mxu0 0
  %3074 = vmatpush1.bf16.msra.mxu0 0
  %3075 = vmatprep.subr.bf16.mxu0 0
  %3076 = vmatpush1.bf16.msra.mxu0 0
  %3077 = vmatprep.subr.bf16.mxu0 0
  %3078 = vmatpush1.bf16.msra.mxu0 0
  %3079 = vmatprep.subr.bf16.mxu0 0
  %3080 = vmatpush1.bf16.msra.mxu0 0
  %3081 = vmatprep.subr.bf16.mxu0 0
  %3082 = vmatpush1.bf16.msra.mxu0 0
  %3083 = vmatprep.subr.bf16.mxu0 0
  %3084 = vmatpush1.bf16.msra.mxu0 0
  %3085 = vmatprep.subr.bf16.mxu0 0
  %3086 = vmatpush1.bf16.msra.mxu0 0
  %3087 = vmatprep.subr.bf16.mxu0 0
  %3088 = vmatpush1.bf16.msra.mxu0 0
  %3089 = vmatprep.mubr.bf16.mxu0 0
  %3090 = vmatmul.mubr.bf16.gmra.mrb[0].mxu0 %v2970
  %v3091 = vpop.f32.mrb[0].mxu0
  %v3092 = vadd.f32 %v3006, %v3091
  %v3093 = vpop.f32.mrb[0].mxu0
  %v3094 = vadd.f32 %v3008, %v3093
  %v3095 = vpop.f32.mrb[0].mxu0
  %v3096 = vadd.f32 %v3010, %v3095
  %v3097 = vpop.f32.mrb[0].mxu0
  %v3098 = vadd.f32 %v3012, %v3097
  %3099 = vdwg.mxu0
  %3100 = vmatprep.subr.bf16.mxu0 %v1201
  %3101 = vmatpush1.bf16.msra.mxu0 %v1200
  %3102 = vmatprep.subr.bf16.mxu0 %v1205
  %3103 = vmatpush1.bf16.msra.mxu0 %v1204
  %3104 = vmatprep.subr.bf16.mxu0 %v1209
  %3105 = vmatpush1.bf16.msra.mxu0 %v1208
  %3106 = vmatprep.subr.bf16.mxu0 %v1213
  %3107 = vmatpush1.bf16.msra.mxu0 %v1212
  %3108 = vmatprep.subr.bf16.mxu0 %v1217
  %3109 = vmatpush1.bf16.msra.mxu0 %v1216
  %3110 = vmatprep.subr.bf16.mxu0 %v1221
  %3111 = vmatpush1.bf16.msra.mxu0 %v1220
  %3112 = vmatprep.subr.bf16.mxu0 %v1225
  %3113 = vmatpush1.bf16.msra.mxu0 %v1224
  %3114 = vmatprep.subr.bf16.mxu0 %v1229
  %3115 = vmatpush1.bf16.msra.mxu0 %v1228
  %3116 = vmatprep.subr.bf16.mxu0 0
  %3117 = vmatpush1.bf16.msra.mxu0 0
  %3118 = vmatprep.subr.bf16.mxu0 0
  %3119 = vmatpush1.bf16.msra.mxu0 0
  %3120 = vmatprep.subr.bf16.mxu0 0
  %3121 = vmatpush1.bf16.msra.mxu0 0
  %3122 = vmatprep.subr.bf16.mxu0 0
  %3123 = vmatpush1.bf16.msra.mxu0 0
  %3124 = vmatprep.subr.bf16.mxu0 0
  %3125 = vmatpush1.bf16.msra.mxu0 0
  %3126 = vmatprep.subr.bf16.mxu0 0
  %3127 = vmatpush1.bf16.msra.mxu0 0
  %3128 = vmatprep.subr.bf16.mxu0 0
  %3129 = vmatpush1.bf16.msra.mxu0 0
  %3130 = vmatprep.subr.bf16.mxu0 0
  %3131 = vmatpush1.bf16.msra.mxu0 0
  %3132 = vmatprep.mubr.bf16.mxu0 0
  %3133 = vmatmul.mubr.bf16.gmra.mrb[0].mxu0 %v2970
  %v3134 = vpop.f32.mrb[0].mxu0
  %v3135 = vadd.f32 %v3049, %v3134
  %v3136 = vpop.f32.mrb[0].mxu0
  %v3137 = vadd.f32 %v3051, %v3136
  %v3138 = vpop.f32.mrb[0].mxu0
  %v3139 = vadd.f32 %v3053, %v3138
  %v3140 = vpop.f32.mrb[0].mxu0
  %v3141 = vadd.f32 %v3055, %v3140
  %3142 = vdwg.mxu0
  %v3143 = vadd.f32 %v3092, %v537
  %v3144 = vadd.f32 %v3094, %v541
  %v3145 = vadd.f32 %v3135, %v545
  %v3146 = vadd.f32 %v3137, %v549
  %v3147 = vadd.f32 %v3096, %v537
  %v3148 = vadd.f32 %v3098, %v541
  %v3149 = vadd.f32 %v3139, %v545
  %v3150 = vadd.f32 %v3141, %v549
  %v3151 = vmul.f32 %v3143, 0.5
  %v3152 = vmul.f32 %v3147, 0.5
  %v3153 = vtanh.pop %v3151
  %v3154 = vtanh.pop %v3152
  %v3155 = vmul.f32 %v3153, 0.5
  %v3156 = vmul.f32 %v3154, 0.5
  %v3157 = vadd.f32 %v3155, 0.5
  %v3158 = vadd.f32 %v3156, 0.5
  %v3159 = vmul.f32 %v3144, 0.5
  %v3160 = vmul.f32 %v3148, 0.5
  %v3161 = vtanh.pop %v3159
  %v3162 = vtanh.pop %v3160
  %v3163 = vmul.f32 %v3161, 0.5
  %v3164 = vmul.f32 %v3162, 0.5
  %v3165 = vadd.f32 %v3163, 0.5
  %v3166 = vadd.f32 %v3164, 0.5
  %v3167 = vtanh.pop %v3145
  %v3168 = vtanh.pop %v3149
  %v3169 = vmul.f32 %v3146, 0.5
  %v3170 = vmul.f32 %v3150, 0.5
  %v3171 = vtanh.pop %v3169
  %v3172 = vtanh.pop %v3170
  %v3173 = vmul.f32 %v3171, 0.5
  %v3174 = vmul.f32 %v3172, 0.5
  %v3175 = vadd.f32 %v3173, 0.5
  %v3176 = vadd.f32 %v3174, 0.5
  %v3177 = vmul.f32 %v3165, %v2822
  %v3178 = vmul.f32 %v3166, %v2823
  %v3179 = vmul.f32 %v3157, %v3167
  %v3180 = vmul.f32 %v3158, %v3168
  %v3181 = vadd.f32 %v3177, %v3179
  %v3182 = vadd.f32 %v3178, %v3180
  %v3183 = vtanh.pop %v3181
  %v3184 = vtanh.pop %v3182
  %v3185 = vmul.f32 %v3175, %v3183
  %v3186 = vmul.f32 %v3176, %v3184
  %v3187 = vpack.c.bf16 %v3186, %v3185
  %s3188 = smul.u32 12, 4
  %s3189 = smul.addr %s3188, 8
  %s3190 = scalar_lea.vmem [#allocation2], %s3189
  %v3191 = vld [vmem:[%s3190] sm:$0xff]
  %v3192 = vld [vmem:[%s3190 + $0x8] sm:$0xff]
  %v3193 = vld [vmem:[%s3190 + $0x10] sm:$0xff]
  %v3194 = vld [vmem:[%s3190 + $0x18] sm:$0xff]
  %v3195 = vld [vmem:[%s3190 + $0x20] sm:$0xff]
  %v3196 = vld [vmem:[%s3190 + $0x28] sm:$0xff]
  %v3197 = vld [vmem:[%s3190 + $0x30] sm:$0xff]
  %v3198 = vld [vmem:[%s3190 + $0x38] sm:$0xff]
  %3199 = vmatprep.subr.bf16.mxu0 %v662
  %3200 = vmatpush1.bf16.msra.mxu0 %v661
  %3201 = vmatprep.subr.bf16.mxu0 %v666
  %3202 = vmatpush1.bf16.msra.mxu0 %v665
  %3203 = vmatprep.subr.bf16.mxu0 %v670
  %3204 = vmatpush1.bf16.msra.mxu0 %v669
  %3205 = vmatprep.subr.bf16.mxu0 %v674
  %3206 = vmatpush1.bf16.msra.mxu0 %v673
  %3207 = vmatprep.subr.bf16.mxu0 %v678
  %3208 = vmatpush1.bf16.msra.mxu0 %v677
  %3209 = vmatprep.subr.bf16.mxu0 %v682
  %3210 = vmatpush1.bf16.msra.mxu0 %v681
  %3211 = vmatprep.subr.bf16.mxu0 %v686
  %3212 = vmatpush1.bf16.msra.mxu0 %v685
  %3213 = vmatprep.subr.bf16.mxu0 %v690
  %3214 = vmatpush1.bf16.msra.mxu0 %v689
  %3215 = vmatprep.subr.bf16.mxu0 0
  %3216 = vmatpush1.bf16.msra.mxu0 0
  %3217 = vmatprep.subr.bf16.mxu0 0
  %3218 = vmatpush1.bf16.msra.mxu0 0
  %3219 = vmatprep.subr.bf16.mxu0 0
  %3220 = vmatpush1.bf16.msra.mxu0 0
  %3221 = vmatprep.subr.bf16.mxu0 0
  %3222 = vmatpush1.bf16.msra.mxu0 0
  %3223 = vmatprep.subr.bf16.mxu0 0
  %3224 = vmatpush1.bf16.msra.mxu0 0
  %3225 = vmatprep.subr.bf16.mxu0 0
  %3226 = vmatpush1.bf16.msra.mxu0 0
  %3227 = vmatprep.subr.bf16.mxu0 0
  %3228 = vmatpush1.bf16.msra.mxu0 0
  %3229 = vmatprep.subr.bf16.mxu0 0
  %3230 = vmatpush1.bf16.msra.mxu0 0
  %3231 = vmatprep.mubr.bf16.mxu0 0
  %3232 = vmatmul.mubr.bf16.gmra.mrb[0].mxu0 %v2970
  %v3233 = vpop.f32.mrb[0].mxu0
  %v3234 = vadd.f32 0.0, %v3233
  %v3235 = vpop.f32.mrb[0].mxu0
  %v3236 = vadd.f32 0.0, %v3235
  %v3237 = vpop.f32.mrb[0].mxu0
  %v3238 = vadd.f32 0.0, %v3237
  %v3239 = vpop.f32.mrb[0].mxu0
  %v3240 = vadd.f32 0.0, %v3239
  %3241 = vdwg.mxu0
  %3242 = vmatprep.subr.bf16.mxu0 %v664
  %3243 = vmatpush1.bf16.msra.mxu0 %v663
  %3244 = vmatprep.subr.bf16.mxu0 %v668
  %3245 = vmatpush1.bf16.msra.mxu0 %v667
  %3246 = vmatprep.subr.bf16.mxu0 %v672
  %3247 = vmatpush1.bf16.msra.mxu0 %v671
  %3248 = vmatprep.subr.bf16.mxu0 %v676
  %3249 = vmatpush1.bf16.msra.mxu0 %v675
  %3250 = vmatprep.subr.bf16.mxu0 %v680
  %3251 = vmatpush1.bf16.msra.mxu0 %v679
  %3252 = vmatprep.subr.bf16.mxu0 %v684
  %3253 = vmatpush1.bf16.msra.mxu0 %v683
  %3254 = vmatprep.subr.bf16.mxu0 %v688
  %3255 = vmatpush1.bf16.msra.mxu0 %v687
  %3256 = vmatprep.subr.bf16.mxu0 %v692
  %3257 = vmatpush1.bf16.msra.mxu0 %v691
  %3258 = vmatprep.subr.bf16.mxu0 0
  %3259 = vmatpush1.bf16.msra.mxu0 0
  %3260 = vmatprep.subr.bf16.mxu0 0
  %3261 = vmatpush1.bf16.msra.mxu0 0
  %3262 = vmatprep.subr.bf16.mxu0 0
  %3263 = vmatpush1.bf16.msra.mxu0 0
  %3264 = vmatprep.subr.bf16.mxu0 0
  %3265 = vmatpush1.bf16.msra.mxu0 0
  %3266 = vmatprep.subr.bf16.mxu0 0
  %3267 = vmatpush1.bf16.msra.mxu0 0
  %3268 = vmatprep.subr.bf16.mxu0 0
  %3269 = vmatpush1.bf16.msra.mxu0 0
  %3270 = vmatprep.subr.bf16.mxu0 0
  %3271 = vmatpush1.bf16.msra.mxu0 0
  %3272 = vmatprep.subr.bf16.mxu0 0
  %3273 = vmatpush1.bf16.msra.mxu0 0
  %3274 = vmatprep.mubr.bf16.mxu0 0
  %3275 = vmatmul.mubr.bf16.gmra.mrb[0].mxu0 %v2970
  %v3276 = vpop.f32.mrb[0].mxu0
  %v3277 = vadd.f32 0.0, %v3276
  %v3278 = vpop.f32.mrb[0].mxu0
  %v3279 = vadd.f32 0.0, %v3278
  %v3280 = vpop.f32.mrb[0].mxu0
  %v3281 = vadd.f32 0.0, %v3280
  %v3282 = vpop.f32.mrb[0].mxu0
  %v3283 = vadd.f32 0.0, %v3282
  %3284 = vdwg.mxu0
  %v3285 = vadd.f32 %v3191, %v3234
  %v3286 = vadd.f32 %v3192, %v3236
  %v3287 = vadd.f32 %v3193, %v3277
  %v3288 = vadd.f32 %v3194, %v3279
  %v3289 = vadd.f32 %v3195, %v3238
  %v3290 = vadd.f32 %v3196, %v3240
  %v3291 = vadd.f32 %v3197, %v3281
  %v3292 = vadd.f32 %v3198, %v3283
  %v3293 = vmul.f32 %v3285, 0.5
  %v3294 = vmul.f32 %v3289, 0.5
  %v3295 = vtanh.pop %v3293
  %v3296 = vtanh.pop %v3294
  %v3297 = vmul.f32 %v3295, 0.5
  %v3298 = vmul.f32 %v3296, 0.5
  %v3299 = vadd.f32 %v3297, 0.5
  %v3300 = vadd.f32 %v3298, 0.5
  %v3301 = vmul.f32 %v3286, 0.5
  %v3302 = vmul.f32 %v3290, 0.5
  %v3303 = vtanh.pop %v3301
  %v3304 = vtanh.pop %v3302
  %v3305 = vmul.f32 %v3303, 0.5
  %v3306 = vmul.f32 %v3304, 0.5
  %v3307 = vadd.f32 %v3305, 0.5
  %v3308 = vadd.f32 %v3306, 0.5
  %v3309 = vtanh.pop %v3287
  %v3310 = vtanh.pop %v3291
  %v3311 = vmul.f32 %v3288, 0.5
  %v3312 = vmul.f32 %v3292, 0.5
  %v3313 = vtanh.pop %v3311
  %v3314 = vtanh.pop %v3312
  %v3315 = vmul.f32 %v3313, 0.5
  %v3316 = vmul.f32 %v3314, 0.5
  %v3317 = vadd.f32 %v3315, 0.5
  %v3318 = vadd.f32 %v3316, 0.5
  %v3319 = vmul.f32 %v3307, %v2964
  %v3320 = vmul.f32 %v3308, %v2965
  %v3321 = vmul.f32 %v3299, %v3309
  %v3322 = vmul.f32 %v3300, %v3310
  %v3323 = vadd.f32 %v3319, %v3321
  %v3324 = vadd.f32 %v3320, %v3322
  %v3325 = vtanh.pop %v3323
  %v3326 = vtanh.pop %v3324
  %v3327 = vmul.f32 %v3317, %v3325
  %v3328 = vmul.f32 %v3318, %v3326
  %v3329 = vpack.c.bf16 %v3328, %v3327
  %3330 = vmatprep.subr.bf16.mxu0 %v953
  %3331 = vmatpush1.bf16.msra.mxu0 %v952
  %3332 = vmatprep.subr.bf16.mxu0 %v957
  %3333 = vmatpush1.bf16.msra.mxu0 %v956
  %3334 = vmatprep.subr.bf16.mxu0 %v961
  %3335 = vmatpush1.bf16.msra.mxu0 %v960
  %3336 = vmatprep.subr.bf16.mxu0 %v965
  %3337 = vmatpush1.bf16.msra.mxu0 %v964
  %3338 = vmatprep.subr.bf16.mxu0 %v969
  %3339 = vmatpush1.bf16.msra.mxu0 %v968
  %3340 = vmatprep.subr.bf16.mxu0 %v973
  %3341 = vmatpush1.bf16.msra.mxu0 %v972
  %3342 = vmatprep.subr.bf16.mxu0 %v977
  %3343 = vmatpush1.bf16.msra.mxu0 %v976
  %3344 = vmatprep.subr.bf16.mxu0 %v981
  %3345 = vmatpush1.bf16.msra.mxu0 %v980
  %3346 = vmatprep.subr.bf16.mxu0 0
  %3347 = vmatpush1.bf16.msra.mxu0 0
  %3348 = vmatprep.subr.bf16.mxu0 0
  %3349 = vmatpush1.bf16.msra.mxu0 0
  %3350 = vmatprep.subr.bf16.mxu0 0
  %3351 = vmatpush1.bf16.msra.mxu0 0
  %3352 = vmatprep.subr.bf16.mxu0 0
  %3353 = vmatpush1.bf16.msra.mxu0 0
  %3354 = vmatprep.subr.bf16.mxu0 0
  %3355 = vmatpush1.bf16.msra.mxu0 0
  %3356 = vmatprep.subr.bf16.mxu0 0
  %3357 = vmatpush1.bf16.msra.mxu0 0
  %3358 = vmatprep.subr.bf16.mxu0 0
  %3359 = vmatpush1.bf16.msra.mxu0 0
  %3360 = vmatprep.subr.bf16.mxu0 0
  %3361 = vmatpush1.bf16.msra.mxu0 0
  %3362 = vmatprep.mubr.bf16.mxu0 0
  %3363 = vmatmul.mubr.bf16.gmra.mrb[0].mxu0 %v3187
  %v3364 = vpop.f32.mrb[0].mxu0
  %v3365 = vadd.f32 0.0, %v3364
  %v3366 = vpop.f32.mrb[0].mxu0
  %v3367 = vadd.f32 0.0, %v3366
  %v3368 = vpop.f32.mrb[0].mxu0
  %v3369 = vadd.f32 0.0, %v3368
  %v3370 = vpop.f32.mrb[0].mxu0
  %v3371 = vadd.f32 0.0, %v3370
  %3372 = vdwg.mxu0
  %3373 = vmatprep.subr.bf16.mxu0 %v955
  %3374 = vmatpush1.bf16.msra.mxu0 %v954
  %3375 = vmatprep.subr.bf16.mxu0 %v959
  %3376 = vmatpush1.bf16.msra.mxu0 %v958
  %3377 = vmatprep.subr.bf16.mxu0 %v963
  %3378 = vmatpush1.bf16.msra.mxu0 %v962
  %3379 = vmatprep.subr.bf16.mxu0 %v967
  %3380 = vmatpush1.bf16.msra.mxu0 %v966
  %3381 = vmatprep.subr.bf16.mxu0 %v971
  %3382 = vmatpush1.bf16.msra.mxu0 %v970
  %3383 = vmatprep.subr.bf16.mxu0 %v975
  %3384 = vmatpush1.bf16.msra.mxu0 %v974
  %3385 = vmatprep.subr.bf16.mxu0 %v979
  %3386 = vmatpush1.bf16.msra.mxu0 %v978
  %3387 = vmatprep.subr.bf16.mxu0 %v983
  %3388 = vmatpush1.bf16.msra.mxu0 %v982
  %3389 = vmatprep.subr.bf16.mxu0 0
  %3390 = vmatpush1.bf16.msra.mxu0 0
  %3391 = vmatprep.subr.bf16.mxu0 0
  %3392 = vmatpush1.bf16.msra.mxu0 0
  %3393 = vmatprep.subr.bf16.mxu0 0
  %3394 = vmatpush1.bf16.msra.mxu0 0
  %3395 = vmatprep.subr.bf16.mxu0 0
  %3396 = vmatpush1.bf16.msra.mxu0 0
  %3397 = vmatprep.subr.bf16.mxu0 0
  %3398 = vmatpush1.bf16.msra.mxu0 0
  %3399 = vmatprep.subr.bf16.mxu0 0
  %3400 = vmatpush1.bf16.msra.mxu0 0
  %3401 = vmatprep.subr.bf16.mxu0 0
  %3402 = vmatpush1.bf16.msra.mxu0 0
  %3403 = vmatprep.subr.bf16.mxu0 0
  %3404 = vmatpush1.bf16.msra.mxu0 0
  %3405 = vmatprep.mubr.bf16.mxu0 0
  %3406 = vmatmul.mubr.bf16.gmra.mrb[0].mxu0 %v3187
  %v3407 = vpop.f32.mrb[0].mxu0
  %v3408 = vadd.f32 0.0, %v3407
  %v3409 = vpop.f32.mrb[0].mxu0
  %v3410 = vadd.f32 0.0, %v3409
  %v3411 = vpop.f32.mrb[0].mxu0
  %v3412 = vadd.f32 0.0, %v3411
  %v3413 = vpop.f32.mrb[0].mxu0
  %v3414 = vadd.f32 0.0, %v3413
  %3415 = vdwg.mxu0
  %3416 = vmatprep.subr.bf16.mxu0 %v1199
  %3417 = vmatpush1.bf16.msra.mxu0 %v1198
  %3418 = vmatprep.subr.bf16.mxu0 %v1203
  %3419 = vmatpush1.bf16.msra.mxu0 %v1202
  %3420 = vmatprep.subr.bf16.mxu0 %v1207
  %3421 = vmatpush1.bf16.msra.mxu0 %v1206
  %3422 = vmatprep.subr.bf16.mxu0 %v1211
  %3423 = vmatpush1.bf16.msra.mxu0 %v1210
  %3424 = vmatprep.subr.bf16.mxu0 %v1215
  %3425 = vmatpush1.bf16.msra.mxu0 %v1214
  %3426 = vmatprep.subr.bf16.mxu0 %v1219
  %3427 = vmatpush1.bf16.msra.mxu0 %v1218
  %3428 = vmatprep.subr.bf16.mxu0 %v1223
  %3429 = vmatpush1.bf16.msra.mxu0 %v1222
  %3430 = vmatprep.subr.bf16.mxu0 %v1227
  %3431 = vmatpush1.bf16.msra.mxu0 %v1226
  %3432 = vmatprep.subr.bf16.mxu0 0
  %3433 = vmatpush1.bf16.msra.mxu0 0
  %3434 = vmatprep.subr.bf16.mxu0 0
  %3435 = vmatpush1.bf16.msra.mxu0 0
  %3436 = vmatprep.subr.bf16.mxu0 0
  %3437 = vmatpush1.bf16.msra.mxu0 0
  %3438 = vmatprep.subr.bf16.mxu0 0
  %3439 = vmatpush1.bf16.msra.mxu0 0
  %3440 = vmatprep.subr.bf16.mxu0 0
  %3441 = vmatpush1.bf16.msra.mxu0 0
  %3442 = vmatprep.subr.bf16.mxu0 0
  %3443 = vmatpush1.bf16.msra.mxu0 0
  %3444 = vmatprep.subr.bf16.mxu0 0
  %3445 = vmatpush1.bf16.msra.mxu0 0
  %3446 = vmatprep.subr.bf16.mxu0 0
  %3447 = vmatpush1.bf16.msra.mxu0 0
  %3448 = vmatprep.mubr.bf16.mxu0 0
  %3449 = vmatmul.mubr.bf16.gmra.mrb[0].mxu0 %v3329
  %v3450 = vpop.f32.mrb[0].mxu0
  %v3451 = vadd.f32 %v3365, %v3450
  %v3452 = vpop.f32.mrb[0].mxu0
  %v3453 = vadd.f32 %v3367, %v3452
  %v3454 = vpop.f32.mrb[0].mxu0
  %v3455 = vadd.f32 %v3369, %v3454
  %v3456 = vpop.f32.mrb[0].mxu0
  %v3457 = vadd.f32 %v3371, %v3456
  %3458 = vdwg.mxu0
  %3459 = vmatprep.subr.bf16.mxu0 %v1201
  %3460 = vmatpush1.bf16.msra.mxu0 %v1200
  %3461 = vmatprep.subr.bf16.mxu0 %v1205
  %3462 = vmatpush1.bf16.msra.mxu0 %v1204
  %3463 = vmatprep.subr.bf16.mxu0 %v1209
  %3464 = vmatpush1.bf16.msra.mxu0 %v1208
  %3465 = vmatprep.subr.bf16.mxu0 %v1213
  %3466 = vmatpush1.bf16.msra.mxu0 %v1212
  %3467 = vmatprep.subr.bf16.mxu0 %v1217
  %3468 = vmatpush1.bf16.msra.mxu0 %v1216
  %3469 = vmatprep.subr.bf16.mxu0 %v1221
  %3470 = vmatpush1.bf16.msra.mxu0 %v1220
  %3471 = vmatprep.subr.bf16.mxu0 %v1225
  %3472 = vmatpush1.bf16.msra.mxu0 %v1224
  %3473 = vmatprep.subr.bf16.mxu0 %v1229
  %3474 = vmatpush1.bf16.msra.mxu0 %v1228
  %3475 = vmatprep.subr.bf16.mxu0 0
  %3476 = vmatpush1.bf16.msra.mxu0 0
  %3477 = vmatprep.subr.bf16.mxu0 0
  %3478 = vmatpush1.bf16.msra.mxu0 0
  %3479 = vmatprep.subr.bf16.mxu0 0
  %3480 = vmatpush1.bf16.msra.mxu0 0
  %3481 = vmatprep.subr.bf16.mxu0 0
  %3482 = vmatpush1.bf16.msra.mxu0 0
  %3483 = vmatprep.subr.bf16.mxu0 0
  %3484 = vmatpush1.bf16.msra.mxu0 0
  %3485 = vmatprep.subr.bf16.mxu0 0
  %3486 = vmatpush1.bf16.msra.mxu0 0
  %3487 = vmatprep.subr.bf16.mxu0 0
  %3488 = vmatpush1.bf16.msra.mxu0 0
  %3489 = vmatprep.subr.bf16.mxu0 0
  %3490 = vmatpush1.bf16.msra.mxu0 0
  %3491 = vmatprep.mubr.bf16.mxu0 0
  %3492 = vmatmul.mubr.bf16.gmra.mrb[0].mxu0 %v3329
  %v3493 = vpop.f32.mrb[0].mxu0
  %v3494 = vadd.f32 %v3408, %v3493
  %v3495 = vpop.f32.mrb[0].mxu0
  %v3496 = vadd.f32 %v3410, %v3495
  %v3497 = vpop.f32.mrb[0].mxu0
  %v3498 = vadd.f32 %v3412, %v3497
  %v3499 = vpop.f32.mrb[0].mxu0
  %v3500 = vadd.f32 %v3414, %v3499
  %3501 = vdwg.mxu0
  %v3502 = vadd.f32 %v3451, %v537
  %v3503 = vadd.f32 %v3453, %v541
  %v3504 = vadd.f32 %v3494, %v545
  %v3505 = vadd.f32 %v3496, %v549
  %v3506 = vadd.f32 %v3455, %v537
  %v3507 = vadd.f32 %v3457, %v541
  %v3508 = vadd.f32 %v3498, %v545
  %v3509 = vadd.f32 %v3500, %v549
  %v3510 = vmul.f32 %v3502, 0.5
  %v3511 = vmul.f32 %v3506, 0.5
  %v3512 = vtanh.pop %v3510
  %v3513 = vtanh.pop %v3511
  %v3514 = vmul.f32 %v3512, 0.5
  %v3515 = vmul.f32 %v3513, 0.5
  %v3516 = vadd.f32 %v3514, 0.5
  %v3517 = vadd.f32 %v3515, 0.5
  %v3518 = vmul.f32 %v3503, 0.5
  %v3519 = vmul.f32 %v3507, 0.5
  %v3520 = vtanh.pop %v3518
  %v3521 = vtanh.pop %v3519
  %v3522 = vmul.f32 %v3520, 0.5
  %v3523 = vmul.f32 %v3521, 0.5
  %v3524 = vadd.f32 %v3522, 0.5
  %v3525 = vadd.f32 %v3523, 0.5
  %v3526 = vtanh.pop %v3504
  %v3527 = vtanh.pop %v3508
  %v3528 = vmul.f32 %v3505, 0.5
  %v3529 = vmul.f32 %v3509, 0.5
  %v3530 = vtanh.pop %v3528
  %v3531 = vtanh.pop %v3529
  %v3532 = vmul.f32 %v3530, 0.5
  %v3533 = vmul.f32 %v3531, 0.5
  %v3534 = vadd.f32 %v3532, 0.5
  %v3535 = vadd.f32 %v3533, 0.5
  %v3536 = vmul.f32 %v3524, %v3181
  %v3537 = vmul.f32 %v3525, %v3182
  %v3538 = vmul.f32 %v3516, %v3526
  %v3539 = vmul.f32 %v3517, %v3527
  %v3540 = vadd.f32 %v3536, %v3538
  %v3541 = vadd.f32 %v3537, %v3539
  %v3542 = vtanh.pop %v3540
  %v3543 = vtanh.pop %v3541
  %v3544 = vmul.f32 %v3534, %v3542
  %v3545 = vmul.f32 %v3535, %v3543
  %v3546 = vpack.c.bf16 %v3545, %v3544
  %s3547 = smul.u32 14, 4
  %s3548 = smul.addr %s3547, 8
  %s3549 = scalar_lea.vmem [#allocation2], %s3548
  %v3550 = vld [vmem:[%s3549] sm:$0xff]
  %v3551 = vld [vmem:[%s3549 + $0x8] sm:$0xff]
  %v3552 = vld [vmem:[%s3549 + $0x10] sm:$0xff]
  %v3553 = vld [vmem:[%s3549 + $0x18] sm:$0xff]
  %v3554 = vld [vmem:[%s3549 + $0x20] sm:$0xff]
  %v3555 = vld [vmem:[%s3549 + $0x28] sm:$0xff]
  %v3556 = vld [vmem:[%s3549 + $0x30] sm:$0xff]
  %v3557 = vld [vmem:[%s3549 + $0x38] sm:$0xff]
  %3558 = vmatprep.subr.bf16.mxu0 %v662
  %3559 = vmatpush1.bf16.msra.mxu0 %v661
  %3560 = vmatprep.subr.bf16.mxu0 %v666
  %3561 = vmatpush1.bf16.msra.mxu0 %v665
  %3562 = vmatprep.subr.bf16.mxu0 %v670
  %3563 = vmatpush1.bf16.msra.mxu0 %v669
  %3564 = vmatprep.subr.bf16.mxu0 %v674
  %3565 = vmatpush1.bf16.msra.mxu0 %v673
  %3566 = vmatprep.subr.bf16.mxu0 %v678
  %3567 = vmatpush1.bf16.msra.mxu0 %v677
  %3568 = vmatprep.subr.bf16.mxu0 %v682
  %3569 = vmatpush1.bf16.msra.mxu0 %v681
  %3570 = vmatprep.subr.bf16.mxu0 %v686
  %3571 = vmatpush1.bf16.msra.mxu0 %v685
  %3572 = vmatprep.subr.bf16.mxu0 %v690
  %3573 = vmatpush1.bf16.msra.mxu0 %v689
  %3574 = vmatprep.subr.bf16.mxu0 0
  %3575 = vmatpush1.bf16.msra.mxu0 0
  %3576 = vmatprep.subr.bf16.mxu0 0
  %3577 = vmatpush1.bf16.msra.mxu0 0
  %3578 = vmatprep.subr.bf16.mxu0 0
  %3579 = vmatpush1.bf16.msra.mxu0 0
  %3580 = vmatprep.subr.bf16.mxu0 0
  %3581 = vmatpush1.bf16.msra.mxu0 0
  %3582 = vmatprep.subr.bf16.mxu0 0
  %3583 = vmatpush1.bf16.msra.mxu0 0
  %3584 = vmatprep.subr.bf16.mxu0 0
  %3585 = vmatpush1.bf16.msra.mxu0 0
  %3586 = vmatprep.subr.bf16.mxu0 0
  %3587 = vmatpush1.bf16.msra.mxu0 0
  %3588 = vmatprep.subr.bf16.mxu0 0
  %3589 = vmatpush1.bf16.msra.mxu0 0
  %3590 = vmatprep.mubr.bf16.mxu0 0
  %3591 = vmatmul.mubr.bf16.gmra.mrb[0].mxu0 %v3329
  %v3592 = vpop.f32.mrb[0].mxu0
  %v3593 = vadd.f32 0.0, %v3592
  %v3594 = vpop.f32.mrb[0].mxu0
  %v3595 = vadd.f32 0.0, %v3594
  %v3596 = vpop.f32.mrb[0].mxu0
  %v3597 = vadd.f32 0.0, %v3596
  %v3598 = vpop.f32.mrb[0].mxu0
  %v3599 = vadd.f32 0.0, %v3598
  %3600 = vdwg.mxu0
  %3601 = vmatprep.subr.bf16.mxu0 %v664
  %3602 = vmatpush1.bf16.msra.mxu0 %v663
  %3603 = vmatprep.subr.bf16.mxu0 %v668
  %3604 = vmatpush1.bf16.msra.mxu0 %v667
  %3605 = vmatprep.subr.bf16.mxu0 %v672
  %3606 = vmatpush1.bf16.msra.mxu0 %v671
  %3607 = vmatprep.subr.bf16.mxu0 %v676
  %3608 = vmatpush1.bf16.msra.mxu0 %v675
  %3609 = vmatprep.subr.bf16.mxu0 %v680
  %3610 = vmatpush1.bf16.msra.mxu0 %v679
  %3611 = vmatprep.subr.bf16.mxu0 %v684
  %3612 = vmatpush1.bf16.msra.mxu0 %v683
  %3613 = vmatprep.subr.bf16.mxu0 %v688
  %3614 = vmatpush1.bf16.msra.mxu0 %v687
  %3615 = vmatprep.subr.bf16.mxu0 %v692
  %3616 = vmatpush1.bf16.msra.mxu0 %v691
  %3617 = vmatprep.subr.bf16.mxu0 0
  %3618 = vmatpush1.bf16.msra.mxu0 0
  %3619 = vmatprep.subr.bf16.mxu0 0
  %3620 = vmatpush1.bf16.msra.mxu0 0
  %3621 = vmatprep.subr.bf16.mxu0 0
  %3622 = vmatpush1.bf16.msra.mxu0 0
  %3623 = vmatprep.subr.bf16.mxu0 0
  %3624 = vmatpush1.bf16.msra.mxu0 0
  %3625 = vmatprep.subr.bf16.mxu0 0
  %3626 = vmatpush1.bf16.msra.mxu0 0
  %3627 = vmatprep.subr.bf16.mxu0 0
  %3628 = vmatpush1.bf16.msra.mxu0 0
  %3629 = vmatprep.subr.bf16.mxu0 0
  %3630 = vmatpush1.bf16.msra.mxu0 0
  %3631 = vmatprep.subr.bf16.mxu0 0
  %3632 = vmatpush1.bf16.msra.mxu0 0
  %3633 = vmatprep.mubr.bf16.mxu0 0
  %3634 = vmatmul.mubr.bf16.gmra.mrb[0].mxu0 %v3329
  %v3635 = vpop.f32.mrb[0].mxu0
  %v3636 = vadd.f32 0.0, %v3635
  %v3637 = vpop.f32.mrb[0].mxu0
  %v3638 = vadd.f32 0.0, %v3637
  %v3639 = vpop.f32.mrb[0].mxu0
  %v3640 = vadd.f32 0.0, %v3639
  %v3641 = vpop.f32.mrb[0].mxu0
  %v3642 = vadd.f32 0.0, %v3641
  %3643 = vdwg.mxu0
  %v3644 = vadd.f32 %v3550, %v3593
  %v3645 = vadd.f32 %v3551, %v3595
  %v3646 = vadd.f32 %v3552, %v3636
  %v3647 = vadd.f32 %v3553, %v3638
  %v3648 = vadd.f32 %v3554, %v3597
  %v3649 = vadd.f32 %v3555, %v3599
  %v3650 = vadd.f32 %v3556, %v3640
  %v3651 = vadd.f32 %v3557, %v3642
  %v3652 = vmul.f32 %v3644, 0.5
  %v3653 = vmul.f32 %v3648, 0.5
  %v3654 = vtanh.pop %v3652
  %v3655 = vtanh.pop %v3653
  %v3656 = vmul.f32 %v3654, 0.5
  %v3657 = vmul.f32 %v3655, 0.5
  %v3658 = vadd.f32 %v3656, 0.5
  %v3659 = vadd.f32 %v3657, 0.5
  %v3660 = vmul.f32 %v3645, 0.5
  %v3661 = vmul.f32 %v3649, 0.5
  %v3662 = vtanh.pop %v3660
  %v3663 = vtanh.pop %v3661
  %v3664 = vmul.f32 %v3662, 0.5
  %v3665 = vmul.f32 %v3663, 0.5
  %v3666 = vadd.f32 %v3664, 0.5
  %v3667 = vadd.f32 %v3665, 0.5
  %v3668 = vtanh.pop %v3646
  %v3669 = vtanh.pop %v3650
  %v3670 = vmul.f32 %v3647, 0.5
  %v3671 = vmul.f32 %v3651, 0.5
  %v3672 = vtanh.pop %v3670
  %v3673 = vtanh.pop %v3671
  %v3674 = vmul.f32 %v3672, 0.5
  %v3675 = vmul.f32 %v3673, 0.5
  %v3676 = vadd.f32 %v3674, 0.5
  %v3677 = vadd.f32 %v3675, 0.5
  %v3678 = vmul.f32 %v3666, %v3323
  %v3679 = vmul.f32 %v3667, %v3324
  %v3680 = vmul.f32 %v3658, %v3668
  %v3681 = vmul.f32 %v3659, %v3669
  %v3682 = vadd.f32 %v3678, %v3680
  %v3683 = vadd.f32 %v3679, %v3681
  %v3684 = vtanh.pop %v3682
  %v3685 = vtanh.pop %v3683
  %v3686 = vmul.f32 %v3676, %v3684
  %v3687 = vmul.f32 %v3677, %v3685
  %v3688 = vpack.c.bf16 %v3687, %v3686
  %3689 = vmatprep.subr.bf16.mxu0 %v953
  %3690 = vmatpush1.bf16.msra.mxu0 %v952
  %3691 = vmatprep.subr.bf16.mxu0 %v957
  %3692 = vmatpush1.bf16.msra.mxu0 %v956
  %3693 = vmatprep.subr.bf16.mxu0 %v961
  %3694 = vmatpush1.bf16.msra.mxu0 %v960
  %3695 = vmatprep.subr.bf16.mxu0 %v965
  %3696 = vmatpush1.bf16.msra.mxu0 %v964
  %3697 = vmatprep.subr.bf16.mxu0 %v969
  %3698 = vmatpush1.bf16.msra.mxu0 %v968
  %3699 = vmatprep.subr.bf16.mxu0 %v973
  %3700 = vmatpush1.bf16.msra.mxu0 %v972
  %3701 = vmatprep.subr.bf16.mxu0 %v977
  %3702 = vmatpush1.bf16.msra.mxu0 %v976
  %3703 = vmatprep.subr.bf16.mxu0 %v981
  %3704 = vmatpush1.bf16.msra.mxu0 %v980
  %3705 = vmatprep.subr.bf16.mxu0 0
  %3706 = vmatpush1.bf16.msra.mxu0 0
  %3707 = vmatprep.subr.bf16.mxu0 0
  %3708 = vmatpush1.bf16.msra.mxu0 0
  %3709 = vmatprep.subr.bf16.mxu0 0
  %3710 = vmatpush1.bf16.msra.mxu0 0
  %3711 = vmatprep.subr.bf16.mxu0 0
  %3712 = vmatpush1.bf16.msra.mxu0 0
  %3713 = vmatprep.subr.bf16.mxu0 0
  %3714 = vmatpush1.bf16.msra.mxu0 0
  %3715 = vmatprep.subr.bf16.mxu0 0
  %3716 = vmatpush1.bf16.msra.mxu0 0
  %3717 = vmatprep.subr.bf16.mxu0 0
  %3718 = vmatpush1.bf16.msra.mxu0 0
  %3719 = vmatprep.subr.bf16.mxu0 0
  %3720 = vmatpush1.bf16.msra.mxu0 0
  %3721 = vmatprep.mubr.bf16.mxu0 0
  %3722 = vmatmul.mubr.bf16.gmra.mrb[0].mxu0 %v3546
  %v3723 = vpop.f32.mrb[0].mxu0
  %v3724 = vadd.f32 0.0, %v3723
  %v3725 = vpop.f32.mrb[0].mxu0
  %v3726 = vadd.f32 0.0, %v3725
  %v3727 = vpop.f32.mrb[0].mxu0
  %v3728 = vadd.f32 0.0, %v3727
  %v3729 = vpop.f32.mrb[0].mxu0
  %v3730 = vadd.f32 0.0, %v3729
  %3731 = vdwg.mxu0
  %3732 = vmatprep.subr.bf16.mxu0 %v955
  %3733 = vmatpush1.bf16.msra.mxu0 %v954
  %3734 = vmatprep.subr.bf16.mxu0 %v959
  %3735 = vmatpush1.bf16.msra.mxu0 %v958
  %3736 = vmatprep.subr.bf16.mxu0 %v963
  %3737 = vmatpush1.bf16.msra.mxu0 %v962
  %3738 = vmatprep.subr.bf16.mxu0 %v967
  %3739 = vmatpush1.bf16.msra.mxu0 %v966
  %3740 = vmatprep.subr.bf16.mxu0 %v971
  %3741 = vmatpush1.bf16.msra.mxu0 %v970
  %3742 = vmatprep.subr.bf16.mxu0 %v975
  %3743 = vmatpush1.bf16.msra.mxu0 %v974
  %3744 = vmatprep.subr.bf16.mxu0 %v979
  %3745 = vmatpush1.bf16.msra.mxu0 %v978
  %3746 = vmatprep.subr.bf16.mxu0 %v983
  %3747 = vmatpush1.bf16.msra.mxu0 %v982
  %3748 = vmatprep.subr.bf16.mxu0 0
  %3749 = vmatpush1.bf16.msra.mxu0 0
  %3750 = vmatprep.subr.bf16.mxu0 0
  %3751 = vmatpush1.bf16.msra.mxu0 0
  %3752 = vmatprep.subr.bf16.mxu0 0
  %3753 = vmatpush1.bf16.msra.mxu0 0
  %3754 = vmatprep.subr.bf16.mxu0 0
  %3755 = vmatpush1.bf16.msra.mxu0 0
  %3756 = vmatprep.subr.bf16.mxu0 0
  %3757 = vmatpush1.bf16.msra.mxu0 0
  %3758 = vmatprep.subr.bf16.mxu0 0
  %3759 = vmatpush1.bf16.msra.mxu0 0
  %3760 = vmatprep.subr.bf16.mxu0 0
  %3761 = vmatpush1.bf16.msra.mxu0 0
  %3762 = vmatprep.subr.bf16.mxu0 0
  %3763 = vmatpush1.bf16.msra.mxu0 0
  %3764 = vmatprep.mubr.bf16.mxu0 0
  %3765 = vmatmul.mubr.bf16.gmra.mrb[0].mxu0 %v3546
  %v3766 = vpop.f32.mrb[0].mxu0
  %v3767 = vadd.f32 0.0, %v3766
  %v3768 = vpop.f32.mrb[0].mxu0
  %v3769 = vadd.f32 0.0, %v3768
  %v3770 = vpop.f32.mrb[0].mxu0
  %v3771 = vadd.f32 0.0, %v3770
  %v3772 = vpop.f32.mrb[0].mxu0
  %v3773 = vadd.f32 0.0, %v3772
  %3774 = vdwg.mxu0
  %3775 = vmatprep.subr.bf16.mxu0 %v1199
  %3776 = vmatpush1.bf16.msra.mxu0 %v1198
  %3777 = vmatprep.subr.bf16.mxu0 %v1203
  %3778 = vmatpush1.bf16.msra.mxu0 %v1202
  %3779 = vmatprep.subr.bf16.mxu0 %v1207
  %3780 = vmatpush1.bf16.msra.mxu0 %v1206
  %3781 = vmatprep.subr.bf16.mxu0 %v1211
  %3782 = vmatpush1.bf16.msra.mxu0 %v1210
  %3783 = vmatprep.subr.bf16.mxu0 %v1215
  %3784 = vmatpush1.bf16.msra.mxu0 %v1214
  %3785 = vmatprep.subr.bf16.mxu0 %v1219
  %3786 = vmatpush1.bf16.msra.mxu0 %v1218
  %3787 = vmatprep.subr.bf16.mxu0 %v1223
  %3788 = vmatpush1.bf16.msra.mxu0 %v1222
  %3789 = vmatprep.subr.bf16.mxu0 %v1227
  %3790 = vmatpush1.bf16.msra.mxu0 %v1226
  %3791 = vmatprep.subr.bf16.mxu0 0
  %3792 = vmatpush1.bf16.msra.mxu0 0
  %3793 = vmatprep.subr.bf16.mxu0 0
  %3794 = vmatpush1.bf16.msra.mxu0 0
  %3795 = vmatprep.subr.bf16.mxu0 0
  %3796 = vmatpush1.bf16.msra.mxu0 0
  %3797 = vmatprep.subr.bf16.mxu0 0
  %3798 = vmatpush1.bf16.msra.mxu0 0
  %3799 = vmatprep.subr.bf16.mxu0 0
  %3800 = vmatpush1.bf16.msra.mxu0 0
  %3801 = vmatprep.subr.bf16.mxu0 0
  %3802 = vmatpush1.bf16.msra.mxu0 0
  %3803 = vmatprep.subr.bf16.mxu0 0
  %3804 = vmatpush1.bf16.msra.mxu0 0
  %3805 = vmatprep.subr.bf16.mxu0 0
  %3806 = vmatpush1.bf16.msra.mxu0 0
  %3807 = vmatprep.mubr.bf16.mxu0 0
  %3808 = vmatmul.mubr.bf16.gmra.mrb[0].mxu0 %v3688
  %v3809 = vpop.f32.mrb[0].mxu0
  %v3810 = vadd.f32 %v3724, %v3809
  %v3811 = vpop.f32.mrb[0].mxu0
  %v3812 = vadd.f32 %v3726, %v3811
  %v3813 = vpop.f32.mrb[0].mxu0
  %v3814 = vadd.f32 %v3728, %v3813
  %v3815 = vpop.f32.mrb[0].mxu0
  %v3816 = vadd.f32 %v3730, %v3815
  %3817 = vdwg.mxu0
  %3818 = vmatprep.subr.bf16.mxu0 %v1201
  %3819 = vmatpush1.bf16.msra.mxu0 %v1200
  %3820 = vmatprep.subr.bf16.mxu0 %v1205
  %3821 = vmatpush1.bf16.msra.mxu0 %v1204
  %3822 = vmatprep.subr.bf16.mxu0 %v1209
  %3823 = vmatpush1.bf16.msra.mxu0 %v1208
  %3824 = vmatprep.subr.bf16.mxu0 %v1213
  %3825 = vmatpush1.bf16.msra.mxu0 %v1212
  %3826 = vmatprep.subr.bf16.mxu0 %v1217
  %3827 = vmatpush1.bf16.msra.mxu0 %v1216
  %3828 = vmatprep.subr.bf16.mxu0 %v1221
  %3829 = vmatpush1.bf16.msra.mxu0 %v1220
  %3830 = vmatprep.subr.bf16.mxu0 %v1225
  %3831 = vmatpush1.bf16.msra.mxu0 %v1224
  %3832 = vmatprep.subr.bf16.mxu0 %v1229
  %3833 = vmatpush1.bf16.msra.mxu0 %v1228
  %3834 = vmatprep.subr.bf16.mxu0 0
  %3835 = vmatpush1.bf16.msra.mxu0 0
  %3836 = vmatprep.subr.bf16.mxu0 0
  %3837 = vmatpush1.bf16.msra.mxu0 0
  %3838 = vmatprep.subr.bf16.mxu0 0
  %3839 = vmatpush1.bf16.msra.mxu0 0
  %3840 = vmatprep.subr.bf16.mxu0 0
  %3841 = vmatpush1.bf16.msra.mxu0 0
  %3842 = vmatprep.subr.bf16.mxu0 0
  %3843 = vmatpush1.bf16.msra.mxu0 0
  %3844 = vmatprep.subr.bf16.mxu0 0
  %3845 = vmatpush1.bf16.msra.mxu0 0
  %3846 = vmatprep.subr.bf16.mxu0 0
  %3847 = vmatpush1.bf16.msra.mxu0 0
  %3848 = vmatprep.subr.bf16.mxu0 0
  %3849 = vmatpush1.bf16.msra.mxu0 0
  %3850 = vmatprep.mubr.bf16.mxu0 0
  %3851 = vmatmul.mubr.bf16.gmra.mrb[0].mxu0 %v3688
  %v3852 = vpop.f32.mrb[0].mxu0
  %v3853 = vadd.f32 %v3767, %v3852
  %v3854 = vpop.f32.mrb[0].mxu0
  %v3855 = vadd.f32 %v3769, %v3854
  %v3856 = vpop.f32.mrb[0].mxu0
  %v3857 = vadd.f32 %v3771, %v3856
  %v3858 = vpop.f32.mrb[0].mxu0
  %v3859 = vadd.f32 %v3773, %v3858
  %3860 = vdwg.mxu0
  %v3861 = vadd.f32 %v3810, %v537
  %v3862 = vadd.f32 %v3812, %v541
  %v3863 = vadd.f32 %v3853, %v545
  %v3864 = vadd.f32 %v3855, %v549
  %v3865 = vadd.f32 %v3814, %v537
  %v3866 = vadd.f32 %v3816, %v541
  %v3867 = vadd.f32 %v3857, %v545
  %v3868 = vadd.f32 %v3859, %v549
  %v3869 = vmul.f32 %v3861, 0.5
  %v3870 = vmul.f32 %v3865, 0.5
  %v3871 = vtanh.pop %v3869
  %v3872 = vtanh.pop %v3870
  %v3873 = vmul.f32 %v3871, 0.5
  %v3874 = vmul.f32 %v3872, 0.5
  %v3875 = vadd.f32 %v3873, 0.5
  %v3876 = vadd.f32 %v3874, 0.5
  %v3877 = vmul.f32 %v3862, 0.5
  %v3878 = vmul.f32 %v3866, 0.5
  %v3879 = vtanh.pop %v3877
  %v3880 = vtanh.pop %v3878
  %v3881 = vmul.f32 %v3879, 0.5
  %v3882 = vmul.f32 %v3880, 0.5
  %v3883 = vadd.f32 %v3881, 0.5
  %v3884 = vadd.f32 %v3882, 0.5
  %v3885 = vtanh.pop %v3863
  %v3886 = vtanh.pop %v3867
  %v3887 = vmul.f32 %v3864, 0.5
  %v3888 = vmul.f32 %v3868, 0.5
  %v3889 = vtanh.pop %v3887
  %v3890 = vtanh.pop %v3888
  %v3891 = vmul.f32 %v3889, 0.5
  %v3892 = vmul.f32 %v3890, 0.5
  %v3893 = vadd.f32 %v3891, 0.5
  %v3894 = vadd.f32 %v3892, 0.5
  %v3895 = vmul.f32 %v3883, %v3540
  %v3896 = vmul.f32 %v3884, %v3541
  %v3897 = vmul.f32 %v3875, %v3885
  %v3898 = vmul.f32 %v3876, %v3886
  %v3899 = vadd.f32 %v3895, %v3897
  %v3900 = vadd.f32 %v3896, %v3898
  %v3901 = vtanh.pop %v3899
  %v3902 = vtanh.pop %v3900
  %v3903 = vmul.f32 %v3893, %v3901
  %v3904 = vmul.f32 %v3894, %v3902
  %v3905 = vpack.c.bf16 %v3904, %v3903
  %v3906 = vld [vmem:[%s3] sm:$0xff]
  %v3907 = vld [vmem:[%s3 + $0x8] sm:$0xff]
  %v3908 = vld [vmem:[%s3 + $0x10] sm:$0xff]
  %v3909 = vld [vmem:[%s3 + $0x18] sm:$0xff]
  %v3910 = vld [vmem:[%s3 + $0x20] sm:$0xff]
  %v3911 = vld [vmem:[%s3 + $0x28] sm:$0xff]
  %v3912 = vld [vmem:[%s3 + $0x30] sm:$0xff]
  %v3913 = vld [vmem:[%s3 + $0x38] sm:$0xff]
  %v3914 = vld [vmem:[%s3 + $0x40] sm:$0xff]
  %v3915 = vld [vmem:[%s3 + $0x48] sm:$0xff]
  %v3916 = vld [vmem:[%s3 + $0x50] sm:$0xff]
  %v3917 = vld [vmem:[%s3 + $0x58] sm:$0xff]
  %v3918 = vld [vmem:[%s3 + $0x60] sm:$0xff]
  %v3919 = vld [vmem:[%s3 + $0x68] sm:$0xff]
  %v3920 = vld [vmem:[%s3 + $0x70] sm:$0xff]
  %v3921 = vld [vmem:[%s3 + $0x78] sm:$0xff]
  %v3922 = vld [vmem:[%s3 + $0x80] sm:$0xf]
  %v3923 = vld [vmem:[%s3 + $0x88] sm:$0xf]
  %v3924 = vld [vmem:[%s3 + $0x90] sm:$0xf]
  %v3925 = vld [vmem:[%s3 + $0x98] sm:$0xf]
  %v3926 = vld [vmem:[%s3 + $0xa0] sm:$0xf]
  %v3927 = vld [vmem:[%s3 + $0xa8] sm:$0xf]
  %v3928 = vld [vmem:[%s3 + $0xb0] sm:$0xf]
  %v3929 = vld [vmem:[%s3 + $0xb8] sm:$0xf]
  %v3930 = vld [vmem:[%s3 + $0xc0] sm:$0xf]
  %v3931 = vld [vmem:[%s3 + $0xc8] sm:$0xf]
  %v3932 = vld [vmem:[%s3 + $0xd0] sm:$0xf]
  %v3933 = vld [vmem:[%s3 + $0xd8] sm:$0xf]
  %v3934 = vld [vmem:[%s3 + $0xe0] sm:$0xf]
  %v3935 = vld [vmem:[%s3 + $0xe8] sm:$0xf]
  %v3936 = vld [vmem:[%s3 + $0xf0] sm:$0xf]
  %v3937 = vld [vmem:[%s3 + $0xf8] sm:$0xf]
  %v3938 = vld [vmem:[%s3 + $0x100] sm:$0xf]
  %v3939 = vld [vmem:[%s3 + $0x108] sm:$0xf]
  %v3940 = vld [vmem:[%s3 + $0x110] sm:$0xf]
  %v3941 = vld [vmem:[%s3 + $0x118] sm:$0xf]
  %v3942 = vld [vmem:[%s3 + $0x120] sm:$0xf]
  %v3943 = vld [vmem:[%s3 + $0x128] sm:$0xf]
  %v3944 = vld [vmem:[%s3 + $0x130] sm:$0xf]
  %v3945 = vld [vmem:[%s3 + $0x138] sm:$0xf]
  %s3946 = scalar_lea.vmem %s2, 2
  %v3947 = vld [vmem:[%s3946] ss:$4 sm:$0x3]
  %v3949 = vlaneseq
  %v3950 = vshrl.u32 %v3949, 7
  %v3951 = vsub.s32 0, %v3950
  %v3952 = vrot.slane %v3947, %v3951
  %v3953 = vlaneseq
  %v3954 = vshrl.u32 %v3953, 7
  %v3955 = vsub.s32 1, %v3954
  %v3956 = vrot.slane %v3947, %v3955
  %v3975 = vunpack.c.l.b16 %v3906
  %v3976 = vunpack.c.h.b16 %v3906
  %v3977 = vunpack.c.l.b16 %v3907
  %v3978 = vunpack.c.h.b16 %v3907
  %v3979 = vunpack.c.l.b16 %v3908
  %v3980 = vunpack.c.h.b16 %v3908
  %v3981 = vunpack.c.l.b16 %v3909
  %v3982 = vunpack.c.h.b16 %v3909
  %v3983 = vunpack.c.l.b16 %v3910
  %v3984 = vunpack.c.h.b16 %v3910
  %v3985 = vunpack.c.l.b16 %v3911
  %v3986 = vunpack.c.h.b16 %v3911
  %v3987 = vunpack.c.l.b16 %v3912
  %v3988 = vunpack.c.h.b16 %v3912
  %v3989 = vunpack.c.l.b16 %v3913
  %v3990 = vunpack.c.h.b16 %v3913
  %v3991 = vunpack.c.l.b16 %v3914
  %v3992 = vunpack.c.h.b16 %v3914
  %v3993 = vunpack.c.l.b16 %v3915
  %v3994 = vunpack.c.h.b16 %v3915
  %v3995 = vunpack.c.l.b16 %v3916
  %v3996 = vunpack.c.h.b16 %v3916
  %v3997 = vunpack.c.l.b16 %v3917
  %v3998 = vunpack.c.h.b16 %v3917
  %v3999 = vunpack.c.l.b16 %v3918
  %v4000 = vunpack.c.h.b16 %v3918
  %v4001 = vunpack.c.l.b16 %v3919
  %v4002 = vunpack.c.h.b16 %v3919
  %v4003 = vunpack.c.l.b16 %v3920
  %v4004 = vunpack.c.h.b16 %v3920
  %v4005 = vunpack.c.l.b16 %v3921
  %v4006 = vunpack.c.h.b16 %v3921
  %v4007 = vpack.c.b16 %v3977, %v3975
  %v4008 = vpack.c.b16 %v3978, %v3976
  %v4009 = vpack.c.b16 %v3981, %v3979
  %v4010 = vpack.c.b16 %v3982, %v3980
  %v4011 = vpack.c.b16 %v3985, %v3983
  %v4012 = vpack.c.b16 %v3986, %v3984
  %v4013 = vpack.c.b16 %v3989, %v3987
  %v4014 = vpack.c.b16 %v3990, %v3988
  %v4015 = vpack.c.b16 %v3993, %v3991
  %v4016 = vpack.c.b16 %v3994, %v3992
  %v4017 = vpack.c.b16 %v3997, %v3995
  %v4018 = vpack.c.b16 %v3998, %v3996
  %v4019 = vpack.c.b16 %v4001, %v3999
  %v4020 = vpack.c.b16 %v4002, %v4000
  %v4021 = vpack.c.b16 %v4005, %v4003
  %v4022 = vpack.c.b16 %v4006, %v4004
  %4039 = vmatprep.subr.bf16.mxu0 %v4008
  %4040 = vmatpush1.bf16.msra.mxu0 %v4007
  %4041 = vmatprep.subr.bf16.mxu0 %v4010
  %4042 = vmatpush1.bf16.msra.mxu0 %v4009
  %4043 = vmatprep.subr.bf16.mxu0 %v4012
  %4044 = vmatpush1.bf16.msra.mxu0 %v4011
  %4045 = vmatprep.subr.bf16.mxu0 %v4014
  %4046 = vmatpush1.bf16.msra.mxu0 %v4013
  %4047 = vmatprep.subr.bf16.mxu0 %v4016
  %4048 = vmatpush1.bf16.msra.mxu0 %v4015
  %4049 = vmatprep.subr.bf16.mxu0 %v4018
  %4050 = vmatpush1.bf16.msra.mxu0 %v4017
  %4051 = vmatprep.subr.bf16.mxu0 %v4020
  %4052 = vmatpush1.bf16.msra.mxu0 %v4019
  %4053 = vmatprep.subr.bf16.mxu0 %v4022
  %4054 = vmatpush1.bf16.msra.mxu0 %v4021
  %4055 = vmatprep.subr.bf16.mxu0 0
  %4056 = vmatpush1.bf16.msra.mxu0 0
  %4057 = vmatprep.subr.bf16.mxu0 0
  %4058 = vmatpush1.bf16.msra.mxu0 0
  %4059 = vmatprep.subr.bf16.mxu0 0
  %4060 = vmatpush1.bf16.msra.mxu0 0
  %4061 = vmatprep.subr.bf16.mxu0 0
  %4062 = vmatpush1.bf16.msra.mxu0 0
  %4063 = vmatprep.subr.bf16.mxu0 0
  %4064 = vmatpush1.bf16.msra.mxu0 0
  %4065 = vmatprep.subr.bf16.mxu0 0
  %4066 = vmatpush1.bf16.msra.mxu0 0
  %4067 = vmatprep.subr.bf16.mxu0 0
  %4068 = vmatpush1.bf16.msra.mxu0 0
  %4069 = vmatprep.subr.bf16.mxu0 0
  %4070 = vmatpush1.bf16.msra.mxu0 0
  %4071 = vmatprep.mubr.bf16.mxu0 0
  %4072 = vmatmul.mubr.bf16.gmra.mrb[0].mxu0 %v3905
  %v4073 = vpop.f32.mrb[0].mxu0
  %v4074 = vadd.f32 %v3952, %v4073
  %v4075 = vpop.f32.mrb[0].mxu0
  %v4076 = vadd.f32 %v3956, %v4075
  %v4077 = vpop.f32.mrb[0].mxu0
  %v4078 = vadd.f32 %v3952, %v4077
  %v4079 = vpop.f32.mrb[0].mxu0
  %v4080 = vadd.f32 %v3956, %v4079
  %4081 = vdwg.mxu0
  %v4082 = vmax.f32 %v4074, 0.0
  %v4083 = vmax.f32 %v4076, 0.0
  %v4084 = vmax.f32 %v4078, 0.0
  %v4085 = vmax.f32 %v4080, 0.0
  %v4086 = vpack.c.bf16 %v4084, %v4082
  %v4087 = vpack.c.bf16 %v4085, %v4083
  %v4088 = vld [vmem:[%s2 + $0x3] sm:$0x1]
  %v4089 = vlaneseq
  %v4090 = vshrl.u32 %v4089, 7
  %v4091 = vsub.s32 0, %v4090
  %v4092 = vrot.slane %v4088, %v4091
  %v4117 = vunpack.c.l.b16 %v3922
  %v4118 = vunpack.c.l.b16 %v3923
  %v4119 = vunpack.c.l.b16 %v3924
  %v4120 = vunpack.c.l.b16 %v3925
  %v4121 = vunpack.c.l.b16 %v3926
  %v4122 = vunpack.c.l.b16 %v3927
  %v4123 = vunpack.c.l.b16 %v3928
  %v4124 = vunpack.c.l.b16 %v3929
  %v4125 = vunpack.c.l.b16 %v3930
  %v4126 = vunpack.c.l.b16 %v3931
  %v4127 = vunpack.c.l.b16 %v3932
  %v4128 = vunpack.c.l.b16 %v3933
  %v4129 = vunpack.c.l.b16 %v3934
  %v4130 = vunpack.c.l.b16 %v3935
  %v4131 = vunpack.c.l.b16 %v3936
  %v4132 = vunpack.c.l.b16 %v3937
  %v4133 = vunpack.c.l.b16 %v3938
  %v4134 = vunpack.c.l.b16 %v3939
  %v4135 = vunpack.c.l.b16 %v3940
  %v4136 = vunpack.c.l.b16 %v3941
  %v4137 = vunpack.c.l.b16 %v3942
  %v4138 = vunpack.c.l.b16 %v3943
  %v4139 = vunpack.c.l.b16 %v3944
  %v4140 = vunpack.c.l.b16 %v3945
  %v4141 = vpack.c.b16 %v4118, %v4117
  %v4142 = vpack.c.b16 %v4120, %v4119
  %v4143 = vpack.c.b16 %v4122, %v4121
  %v4144 = vpack.c.b16 %v4124, %v4123
  %v4145 = vpack.c.b16 %v4126, %v4125
  %v4146 = vpack.c.b16 %v4128, %v4127
  %v4147 = vpack.c.b16 %v4130, %v4129
  %v4148 = vpack.c.b16 %v4132, %v4131
  %v4149 = vpack.c.b16 %v4134, %v4133
  %v4150 = vpack.c.b16 %v4136, %v4135
  %v4151 = vpack.c.b16 %v4138, %v4137
  %v4152 = vpack.c.b16 %v4140, %v4139
  %vm4165 = vcmask 523264
  %v4167 = vsel %vm4165, %v4087, 0
  %4169 = vmatprep.subr.bf16.mxu0 0
  %4170 = vmatpush1.bf16.msra.mxu0 %v4141
  %4171 = vmatprep.subr.bf16.mxu0 0
  %4172 = vmatpush1.bf16.msra.mxu0 %v4142
  %4173 = vmatprep.subr.bf16.mxu0 0
  %4174 = vmatpush1.bf16.msra.mxu0 %v4143
  %4175 = vmatprep.subr.bf16.mxu0 0
  %4176 = vmatpush1.bf16.msra.mxu0 %v4144
  %4177 = vmatprep.subr.bf16.mxu0 0
  %4178 = vmatpush1.bf16.msra.mxu0 %v4145
  %4179 = vmatprep.subr.bf16.mxu0 0
  %4180 = vmatpush1.bf16.msra.mxu0 %v4146
  %4181 = vmatprep.subr.bf16.mxu0 0
  %4182 = vmatpush1.bf16.msra.mxu0 %v4147
  %4183 = vmatprep.subr.bf16.mxu0 0
  %4184 = vmatpush1.bf16.msra.mxu0 %v4148
  %4185 = vmatprep.subr.bf16.mxu0 0
  %4186 = vmatpush1.bf16.msra.mxu0 %v4149
  %4187 = vmatprep.subr.bf16.mxu0 0
  %4188 = vmatpush1.bf16.msra.mxu0 %v4150
  %4189 = vmatprep.subr.bf16.mxu0 0
  %4190 = vmatpush1.bf16.msra.mxu0 %v4151
  %4191 = vmatprep.subr.bf16.mxu0 0
  %4192 = vmatpush1.bf16.msra.mxu0 %v4152
  %4193 = vmatprep.subr.bf16.mxu0 0
  %4194 = vmatpush1.bf16.msra.mxu0 0
  %4195 = vmatprep.subr.bf16.mxu0 0
  %4196 = vmatpush1.bf16.msra.mxu0 0
  %4197 = vmatprep.subr.bf16.mxu0 0
  %4198 = vmatpush1.bf16.msra.mxu0 0
  %4199 = vmatprep.subr.bf16.mxu0 0
  %4200 = vmatpush1.bf16.msra.mxu0 0
  %4201 = vmatprep.mubr.bf16.mxu0 %v4167
  %4202 = vmatmul.mubr.bf16.gmra.mrb[0].mxu0 %v4086
  %v4203 = vpop.f32.mrb[0].mxu0
  %v4204 = vadd.f32 %v4092, %v4203
  %v4205 = vpop.f32.mrb[0].mxu0
  %v4206 = vpop.f32.mrb[0].mxu0
  %v4207 = vadd.f32 %v4092, %v4206
  %v4208 = vpop.f32.mrb[0].mxu0
  %4209 = vdwg.mxu0
  %v4210 = vlaneseq
  %v4211 = vand.u32 %v4210, 127
  %v4212 = vtanh.pop %v4204
  %v4213 = vtanh.pop %v4207
  %v4214 = vmax.f32 %v4204, 0.0
  %v4215 = vmax.f32 %v4207, 0.0
  %v4216 = vand.u32 2147483647, %v4204
  %v4217 = vand.u32 2147483647, %v4207
  %v4218 = vsub.f32 0.0, %v4216
  %v4219 = vsub.f32 0.0, %v4217
  %v4220 = vmul.f32 %v4218, 1.442695
  %v4221 = vpow.pop %v4220
  %v4222 = vmul.f32 %v4219, 1.442695
  %v4223 = vpow.pop %v4222
  %v4224 = vadd.f32 %v4221, 1.0
  %v4225 = vlog2.pop %v4224
  %v4226 = vmul.f32 %v4225, 0.6931472
  %v4227 = vmul.f32 -0.5, %v4221
  %v4228 = vadd.f32 %v4227, 1.0
  %v4229 = vmul.f32 %v4228, %v4221
  %v4230 = vand.u32 2147483647, %v4221
  %vm4231 = vcmp.lt.f32.partialorder %v4230, 0.0004427343
  %v4232 = vsel %vm4231, %v4229, %v4226
  %v4233 = vadd.f32 %v4223, 1.0
  %v4234 = vlog2.pop %v4233
  %v4235 = vmul.f32 %v4234, 0.6931472
  %v4236 = vmul.f32 -0.5, %v4223
  %v4237 = vadd.f32 %v4236, 1.0
  %v4238 = vmul.f32 %v4237, %v4223
  %v4239 = vand.u32 2147483647, %v4223
  %vm4240 = vcmp.lt.f32.partialorder %v4239, 0.0004427343
  %v4241 = vsel %vm4240, %v4238, %v4235
  %v4242 = vadd.f32 %v4214, %v4232
  %v4243 = vadd.f32 %v4215, %v4241
  %v4244 = vadd.f32 %v4242, 1e-06
  %v4245 = vadd.f32 %v4243, 1e-06
  %vm4246 = vcmp.eq.s32.totalorder %v4211, 0
  %vm4247 = vcmp.eq.s32.totalorder %v4211, 1
  %v4248 = vsel %vm4247, %v4244, %v4204
  %v4249 = vsel %vm4247, %v4245, %v4207
  %v4250 = vsel %vm4246, %v4212, %v4248
  %v4251 = vsel %vm4246, %v4213, %v4249
  %4252 = vst [vmem:[%s4] sm:$0xff] %v4250
  %4253 = vst [vmem:[%s4 + $0x8] sm:$0xff] %v4251
  // Predicated region
  $region18: #{actor_critic_forward.1} parent=0 // pred_check
    _
  $region19: #{actor_critic_forward.1} parent=0 // pred_check_branch
    %4255 = sbr.rel (0) target = $region21
  $region20: #{actor_critic_forward.1} parent=0 // pred_region
    _
  $region21: #{actor_critic_forward.1} parent=0 // pred_fallthru
    _
  // Predicated region
  $region22: #{actor_critic_forward.1} parent=0 // pred_check
    _
  $region23: #{actor_critic_forward.1} parent=0 // pred_check_branch
    %4257 = sbr.rel (0) target = $region25
  $region24: #{actor_critic_forward.1} parent=0 // pred_region
    _
  $region25: #{actor_critic_forward.1} parent=0 // pred_fallthru
    _

</llo_original>
